<compile_context>
chip_gen: v5e
topology: v5e:2x2
jax: 0.10.0
libtpu: 0.0.40
codegen_flags: <defaults>
</compile_context>

<pallas_src>
import jax
import jax.numpy as jnp
from jax import lax
from jax.experimental import pallas as pl
from jax.experimental.pallas import tpu as pltpu

LANE = 128


def _round_up(v, m):
    return (v + m - 1) // m * m


def _pad_axis(a, axis, target):
    if a.shape[axis] == target:
        return a
    widths = [(0, 0)] * a.ndim
    widths[axis] = (0, target - a.shape[axis])
    return jnp.pad(a, widths)


def fold_bn(gamma, beta, mean, var, eps=1e-5):
    scale = gamma / jnp.sqrt(var + eps)
    bias = beta - mean * scale
    return scale.reshape(1, -1), bias.reshape(1, -1)


def _pick_block_h(H, W):
    """Smallest divisor BH of H with BH*W >= ~1024 (and BH >= 2), else H."""
    target = max(2, -(-1024 // W))
    for bh in range(target, H):
        if H % bh == 0:
            return bh
    return H


def _make_kernel(H, W, BH, Cp, Pp, extra):
    Hh = BH + 4            # halo window height (2 rows each side, dilation=2)
    Mh = Hh * W            # rows of the conv1 matmul (window)
    M = BH * W             # rows of the output tile
    f32, bf16 = jnp.float32, jnp.bfloat16

    def kernel(*refs):
        if extra:
            x_ref, hal_ref, w1_ref, we_ref, w2_ref, w3_ref, sb_ref, o_ref = refs
        else:
            x_ref, hal_ref, w1_ref, w2_ref, w3_ref, sb_ref, o_ref = refs

        # ---- assemble the halo window from the interior tile + halo rows ----
        xin = x_ref[0]                          # (BH, W, Cp) bf16
        xtop = hal_ref[0, 0, 0:2]               # (2, W, Cp)
        xbot = hal_ref[0, 0, 2:4]               # (2, W, Cp)
        xwin = jnp.concatenate([xtop, xin, xbot], axis=0)   # (Hh, W, Cp)

        # ---- conv1 (1x1) + BN1 + ReLU over the window -----------------------
        y1 = jnp.dot(xwin.reshape(Mh, Cp), w1_ref[...],
                     preferred_element_type=f32)             # (Mh, Pp)
        y1 = jnp.maximum(y1 * sb_ref[0:1] + sb_ref[1:2], 0.0).reshape(Hh, W, Pp)

        # Window rows outside the image are conv2's zero padding; conv1 of a
        # zero row is relu(b1) != 0, so force them to zero here.
        prow = (pl.program_id(1) * BH - 2
                + lax.broadcasted_iota(jnp.int32, (Hh, 1, 1), 0))
        y1 = jnp.where((prow >= 0) & (prow < H), y1, 0.0)
        y1c = y1.astype(bf16)                                # (Hh, W, Pp)

        # ---- W-shifted views for the dilation-2 taps -------------------------
        # Extend with 8 zero columns each side (sublane-aligned concat), then
        # slice; out-of-image columns land in the zero pad automatically.
        z8 = jnp.zeros((Hh, 8, Pp), bf16)
        y1e = jnp.concatenate([z8, y1c, z8], axis=1)         # (Hh, W+16, Pp)
        win_r = y1e[:, 6:6 + W, :]     # col c -> y1[c-2]  (0 for c < 2)
        win_l = y1e[:, 10:10 + W, :]   # col c -> y1[c+2]  (0 for c >= W-2)
        wins = (win_r, y1c, win_l)     # indexed by kw = 0, 1, 2

        # ---- conv2 (3x3, dilation=2): 9 accumulating MXU matmuls ------------
        y2 = None
        for kh in range(3):
            for kw in range(3):
                op = wins[kw][kh * 2:kh * 2 + BH].reshape(M, Pp)
                d = jnp.dot(op, w2_ref[kh * 3 + kw],
                            preferred_element_type=f32)
                y2 = d if y2 is None else y2 + d
        y2 = jnp.maximum(y2 * sb_ref[2:3] + sb_ref[3:4], 0.0)

        # ---- conv3 (1x1) + folded BN3 ----------------------------------------
        y3 = jnp.dot(y2.astype(bf16), w3_ref[...], preferred_element_type=f32)
        y3 = y3 * sb_ref[4:5] + sb_ref[5:6]

        # ---- shortcut (interior rows only; no halo-row FLOPs) ----------------
        if extra:
            ide = jnp.dot(xin.reshape(M, Cp), we_ref[...],
                          preferred_element_type=f32)
            ide = ide * sb_ref[6:7] + sb_ref[7:8]
        else:
            ide = xin.reshape(M, Cp).astype(f32)     # reuse loaded tile

        out = jnp.maximum(y3 + ide, 0.0)
        o_ref[...] = out.reshape(1, BH, W, Pp).astype(o_ref.dtype)

    return kernel


def det_bottleneck(x, params, *, extra=True, block_h=None):
    """x: (N, H, W, Cin) float32, NHWC.  Returns (N, H, W, planes) float32."""
    N, H, W, Cin = x.shape
    P = params["w1"].shape[1]
    if not extra:
        assert Cin == P, "identity shortcut needs inplanes == planes"
    if block_h is None:
        BH = _pick_block_h(H, W)
    else:
        BH = block_h if (H % block_h == 0) else H
    if BH < 2:
        BH = H                      # halo gather below assumes BH >= 2
    nb = H // BH
    Cp = _round_up(Cin, LANE)
    Pp = _round_up(P, LANE)
    bf16, f32 = jnp.bfloat16, jnp.float32

    # Channel lane-pad + bf16 cast (single XLA pass; skipped when already ok).
    if Cin == Cp and x.dtype == bf16:
        xb = x
    else:
        xb = _pad_axis(x, 3, Cp).astype(bf16)

    # Per-row-block halo rows (2 above + 2 below each block): (N, nb, 4, W, Cp)
    # -- only 4/BH of the image, no full H-padded copy of x.
    zrows = jnp.zeros((N, 2, W, Cp), bf16)

    def _top(h):
        return zrows if h == 0 else xb[:, h * BH - 2:h * BH]

    def _bot(h):
        return zrows if h == nb - 1 else xb[:, (h + 1) * BH:(h + 1) * BH + 2]

    halos = jnp.stack(
        [jnp.concatenate([_top(h), _bot(h)], axis=1) for h in range(nb)],
        axis=1)

    # Weights: channel-padded, bf16, w2 laid out as (9, Pp, Pp) tap-major.
    w1p = _pad_axis(_pad_axis(params["w1"], 0, Cp), 1, Pp).astype(bf16)
    w2m = _pad_axis(_pad_axis(params["w2"], 2, Pp), 3, Pp)
    w2m = w2m.reshape(9, Pp, Pp).astype(bf16)
    w3p = _pad_axis(_pad_axis(params["w3"], 0, Pp), 1, Pp).astype(bf16)
    weights = [w1p]
    if extra:
        weights.append(
            _pad_axis(_pad_axis(params["we"], 0, Cp), 1, Pp).astype(bf16))
    weights += [w2m, w3p]

    # Pack all BN scale/bias rows into one (k, Pp) array (one constant DMA).
    names = ["s1", "b1", "s2", "b2", "s3", "b3"] + (["se", "be"] if extra else [])
    sb = jnp.concatenate([_pad_axis(params[n], 1, Pp) for n in names],
                         axis=0).astype(f32)

    def full(shape):
        return pl.BlockSpec(shape, lambda n, h: (0,) * len(shape))

    in_specs = ([pl.BlockSpec((1, BH, W, Cp), lambda n, h: (n, h, 0, 0)),
                 pl.BlockSpec((1, 1, 4, W, Cp), lambda n, h: (n, h, 0, 0, 0))]
                + [full(w.shape) for w in weights]
                + [full(sb.shape)])

    out = pl.pallas_call(
        _make_kernel(H, W, BH, Cp, Pp, extra),
        out_shape=jax.ShapeDtypeStruct((N, H, W, Pp), f32),
        grid=(N, nb),
        in_specs=in_specs,
        out_specs=pl.BlockSpec((1, BH, W, Pp), lambda n, h: (n, h, 0, 0)),
        compiler_params=pltpu.CompilerParams(
            dimension_semantics=("parallel", "parallel"),
            vmem_limit_bytes=32 * 1024 * 1024),
    )(xb, halos, *weights, sb)
    return out[..., :P]


def det_bottleneck_ref(x, params, *, extra=True):
    """Pure-JAX reference mirroring the kernel precision policy
    (bf16 matmul operands, f32 accumulation / BN / ReLU)."""
    bf16, f32 = jnp.bfloat16, jnp.float32
    dn = ("NHWC", "HWIO", "NHWC")

    def conv1x1(inp, w):
        return lax.conv_general_dilated(
            inp.astype(bf16), w.reshape(1, 1, *w.shape).astype(bf16),
            (1, 1), "VALID", dimension_numbers=dn, preferred_element_type=f32)

    y = conv1x1(x, params["w1"])
    y = jnp.maximum(y * params["s1"] + params["b1"], 0.0)
    y = lax.conv_general_dilated(
        y.astype(bf16), params["w2"].astype(bf16), (1, 1),
        ((2, 2), (2, 2)), rhs_dilation=(2, 2), dimension_numbers=dn,
        preferred_element_type=f32)
    y = jnp.maximum(y * params["s2"] + params["b2"], 0.0)
    y = conv1x1(y, params["w3"])
    y = y * params["s3"] + params["b3"]
    if extra:
        ident = conv1x1(x, params["we"]) * params["se"] + params["be"]
    else:
        ident = x.astype(bf16).astype(f32)
    return jnp.maximum(y + ident, 0.0)


if __name__ == "__main__":
    key = jax.random.PRNGKey(0)

    def bn_params(k, c):
        k1, k2, k3, k4 = jax.random.split(k, 4)
        gamma = 1.0 + 0.1 * jax.random.normal(k1, (c,), jnp.float32)
        beta = 0.1 * jax.random.normal(k2, (c,), jnp.float32)
        mean = 0.1 * jax.random.normal(k3, (c,), jnp.float32)
        var = jax.random.uniform(k4, (c,), jnp.float32, minval=0.5, maxval=1.5)
        return gamma, beta, mean, var

    def make_params(k, inplanes, planes, extra):
        ks = jax.random.split(k, 8)
        p = dict(
            w1=0.1 * jax.random.normal(ks[0], (inplanes, planes), jnp.float32),
            w2=0.1 * jax.random.normal(ks[1], (3, 3, planes, planes), jnp.float32),
            w3=0.1 * jax.random.normal(ks[2], (planes, planes), jnp.float32))
        p["s1"], p["b1"] = fold_bn(*bn_params(ks[3], planes))
        p["s2"], p["b2"] = fold_bn(*bn_params(ks[4], planes))
        p["s3"], p["b3"] = fold_bn(*bn_params(ks[5], planes))
        if extra:
            p["we"] = 0.1 * jax.random.normal(ks[6], (inplanes, planes), jnp.float32)
            p["se"], p["be"] = fold_bn(*bn_params(ks[7], planes))
        return p

    N, H, W = 2, 16, 16
    # TODO(synk): BatchNorm is implemented in folded inference form
    # (scale/bias from running stats); training-mode batch statistics are not
    # modeled.  Only the module's default stride=1 configuration (1x1 conv1 /
    # conv3) is implemented.
    for inplanes, planes, extra in [(8, 16, True), (16, 16, False)]:
        kx, kp, key = jax.random.split(key, 3)
        x = jax.random.normal(kx, (N, H, W, inplanes), jnp.float32)
        params = make_params(kp, inplanes, planes, extra)

        out = jax.block_until_ready(det_bottleneck(x, params, extra=extra))
        ref = det_bottleneck_ref(x, params, extra=extra)

        assert out.shape == (N, H, W, planes)
        err = float(jnp.max(jnp.abs(out - ref)))
        assert err < 1e-2, f"extra={extra}: max abs err = {err}"

    print("KERNEL_OK")
</pallas_src>

<mosaic_0001>
module attributes {stable_mosaic.version = 11 : i64} {
  func.func @kernel(%arg0: i32, %arg1: i32, %arg2: memref<1x16x16x128xbf16, #tpu.memory_space<vmem>>, %arg3: memref<1x1x4x16x128xbf16, #tpu.memory_space<vmem>>, %arg4: memref<128x128xbf16, #tpu.memory_space<vmem>>, %arg5: memref<128x128xbf16, #tpu.memory_space<vmem>>, %arg6: memref<9x128x128xbf16, #tpu.memory_space<vmem>>, %arg7: memref<128x128xbf16, #tpu.memory_space<vmem>>, %arg8: memref<8x128xf32, #tpu.memory_space<vmem>>, %arg9: memref<1x16x16x128xf32, #tpu.memory_space<vmem>>) attributes {dimension_semantics = [#tpu.dimension_semantics<parallel>, #tpu.dimension_semantics<parallel>], iteration_bounds = array<i64: 2, 1>, scalar_prefetch = 0 : i64, scratch_operands = 0 : i64, tpu.core_type = #tpu.core_type<tc>, window_params = [{transform_indices = @transform_0, window_bounds = array<i64: 1, 16, 16, 128>}, {transform_indices = @transform_1, window_bounds = array<i64: 1, 1, 4, 16, 128>}, {pipeline_mode = #tpu.pipeline_mode<synchronous>, transform_indices = @transform_2, window_bounds = array<i64: 128, 128>}, {pipeline_mode = #tpu.pipeline_mode<synchronous>, transform_indices = @transform_3, window_bounds = array<i64: 128, 128>}, {pipeline_mode = #tpu.pipeline_mode<synchronous>, transform_indices = @transform_4, window_bounds = array<i64: 9, 128, 128>}, {pipeline_mode = #tpu.pipeline_mode<synchronous>, transform_indices = @transform_5, window_bounds = array<i64: 128, 128>}, {pipeline_mode = #tpu.pipeline_mode<synchronous>, transform_indices = @transform_6, window_bounds = array<i64: 8, 128>}, {transform_indices = @transform_7, window_bounds = array<i64: 1, 16, 16, 128>}]} {
    %c0 = arith.constant 0 : index
    %c0_0 = arith.constant 0 : index
    %c0_1 = arith.constant 0 : index
    %c0_2 = arith.constant 0 : index
    %0 = vector.load %arg2[%c0, %c0_0, %c0_1, %c0_2] : memref<1x16x16x128xbf16, #tpu.memory_space<vmem>>, vector<1x16x16x128xbf16>
    %1 = vector.shape_cast %0 : vector<1x16x16x128xbf16> to vector<16x16x128xbf16>
    %c0_3 = arith.constant 0 : index
    %c0_4 = arith.constant 0 : index
    %c0_5 = arith.constant 0 : index
    %c0_6 = arith.constant 0 : index
    %c0_7 = arith.constant 0 : index
    %2 = vector.load %arg3[%c0_3, %c0_4, %c0_5, %c0_6, %c0_7] : memref<1x1x4x16x128xbf16, #tpu.memory_space<vmem>>, vector<1x1x2x16x128xbf16>
    %3 = vector.shape_cast %2 : vector<1x1x2x16x128xbf16> to vector<2x16x128xbf16>
    %c0_8 = arith.constant 0 : index
    %c0_9 = arith.constant 0 : index
    %c2 = arith.constant 2 : index
    %c0_10 = arith.constant 0 : index
    %c0_11 = arith.constant 0 : index
    %4 = vector.load %arg3[%c0_8, %c0_9, %c2, %c0_10, %c0_11] : memref<1x1x4x16x128xbf16, #tpu.memory_space<vmem>>, vector<1x1x2x16x128xbf16>
    %5 = vector.shape_cast %4 : vector<1x1x2x16x128xbf16> to vector<2x16x128xbf16>
    %6 = tpu.concatenate %3, %1, %5 in 0 : vector<2x16x128xbf16>, vector<16x16x128xbf16>, vector<2x16x128xbf16> -> vector<20x16x128xbf16>
    %7 = vector.shape_cast %6 : vector<20x16x128xbf16> to vector<320x128xbf16>
    %c0_12 = arith.constant 0 : index
    %c0_13 = arith.constant 0 : index
    %8 = vector.load %arg4[%c0_12, %c0_13] : memref<128x128xbf16, #tpu.memory_space<vmem>>, vector<128x128xbf16>
    %cst = arith.constant dense<0.000000e+00> : vector<320x128xf32>
    %9 = tpu.matmul %7, %8, %cst {dimension_numbers = #tpu.dot_dimension_numbers<[1], [0], [0], [1], [0, 0, 1, 1], [], []>} : vector<320x128xbf16>, vector<128x128xbf16>, vector<320x128xf32> -> vector<320x128xf32>
    %c0_14 = arith.constant 0 : index
    %c0_15 = arith.constant 0 : index
    %10 = vector.load %arg8[%c0_14, %c0_15] : memref<8x128xf32, #tpu.memory_space<vmem>>, vector<1x128xf32>
    %11 = vector.broadcast %10 : vector<1x128xf32> to vector<320x128xf32>
    %12 = arith.mulf %9, %11 : vector<320x128xf32>
    %c1 = arith.constant 1 : index
    %c0_16 = arith.constant 0 : index
    %13 = vector.load %arg8[%c1, %c0_16] : memref<8x128xf32, #tpu.memory_space<vmem>>, vector<1x128xf32>
    %14 = vector.broadcast %13 : vector<1x128xf32> to vector<320x128xf32>
    %15 = arith.addf %12, %14 : vector<320x128xf32>
    %cst_17 = arith.constant 0.000000e+00 : f32
    %16 = vector.broadcast %cst_17 : f32 to vector<320x128xf32>
    %17 = arith.maximumf %15, %16 : vector<320x128xf32>
    %18 = vector.shape_cast %17 : vector<320x128xf32> to vector<20x16x128xf32>
    %c16_i32 = arith.constant 16 : i32
    %19 = arith.muli %arg1, %c16_i32 : i32
    %c2_i32 = arith.constant 2 : i32
    %20 = arith.subi %19, %c2_i32 : i32
    %21 = tpu.iota {dimensions = array<i32: 0>} : vector<20x1x1xi32>
    %22 = vector.broadcast %20 : i32 to vector<20x1x1xi32>
    %23 = arith.addi %22, %21 : vector<20x1x1xi32>
    %c0_i32 = arith.constant 0 : i32
    %24 = vector.broadcast %c0_i32 : i32 to vector<20x1x1xi32>
    %25 = arith.cmpi sge, %23, %24 : vector<20x1x1xi32>
    %c16_i32_18 = arith.constant 16 : i32
    %26 = vector.broadcast %c16_i32_18 : i32 to vector<20x1x1xi32>
    %27 = arith.cmpi slt, %23, %26 : vector<20x1x1xi32>
    %28 = arith.andi %25, %27 : vector<20x1x1xi1>
    %cst_19 = arith.constant 0.000000e+00 : f32
    %29 = vector.shape_cast %28 : vector<20x1x1xi1> to vector<20x1x1xi1>
    %30 = vector.broadcast %29 : vector<20x1x1xi1> to vector<20x16x128xi1>
    %31 = vector.broadcast %cst_19 : f32 to vector<20x16x128xf32>
    %32 = arith.select %30, %18, %31 : vector<20x16x128xi1>, vector<20x16x128xf32>
    %33 = arith.truncf %32 : vector<20x16x128xf32> to vector<20x16x128xbf16>
    %cst_20 = arith.constant 0.000000e+00 : bf16
    %34 = vector.broadcast %cst_20 : bf16 to vector<20x8x128xbf16>
    %35 = tpu.concatenate %34, %33, %34 in 1 : vector<20x8x128xbf16>, vector<20x16x128xbf16>, vector<20x8x128xbf16> -> vector<20x32x128xbf16>
    %36 = vector.extract_strided_slice %35 {offsets = [0, 6, 0], sizes = [20, 16, 128], strides = [1, 1, 1]} : vector<20x32x128xbf16> to vector<20x16x128xbf16>
    %37 = vector.extract_strided_slice %35 {offsets = [0, 10, 0], sizes = [20, 16, 128], strides = [1, 1, 1]} : vector<20x32x128xbf16> to vector<20x16x128xbf16>
    %38 = vector.extract_strided_slice %36 {offsets = [0, 0, 0], sizes = [16, 16, 128], strides = [1, 1, 1]} : vector<20x16x128xbf16> to vector<16x16x128xbf16>
    %39 = vector.shape_cast %38 : vector<16x16x128xbf16> to vector<256x128xbf16>
    %c0_21 = arith.constant 0 : index
    %c0_22 = arith.constant 0 : index
    %c0_23 = arith.constant 0 : index
    %40 = vector.load %arg6[%c0_21, %c0_22, %c0_23] : memref<9x128x128xbf16, #tpu.memory_space<vmem>>, vector<1x128x128xbf16>
    %41 = vector.shape_cast %40 : vector<1x128x128xbf16> to vector<128x128xbf16>
    %cst_24 = arith.constant dense<0.000000e+00> : vector<256x128xf32>
    %42 = tpu.matmul %39, %41, %cst_24 {dimension_numbers = #tpu.dot_dimension_numbers<[1], [0], [0], [1], [0, 0, 1, 1], [], []>} : vector<256x128xbf16>, vector<128x128xbf16>, vector<256x128xf32> -> vector<256x128xf32>
    %43 = vector.extract_strided_slice %33 {offsets = [0, 0, 0], sizes = [16, 16, 128], strides = [1, 1, 1]} : vector<20x16x128xbf16> to vector<16x16x128xbf16>
    %44 = vector.shape_cast %43 : vector<16x16x128xbf16> to vector<256x128xbf16>
    %c1_25 = arith.constant 1 : index
    %c0_26 = arith.constant 0 : index
    %c0_27 = arith.constant 0 : index
    %45 = vector.load %arg6[%c1_25, %c0_26, %c0_27] : memref<9x128x128xbf16, #tpu.memory_space<vmem>>, vector<1x128x128xbf16>
    %46 = vector.shape_cast %45 : vector<1x128x128xbf16> to vector<128x128xbf16>
    %cst_28 = arith.constant dense<0.000000e+00> : vector<256x128xf32>
    %47 = tpu.matmul %44, %46, %cst_28 {dimension_numbers = #tpu.dot_dimension_numbers<[1], [0], [0], [1], [0, 0, 1, 1], [], []>} : vector<256x128xbf16>, vector<128x128xbf16>, vector<256x128xf32> -> vector<256x128xf32>
    %48 = arith.addf %42, %47 : vector<256x128xf32>
    %49 = vector.extract_strided_slice %37 {offsets = [0, 0, 0], sizes = [16, 16, 128], strides = [1, 1, 1]} : vector<20x16x128xbf16> to vector<16x16x128xbf16>
    %50 = vector.shape_cast %49 : vector<16x16x128xbf16> to vector<256x128xbf16>
    %c2_29 = arith.constant 2 : index
    %c0_30 = arith.constant 0 : index
    %c0_31 = arith.constant 0 : index
    %51 = vector.load %arg6[%c2_29, %c0_30, %c0_31] : memref<9x128x128xbf16, #tpu.memory_space<vmem>>, vector<1x128x128xbf16>
    %52 = vector.shape_cast %51 : vector<1x128x128xbf16> to vector<128x128xbf16>
    %cst_32 = arith.constant dense<0.000000e+00> : vector<256x128xf32>
    %53 = tpu.matmul %50, %52, %cst_32 {dimension_numbers = #tpu.dot_dimension_numbers<[1], [0], [0], [1], [0, 0, 1, 1], [], []>} : vector<256x128xbf16>, vector<128x128xbf16>, vector<256x128xf32> -> vector<256x128xf32>
    %54 = arith.addf %48, %53 : vector<256x128xf32>
    %55 = vector.extract_strided_slice %36 {offsets = [2, 0, 0], sizes = [16, 16, 128], strides = [1, 1, 1]} : vector<20x16x128xbf16> to vector<16x16x128xbf16>
    %56 = vector.shape_cast %55 : vector<16x16x128xbf16> to vector<256x128xbf16>
    %c3 = arith.constant 3 : index
    %c0_33 = arith.constant 0 : index
    %c0_34 = arith.constant 0 : index
    %57 = vector.load %arg6[%c3, %c0_33, %c0_34] : memref<9x128x128xbf16, #tpu.memory_space<vmem>>, vector<1x128x128xbf16>
    %58 = vector.shape_cast %57 : vector<1x128x128xbf16> to vector<128x128xbf16>
    %cst_35 = arith.constant dense<0.000000e+00> : vector<256x128xf32>
    %59 = tpu.matmul %56, %58, %cst_35 {dimension_numbers = #tpu.dot_dimension_numbers<[1], [0], [0], [1], [0, 0, 1, 1], [], []>} : vector<256x128xbf16>, vector<128x128xbf16>, vector<256x128xf32> -> vector<256x128xf32>
    %60 = arith.addf %54, %59 : vector<256x128xf32>
    %61 = vector.extract_strided_slice %33 {offsets = [2, 0, 0], sizes = [16, 16, 128], strides = [1, 1, 1]} : vector<20x16x128xbf16> to vector<16x16x128xbf16>
    %62 = vector.shape_cast %61 : vector<16x16x128xbf16> to vector<256x128xbf16>
    %c4 = arith.constant 4 : index
    %c0_36 = arith.constant 0 : index
    %c0_37 = arith.constant 0 : index
    %63 = vector.load %arg6[%c4, %c0_36, %c0_37] : memref<9x128x128xbf16, #tpu.memory_space<vmem>>, vector<1x128x128xbf16>
    %64 = vector.shape_cast %63 : vector<1x128x128xbf16> to vector<128x128xbf16>
    %cst_38 = arith.constant dense<0.000000e+00> : vector<256x128xf32>
    %65 = tpu.matmul %62, %64, %cst_38 {dimension_numbers = #tpu.dot_dimension_numbers<[1], [0], [0], [1], [0, 0, 1, 1], [], []>} : vector<256x128xbf16>, vector<128x128xbf16>, vector<256x128xf32> -> vector<256x128xf32>
    %66 = arith.addf %60, %65 : vector<256x128xf32>
    %67 = vector.extract_strided_slice %37 {offsets = [2, 0, 0], sizes = [16, 16, 128], strides = [1, 1, 1]} : vector<20x16x128xbf16> to vector<16x16x128xbf16>
    %68 = vector.shape_cast %67 : vector<16x16x128xbf16> to vector<256x128xbf16>
    %c5 = arith.constant 5 : index
    %c0_39 = arith.constant 0 : index
    %c0_40 = arith.constant 0 : index
    %69 = vector.load %arg6[%c5, %c0_39, %c0_40] : memref<9x128x128xbf16, #tpu.memory_space<vmem>>, vector<1x128x128xbf16>
    %70 = vector.shape_cast %69 : vector<1x128x128xbf16> to vector<128x128xbf16>
    %cst_41 = arith.constant dense<0.000000e+00> : vector<256x128xf32>
    %71 = tpu.matmul %68, %70, %cst_41 {dimension_numbers = #tpu.dot_dimension_numbers<[1], [0], [0], [1], [0, 0, 1, 1], [], []>} : vector<256x128xbf16>, vector<128x128xbf16>, vector<256x128xf32> -> vector<256x128xf32>
    %72 = arith.addf %66, %71 : vector<256x128xf32>
    %73 = vector.extract_strided_slice %36 {offsets = [4, 0, 0], sizes = [16, 16, 128], strides = [1, 1, 1]} : vector<20x16x128xbf16> to vector<16x16x128xbf16>
    %74 = vector.shape_cast %73 : vector<16x16x128xbf16> to vector<256x128xbf16>
    %c6 = arith.constant 6 : index
    %c0_42 = arith.constant 0 : index
    %c0_43 = arith.constant 0 : index
    %75 = vector.load %arg6[%c6, %c0_42, %c0_43] : memref<9x128x128xbf16, #tpu.memory_space<vmem>>, vector<1x128x128xbf16>
    %76 = vector.shape_cast %75 : vector<1x128x128xbf16> to vector<128x128xbf16>
    %cst_44 = arith.constant dense<0.000000e+00> : vector<256x128xf32>
    %77 = tpu.matmul %74, %76, %cst_44 {dimension_numbers = #tpu.dot_dimension_numbers<[1], [0], [0], [1], [0, 0, 1, 1], [], []>} : vector<256x128xbf16>, vector<128x128xbf16>, vector<256x128xf32> -> vector<256x128xf32>
    %78 = arith.addf %72, %77 : vector<256x128xf32>
    %79 = vector.extract_strided_slice %33 {offsets = [4, 0, 0], sizes = [16, 16, 128], strides = [1, 1, 1]} : vector<20x16x128xbf16> to vector<16x16x128xbf16>
    %80 = vector.shape_cast %79 : vector<16x16x128xbf16> to vector<256x128xbf16>
    %c7 = arith.constant 7 : index
    %c0_45 = arith.constant 0 : index
    %c0_46 = arith.constant 0 : index
    %81 = vector.load %arg6[%c7, %c0_45, %c0_46] : memref<9x128x128xbf16, #tpu.memory_space<vmem>>, vector<1x128x128xbf16>
    %82 = vector.shape_cast %81 : vector<1x128x128xbf16> to vector<128x128xbf16>
    %cst_47 = arith.constant dense<0.000000e+00> : vector<256x128xf32>
    %83 = tpu.matmul %80, %82, %cst_47 {dimension_numbers = #tpu.dot_dimension_numbers<[1], [0], [0], [1], [0, 0, 1, 1], [], []>} : vector<256x128xbf16>, vector<128x128xbf16>, vector<256x128xf32> -> vector<256x128xf32>
    %84 = arith.addf %78, %83 : vector<256x128xf32>
    %85 = vector.extract_strided_slice %37 {offsets = [4, 0, 0], sizes = [16, 16, 128], strides = [1, 1, 1]} : vector<20x16x128xbf16> to vector<16x16x128xbf16>
    %86 = vector.shape_cast %85 : vector<16x16x128xbf16> to vector<256x128xbf16>
    %c8 = arith.constant 8 : index
    %c0_48 = arith.constant 0 : index
    %c0_49 = arith.constant 0 : index
    %87 = vector.load %arg6[%c8, %c0_48, %c0_49] : memref<9x128x128xbf16, #tpu.memory_space<vmem>>, vector<1x128x128xbf16>
    %88 = vector.shape_cast %87 : vector<1x128x128xbf16> to vector<128x128xbf16>
    %cst_50 = arith.constant dense<0.000000e+00> : vector<256x128xf32>
    %89 = tpu.matmul %86, %88, %cst_50 {dimension_numbers = #tpu.dot_dimension_numbers<[1], [0], [0], [1], [0, 0, 1, 1], [], []>} : vector<256x128xbf16>, vector<128x128xbf16>, vector<256x128xf32> -> vector<256x128xf32>
    %90 = arith.addf %84, %89 : vector<256x128xf32>
    %c2_51 = arith.constant 2 : index
    %c0_52 = arith.constant 0 : index
    %91 = vector.load %arg8[%c2_51, %c0_52] : memref<8x128xf32, #tpu.memory_space<vmem>>, vector<1x128xf32>
    %92 = vector.broadcast %91 : vector<1x128xf32> to vector<256x128xf32>
    %93 = arith.mulf %90, %92 : vector<256x128xf32>
    %c3_53 = arith.constant 3 : index
    %c0_54 = arith.constant 0 : index
    %94 = vector.load %arg8[%c3_53, %c0_54] : memref<8x128xf32, #tpu.memory_space<vmem>>, vector<1x128xf32>
    %95 = vector.broadcast %94 : vector<1x128xf32> to vector<256x128xf32>
    %96 = arith.addf %93, %95 : vector<256x128xf32>
    %cst_55 = arith.constant 0.000000e+00 : f32
    %97 = vector.broadcast %cst_55 : f32 to vector<256x128xf32>
    %98 = arith.maximumf %96, %97 : vector<256x128xf32>
    %99 = arith.truncf %98 : vector<256x128xf32> to vector<256x128xbf16>
    %c0_56 = arith.constant 0 : index
    %c0_57 = arith.constant 0 : index
    %100 = vector.load %arg7[%c0_56, %c0_57] : memref<128x128xbf16, #tpu.memory_space<vmem>>, vector<128x128xbf16>
    %cst_58 = arith.constant dense<0.000000e+00> : vector<256x128xf32>
    %101 = tpu.matmul %99, %100, %cst_58 {dimension_numbers = #tpu.dot_dimension_numbers<[1], [0], [0], [1], [0, 0, 1, 1], [], []>} : vector<256x128xbf16>, vector<128x128xbf16>, vector<256x128xf32> -> vector<256x128xf32>
    %c4_59 = arith.constant 4 : index
    %c0_60 = arith.constant 0 : index
    %102 = vector.load %arg8[%c4_59, %c0_60] : memref<8x128xf32, #tpu.memory_space<vmem>>, vector<1x128xf32>
    %103 = vector.broadcast %102 : vector<1x128xf32> to vector<256x128xf32>
    %104 = arith.mulf %101, %103 : vector<256x128xf32>
    %c5_61 = arith.constant 5 : index
    %c0_62 = arith.constant 0 : index
    %105 = vector.load %arg8[%c5_61, %c0_62] : memref<8x128xf32, #tpu.memory_space<vmem>>, vector<1x128xf32>
    %106 = vector.broadcast %105 : vector<1x128xf32> to vector<256x128xf32>
    %107 = arith.addf %104, %106 : vector<256x128xf32>
    %108 = vector.shape_cast %1 : vector<16x16x128xbf16> to vector<256x128xbf16>
    %c0_63 = arith.constant 0 : index
    %c0_64 = arith.constant 0 : index
    %109 = vector.load %arg5[%c0_63, %c0_64] : memref<128x128xbf16, #tpu.memory_space<vmem>>, vector<128x128xbf16>
    %cst_65 = arith.constant dense<0.000000e+00> : vector<256x128xf32>
    %110 = tpu.matmul %108, %109, %cst_65 {dimension_numbers = #tpu.dot_dimension_numbers<[1], [0], [0], [1], [0, 0, 1, 1], [], []>} : vector<256x128xbf16>, vector<128x128xbf16>, vector<256x128xf32> -> vector<256x128xf32>
    %c6_66 = arith.constant 6 : index
    %c0_67 = arith.constant 0 : index
    %111 = vector.load %arg8[%c6_66, %c0_67] : memref<8x128xf32, #tpu.memory_space<vmem>>, vector<1x128xf32>
    %112 = vector.broadcast %111 : vector<1x128xf32> to vector<256x128xf32>
    %113 = arith.mulf %110, %112 : vector<256x128xf32>
    %c7_68 = arith.constant 7 : index
    %c0_69 = arith.constant 0 : index
    %114 = vector.load %arg8[%c7_68, %c0_69] : memref<8x128xf32, #tpu.memory_space<vmem>>, vector<1x128xf32>
    %115 = vector.broadcast %114 : vector<1x128xf32> to vector<256x128xf32>
    %116 = arith.addf %113, %115 : vector<256x128xf32>
    %117 = arith.addf %107, %116 : vector<256x128xf32>
    %cst_70 = arith.constant 0.000000e+00 : f32
    %118 = vector.broadcast %cst_70 : f32 to vector<256x128xf32>
    %119 = arith.maximumf %117, %118 : vector<256x128xf32>
    %120 = vector.shape_cast %119 : vector<256x128xf32> to vector<1x16x16x128xf32>
    %c0_71 = arith.constant 0 : index
    %c0_72 = arith.constant 0 : index
    %c0_73 = arith.constant 0 : index
    %c0_74 = arith.constant 0 : index
    %121 = vector.load %arg9[%c0_71, %c0_72, %c0_73, %c0_74] : memref<1x16x16x128xf32, #tpu.memory_space<vmem>>, vector<1x16x16x128xf32>
    tpu.vector_store %arg9[%c0_71, %c0_72, %c0_73, %c0_74], %120 {strides = array<i32>} : memref<1x16x16x128xf32, #tpu.memory_space<vmem>>, vector<1x16x16x128xf32>,
    return
  }
  func.func @transform_0(%arg0: i32, %arg1: i32) -> (i32, i32, i32, i32) {
    %c0_i32 = arith.constant 0 : i32
    %c0_i32_0 = arith.constant 0 : i32
    %c0_i32_1 = arith.constant 0 : i32
    return %arg0, %arg1, %c0_i32, %c0_i32_0 : i32, i32, i32, i32
  }
  func.func @transform_1(%arg0: i32, %arg1: i32) -> (i32, i32, i32, i32, i32) {
    %c0_i32 = arith.constant 0 : i32
    %c0_i32_0 = arith.constant 0 : i32
    %c0_i32_1 = arith.constant 0 : i32
    %c0_i32_2 = arith.constant 0 : i32
    return %arg0, %arg1, %c0_i32, %c0_i32_0, %c0_i32_1 : i32, i32, i32, i32, i32
  }
  func.func @transform_2(%arg0: i32, %arg1: i32) -> (i32, i32) {
    %c0_i32 = arith.constant 0 : i32
    %c0_i32_0 = arith.constant 0 : i32
    %c0_i32_1 = arith.constant 0 : i32
    return %c0_i32, %c0_i32_0 : i32, i32
  }
  func.func @transform_3(%arg0: i32, %arg1: i32) -> (i32, i32) {
    %c0_i32 = arith.constant 0 : i32
    %c0_i32_0 = arith.constant 0 : i32
    %c0_i32_1 = arith.constant 0 : i32
    return %c0_i32, %c0_i32_0 : i32, i32
  }
  func.func @transform_4(%arg0: i32, %arg1: i32) -> (i32, i32, i32) {
    %c0_i32 = arith.constant 0 : i32
    %c0_i32_0 = arith.constant 0 : i32
    %c0_i32_1 = arith.constant 0 : i32
    %c0_i32_2 = arith.constant 0 : i32
    return %c0_i32, %c0_i32_0, %c0_i32_1 : i32, i32, i32
  }
  func.func @transform_5(%arg0: i32, %arg1: i32) -> (i32, i32) {
    %c0_i32 = arith.constant 0 : i32
    %c0_i32_0 = arith.constant 0 : i32
    %c0_i32_1 = arith.constant 0 : i32
    return %c0_i32, %c0_i32_0 : i32, i32
  }
  func.func @transform_6(%arg0: i32, %arg1: i32) -> (i32, i32) {
    %c0_i32 = arith.constant 0 : i32
    %c0_i32_0 = arith.constant 0 : i32
    %c0_i32_1 = arith.constant 0 : i32
    return %c0_i32, %c0_i32_0 : i32, i32
  }
  func.func @transform_7(%arg0: i32, %arg1: i32) -> (i32, i32, i32, i32) {
    %c0_i32 = arith.constant 0 : i32
    %c0_i32_0 = arith.constant 0 : i32
    %c0_i32_1 = arith.constant 0 : i32
    return %arg0, %arg1, %c0_i32, %c0_i32_0 : i32, i32, i32, i32
  }
}

</mosaic_0001>

<llo_original>
// kernel: tpu_custom_call.1
$region0: #{tpu_custom_call.1}
  #allocation0 [shape = 'u32[]', space=smem, size = 0x4, offset = 0x4, fixed_abs, tag = 'smem constant byte address 0x4 - core index']
  #allocation1 [shape = 'u32[72,128]{1,0:T(1,128)}', space=vmem, size = 0x9000, scoped, tag = 'internal scratch']
  %s0 = inlined_call_operand.hbm [shape: bf16[2,16,16,128], index: 0, kind: input, shape index: {}]
  %s1 = inlined_call_operand.hbm [shape: bf16[2,1,4,16,128], index: 1, kind: input, shape index: {}]
  %s2 = inlined_call_operand.hbm [shape: bf16[128,128], index: 2, kind: input, shape index: {}]
  %s3 = inlined_call_operand.hbm [shape: bf16[128,128], index: 3, kind: input, shape index: {}]
  %s4 = inlined_call_operand.hbm [shape: bf16[9,128,128], index: 4, kind: input, shape index: {}]
  %s5 = inlined_call_operand.hbm [shape: bf16[128,128], index: 5, kind: input, shape index: {}]
  %s6 = inlined_call_operand.hbm [shape: f32[8,128], index: 6, kind: input, shape index: {}]
  %s7 = inlined_call_operand.hbm [shape: f32[2,16,16,128], index: 7, kind: output, shape index: {}]
  %s8 = sld [smem:[#allocation0]]
  $region89: #{tpu_custom_call.1} parent=0
    _
  %s10 = ssub.s32 1, %s8
  %s11 = scalar_select 0, %s10, %s8
  $region1: #{tpu_custom_call.1} parent=0
    #allocation2 [shape = 'u8[131072]{0}', space=vmem, size = 0x20000, scoped, tag = 'input window, operand 0']
    #allocation3 [shape = 's32[2]{0}', space=sflag, size = 0x8, scoped, tag = 'scoped memory for tpu_custom_call.1']
    #allocation4 [shape = 's32[2]{0}', space=sflag, size = 0x8, scoped, tag = 'scoped memory for tpu_custom_call.1']
    #allocation5 [shape = 'u8[32768]{0}', space=vmem, size = 0x8000, scoped, tag = 'input window, operand 1']
    #allocation6 [shape = 's32[2]{0}', space=sflag, size = 0x8, scoped, tag = 'scoped memory for tpu_custom_call.1']
    #allocation7 [shape = 'u8[32768]{0}', space=vmem, size = 0x8000, scoped, tag = 'input window, operand 2, single buffered']
    #allocation8 [shape = 'u8[32768]{0}', space=vmem, size = 0x8000, scoped, tag = 'input window, operand 3, single buffered']
    #allocation9 [shape = 's32[1]{0}', space=sflag, size = 0x4, scoped, tag = 'scoped memory for tpu_custom_call.1']
    #allocation10 [shape = 'u8[294912]{0}', space=vmem, size = 0x48000, scoped, tag = 'input window, operand 4, single buffered']
    #allocation11 [shape = 'u8[32768]{0}', space=vmem, size = 0x8000, scoped, tag = 'input window, operand 5, single buffered']
    #allocation12 [shape = 's32[1]{0}', space=sflag, size = 0x4, scoped, tag = 'scoped memory for tpu_custom_call.1']
    #allocation13 [shape = 'u8[4096]{0}', space=vmem, size = 0x1000, scoped, tag = 'input window, operand 6, single buffered']
    #allocation14 [shape = 'u8[262144]{0}', space=vmem, size = 0x40000, scoped, tag = 'output window, operand 0']
    %12 = vsyncpa [#allocation3], 0
    %s13 = scalar_lea.sflag [#allocation3], 1
    %14 = vsyncpa %s13, 0
    %15 = vsyncpa [#allocation6], 0
    %s16 = scalar_lea.sflag [#allocation6], 1
    %17 = vsyncpa %s16, 0
    %18 = vsyncpa [#allocation9], 0
    %19 = vsyncpa [#allocation12], 0
    %20 = vsyncpa [#allocation4], 0
    %s21 = scalar_lea.sflag [#allocation4], 1
    %22 = vsyncpa %s21, 0
    loop: start=0, step=1, limit=4
    $region2: #{tpu_custom_call.1} parent=1 // loop_pre_header
      _
    $region3: #{tpu_custom_call.1} parent=1 // loop_header
      %s24 = sphi 0, %s28
      %p25 = scmp.ge.s32.totalorder %s24, 4
      %s31 = sphi 0, %s43
      %s32 = sphi 0, %s39
      %s33 = sphi 0, %s31
      %s34 = sphi 0, %s32
      %s35 = sphi 0, %s33
      %s36 = sphi 0, %s34
      %s48 = sphi 0, %s50
      %s51 = sphi 0, %s48
      %s52 = sphi 0, %s51
      %s68 = sphi 0, %s52
      %s76 = sphi 0, %s78
      %s79 = sphi 0, %s76
      %s80 = sphi 0, %s79
      %s96 = sphi 0, %s80
      %s100 = sphi 0, %s100
      %s102 = sphi 0, %s100
      %s103 = sphi 0, %s102
      %s117 = sphi 0, %s103
      %s121 = sphi 0, %s121
      %s123 = sphi 0, %s121
      %s124 = sphi 0, %s123
      %s138 = sphi 0, %s124
      %s142 = sphi 0, %s142
      %s144 = sphi 0, %s142
      %s145 = sphi 0, %s144
      %s159 = sphi 0, %s145
      %s163 = sphi 0, %s163
      %s165 = sphi 0, %s163
      %s166 = sphi 0, %s165
      %s180 = sphi 0, %s166
      %s184 = sphi 0, %s184
      %s186 = sphi 0, %s184
      %s187 = sphi 0, %s186
      %s201 = sphi 0, %s187
      %s209 = sphi 0, %s211
      %s212 = sphi 0, %s209
      %s213 = sphi 0, %s212
      %s229 = sphi 0, %s213
    $region4: #{tpu_custom_call.1} parent=1 // loop_header_branch
      %27 = sbr.rel (%p25) target = $region8
    $region5: #{tpu_custom_call.1} parent=1 // loop_body
      %s29 = ssub.s32 %s24, 1
      %s30 = ssub.s32 %s24, 2
      %s37 = sadd.s32 1, %s32
      %p38 = scmp.ge.s32.totalorder %s37, 1
      %s39 = scalar_select %p38, 0, %s37
      %s40 = sadd.s32 1, %s31
      %s41 = scalar_select %p38, %s40, %s31
      %p42 = scmp.ge.s32.totalorder %s41, 2
      %s43 = scalar_select %p42, 0, %s41
      %s44 = ssub.s32 %s31, %s43
      %s45 = ssub.s32 %s32, %s39
      %s46 = sor.u32 %s44, %s45
      %p47 = scmp.eq.s32.totalorder %s46, 0
      %s49 = sadd.s32 %s48, 1
      %s50 = scalar_select %p47, %s48, %s49
      %p53 = pneg %p47
      %p54 = scmp.eq.s32.totalorder %s24, 1
      %p55 = por %p53, %p54
      %p56 = scmp.ne.s32.totalorder %s48, %s51
      %p57 = scmp.eq.s32.totalorder %s24, 0
      %p58 = por %p56, %p57
      %p59 = scmp.ne.s32.totalorder %s48, %s51
      %p60 = scmp.eq.s32.totalorder %s29, 1
      %p61 = por %p59, %p60
      %p62 = scmp.ne.s32.totalorder %s51, %s52
      %p63 = scmp.eq.s32.totalorder %s29, 0
      %p64 = por %p62, %p63
      %p65 = scmp.ne.s32.totalorder %s51, %s52
      %p66 = scmp.eq.s32.totalorder %s30, 1
      %p67 = por %p65, %p66
      %p69 = scmp.ne.s32.totalorder %s52, %s68
      %p70 = scmp.eq.s32.totalorder %s30, 0
      %p71 = por %p69, %p70
      %s72 = ssub.s32 %s31, %s43
      %s73 = ssub.s32 %s32, %s39
      %s74 = sor.u32 %s72, %s73
      %p75 = scmp.eq.s32.totalorder %s74, 0
      %s77 = sadd.s32 %s76, 1
      %s78 = scalar_select %p75, %s76, %s77
      %p81 = pneg %p75
      %p82 = scmp.eq.s32.totalorder %s24, 1
      %p83 = por %p81, %p82
      %p84 = scmp.ne.s32.totalorder %s76, %s79
      %p85 = scmp.eq.s32.totalorder %s24, 0
      %p86 = por %p84, %p85
      %p87 = scmp.ne.s32.totalorder %s76, %s79
      %p88 = scmp.eq.s32.totalorder %s29, 1
      %p89 = por %p87, %p88
      %p90 = scmp.ne.s32.totalorder %s79, %s80
      %p91 = scmp.eq.s32.totalorder %s29, 0
      %p92 = por %p90, %p91
      %p93 = scmp.ne.s32.totalorder %s79, %s80
      %p94 = scmp.eq.s32.totalorder %s30, 1
      %p95 = por %p93, %p94
      %p97 = scmp.ne.s32.totalorder %s80, %s96
      %p98 = scmp.eq.s32.totalorder %s30, 0
      %p99 = por %p97, %p98
      %s101 = sadd.s32 %s100, 1
      %p104 = scmp.eq.s32.totalorder %s24, 1
      %p105 = scmp.ne.s32.totalorder %s100, %s102
      %p106 = scmp.eq.s32.totalorder %s24, 0
      %p107 = por %p105, %p106
      %p108 = scmp.ne.s32.totalorder %s100, %s102
      %p109 = scmp.eq.s32.totalorder %s29, 1
      %p110 = por %p108, %p109
      %p111 = scmp.ne.s32.totalorder %s102, %s103
      %p112 = scmp.eq.s32.totalorder %s29, 0
      %p113 = por %p111, %p112
      %p114 = scmp.ne.s32.totalorder %s102, %s103
      %p115 = scmp.eq.s32.totalorder %s30, 1
      %p116 = por %p114, %p115
      %p118 = scmp.ne.s32.totalorder %s103, %s117
      %p119 = scmp.eq.s32.totalorder %s30, 0
      %p120 = por %p118, %p119
      %s122 = sadd.s32 %s121, 1
      %p125 = scmp.eq.s32.totalorder %s24, 1
      %p126 = scmp.ne.s32.totalorder %s121, %s123
      %p127 = scmp.eq.s32.totalorder %s24, 0
      %p128 = por %p126, %p127
      %p129 = scmp.ne.s32.totalorder %s121, %s123
      %p130 = scmp.eq.s32.totalorder %s29, 1
      %p131 = por %p129, %p130
      %p132 = scmp.ne.s32.totalorder %s123, %s124
      %p133 = scmp.eq.s32.totalorder %s29, 0
      %p134 = por %p132, %p133
      %p135 = scmp.ne.s32.totalorder %s123, %s124
      %p136 = scmp.eq.s32.totalorder %s30, 1
      %p137 = por %p135, %p136
      %p139 = scmp.ne.s32.totalorder %s124, %s138
      %p140 = scmp.eq.s32.totalorder %s30, 0
      %p141 = por %p139, %p140
      %s143 = sadd.s32 %s142, 1
      %p146 = scmp.eq.s32.totalorder %s24, 1
      %p147 = scmp.ne.s32.totalorder %s142, %s144
      %p148 = scmp.eq.s32.totalorder %s24, 0
      %p149 = por %p147, %p148
      %p150 = scmp.ne.s32.totalorder %s142, %s144
      %p151 = scmp.eq.s32.totalorder %s29, 1
      %p152 = por %p150, %p151
      %p153 = scmp.ne.s32.totalorder %s144, %s145
      %p154 = scmp.eq.s32.totalorder %s29, 0
      %p155 = por %p153, %p154
      %p156 = scmp.ne.s32.totalorder %s144, %s145
      %p157 = scmp.eq.s32.totalorder %s30, 1
      %p158 = por %p156, %p157
      %p160 = scmp.ne.s32.totalorder %s145, %s159
      %p161 = scmp.eq.s32.totalorder %s30, 0
      %p162 = por %p160, %p161
      %s164 = sadd.s32 %s163, 1
      %p167 = scmp.eq.s32.totalorder %s24, 1
      %p168 = scmp.ne.s32.totalorder %s163, %s165
      %p169 = scmp.eq.s32.totalorder %s24, 0
      %p170 = por %p168, %p169
      %p171 = scmp.ne.s32.totalorder %s163, %s165
      %p172 = scmp.eq.s32.totalorder %s29, 1
      %p173 = por %p171, %p172
      %p174 = scmp.ne.s32.totalorder %s165, %s166
      %p175 = scmp.eq.s32.totalorder %s29, 0
      %p176 = por %p174, %p175
      %p177 = scmp.ne.s32.totalorder %s165, %s166
      %p178 = scmp.eq.s32.totalorder %s30, 1
      %p179 = por %p177, %p178
      %p181 = scmp.ne.s32.totalorder %s166, %s180
      %p182 = scmp.eq.s32.totalorder %s30, 0
      %p183 = por %p181, %p182
      %s185 = sadd.s32 %s184, 1
      %p188 = scmp.eq.s32.totalorder %s24, 1
      %p189 = scmp.ne.s32.totalorder %s184, %s186
      %p190 = scmp.eq.s32.totalorder %s24, 0
      %p191 = por %p189, %p190
      %p192 = scmp.ne.s32.totalorder %s184, %s186
      %p193 = scmp.eq.s32.totalorder %s29, 1
      %p194 = por %p192, %p193
      %p195 = scmp.ne.s32.totalorder %s186, %s187
      %p196 = scmp.eq.s32.totalorder %s29, 0
      %p197 = por %p195, %p196
      %p198 = scmp.ne.s32.totalorder %s186, %s187
      %p199 = scmp.eq.s32.totalorder %s30, 1
      %p200 = por %p198, %p199
      %p202 = scmp.ne.s32.totalorder %s187, %s201
      %p203 = scmp.eq.s32.totalorder %s30, 0
      %p204 = por %p202, %p203
      %s205 = ssub.s32 %s31, %s43
      %s206 = ssub.s32 %s32, %s39
      %s207 = sor.u32 %s205, %s206
      %p208 = scmp.eq.s32.totalorder %s207, 0
      %s210 = sadd.s32 %s209, 1
      %s211 = scalar_select %p208, %s209, %s210
      %p214 = pneg %p208
      %p215 = scmp.eq.s32.totalorder %s24, 1
      %p216 = por %p214, %p215
      %p217 = scmp.ne.s32.totalorder %s209, %s212
      %p218 = scmp.eq.s32.totalorder %s24, 0
      %p219 = por %p217, %p218
      %p220 = scmp.ne.s32.totalorder %s209, %s212
      %p221 = scmp.eq.s32.totalorder %s29, 1
      %p222 = por %p220, %p221
      %p223 = scmp.ne.s32.totalorder %s212, %s213
      %p224 = scmp.eq.s32.totalorder %s29, 0
      %p225 = por %p223, %p224
      %p226 = scmp.ne.s32.totalorder %s212, %s213
      %p227 = scmp.eq.s32.totalorder %s30, 1
      %p228 = por %p226, %p227
      %p230 = scmp.ne.s32.totalorder %s213, %s229
      %p231 = scmp.eq.s32.totalorder %s30, 0
      %p232 = por %p230, %p231
      %p233 = scmp.le.s32.totalorder 1, %s24
      %p234 = scmp.lt.s32.totalorder %s24, 3
      %p235 = pnand %p233, %p234
      %p236 = pneg %p235
      // Predicated region
      $region9: #{tpu_custom_call.1} parent=5 // pred_check
        _
      $region10: #{tpu_custom_call.1} parent=5 // pred_check_branch
        %238 = sbr.rel (%p235) target = $region12
      $region11: #{tpu_custom_call.1} parent=5 // pred_region
        %s239 = ssub.s32 %s24, 1
        // Predicated region
        $region13: #{tpu_custom_call.1} parent=11 // pred_check
          %p240 = pneg %p113
        $region14: #{tpu_custom_call.1} parent=11 // pred_check_branch
          %242 = sbr.rel (%p240) target = $region16
        $region15: #{tpu_custom_call.1} parent=11 // pred_region
          %244 = vsyncadd [#allocation6], 0
          %s245 = sshll.u32 %s2, 4
          %s246 = int_to_ptr.hbm [resolvable:$true] %s245
          %s247 = sshll.u32 [#allocation7], 4
          %s248 = int_to_ptr.vmem [resolvable:$true] %s247
          %253 = dma.hbm_to_vmem [thread:$0]  %s246, 1024, %s248, [#allocation6], 64, 64, 4
        $region16: #{tpu_custom_call.1} parent=11 // pred_fallthru
          _
        // Predicated region
        $region17: #{tpu_custom_call.1} parent=11 // pred_check
          %p254 = pneg %p134
        $region18: #{tpu_custom_call.1} parent=11 // pred_check_branch
          %256 = sbr.rel (%p254) target = $region20
        $region19: #{tpu_custom_call.1} parent=11 // pred_region
          %258 = vsyncadd [#allocation9], 0
          %s259 = sshll.u32 %s3, 4
          %s260 = int_to_ptr.hbm [resolvable:$true] %s259
          %s261 = sshll.u32 [#allocation8], 4
          %s262 = int_to_ptr.vmem [resolvable:$true] %s261
          %267 = dma.hbm_to_vmem [thread:$0]  %s260, 1024, %s262, [#allocation9], 64, 64, 4
        $region20: #{tpu_custom_call.1} parent=11 // pred_fallthru
          _
        // Predicated region
        $region21: #{tpu_custom_call.1} parent=11 // pred_check
          %p268 = pneg %p155
        $region22: #{tpu_custom_call.1} parent=11 // pred_check_branch
          %270 = sbr.rel (%p268) target = $region24
        $region23: #{tpu_custom_call.1} parent=11 // pred_region
          %272 = vsyncadd [#allocation9], 0
          %s273 = sshll.u32 %s4, 4
          %s274 = int_to_ptr.hbm [resolvable:$true] %s273
          %s275 = sshll.u32 [#allocation10], 4
          %s276 = int_to_ptr.vmem [resolvable:$true] %s275
          %281 = dma.hbm_to_vmem [thread:$0]  %s274, 9216, %s276, [#allocation9], 64, 64, 4
        $region24: #{tpu_custom_call.1} parent=11 // pred_fallthru
          _
        // Predicated region
        $region25: #{tpu_custom_call.1} parent=11 // pred_check
          %p282 = pneg %p176
        $region26: #{tpu_custom_call.1} parent=11 // pred_check_branch
          %284 = sbr.rel (%p282) target = $region28
        $region27: #{tpu_custom_call.1} parent=11 // pred_region
          %286 = vsyncadd [#allocation12], 0
          %s287 = sshll.u32 %s5, 4
          %s288 = int_to_ptr.hbm [resolvable:$true] %s287
          %s289 = sshll.u32 [#allocation11], 4
          %s290 = int_to_ptr.vmem [resolvable:$true] %s289
          %295 = dma.hbm_to_vmem [thread:$0]  %s288, 1024, %s290, [#allocation12], 64, 64, 4
        $region28: #{tpu_custom_call.1} parent=11 // pred_fallthru
          _
        // Predicated region
        $region29: #{tpu_custom_call.1} parent=11 // pred_check
          %p296 = pneg %p197
        $region30: #{tpu_custom_call.1} parent=11 // pred_check_branch
          %298 = sbr.rel (%p296) target = $region32
        $region31: #{tpu_custom_call.1} parent=11 // pred_region
          %300 = vsyncadd [#allocation12], 0
          %s302 = sshll.u32 %s6, 4
          %s303 = int_to_ptr.hbm [resolvable:$true] %s302
          %s304 = sshll.u32 [#allocation13], 4
          %s305 = int_to_ptr.vmem [resolvable:$true] %s304
          %307 = dma.hbm_to_vmem [thread:$0]  %s303, 128, %s305, [#allocation12]
        $region32: #{tpu_custom_call.1} parent=11 // pred_fallthru
          _
      $region12: #{tpu_custom_call.1} parent=5 // pred_fallthru
        _
      %p308 = scmp.lt.s32.totalorder %s24, 2
      // Predicated region
      $region33: #{tpu_custom_call.1} parent=5 // pred_check
        %p309 = pneg %p308
      $region34: #{tpu_custom_call.1} parent=5 // pred_check_branch
        %311 = sbr.rel (%p309) target = $region36
      $region35: #{tpu_custom_call.1} parent=5 // pred_region
        // Predicated region
        $region37: #{tpu_custom_call.1} parent=35 // pred_check
          %p312 = pneg %p58
        $region38: #{tpu_custom_call.1} parent=35 // pred_check_branch
          %314 = sbr.rel (%p312) target = $region40
        $region39: #{tpu_custom_call.1} parent=35 // pred_region
          %s315 = sand.u32 %s48, 1
          %s316 = scalar_lea.sflag [#allocation3], %s315
          %s317 = sand.u32 %s48, 1
          %s318 = smul.addr %s317, 128
          %s319 = scalar_lea.vmem [#allocation2], %s318
          %s320 = smul.u32 16, %s32
          %322 = vsyncadd %s316, 0
          %s323 = smul.addr %s320, 2
          %s324 = smul.addr %s31, 32
          %s325 = sadd.s32 %s323, %s324
          %s326 = smul.addr %s325, 4
          %s327 = scalar_lea.hbm %s0, %s326
          %s328 = sshll.u32 %s327, 4
          %s329 = int_to_ptr.hbm [resolvable:$true] %s328
          %s330 = sshll.u32 %s319, 4
          %s331 = int_to_ptr.vmem [resolvable:$true] %s330
          %336 = dma.hbm_to_vmem [thread:$0]  %s329, 2048, %s331, %s316, 64, 64, 4
        $region40: #{tpu_custom_call.1} parent=35 // pred_fallthru
          _
        // Predicated region
        $region41: #{tpu_custom_call.1} parent=35 // pred_check
          %p337 = pneg %p86
        $region42: #{tpu_custom_call.1} parent=35 // pred_check_branch
          %339 = sbr.rel (%p337) target = $region44
        $region43: #{tpu_custom_call.1} parent=35 // pred_region
          %s340 = sand.u32 %s24, 1
          %s341 = scalar_lea.sflag [#allocation6], %s340
          %s342 = sand.u32 %s76, 1
          %s343 = smul.addr %s342, 32
          %s344 = scalar_lea.vmem [#allocation5], %s343
          %346 = vsyncadd %s341, 0
          %s347 = smul.addr %s32, 8
          %s348 = smul.addr %s31, 8
          %s349 = sadd.s32 %s347, %s348
          %s350 = smul.addr %s349, 4
          %s351 = scalar_lea.hbm %s1, %s350
          %s352 = sshll.u32 %s351, 4
          %s353 = int_to_ptr.hbm [resolvable:$true] %s352
          %s354 = sshll.u32 %s344, 4
          %s355 = int_to_ptr.vmem [resolvable:$true] %s354
          %360 = dma.hbm_to_vmem [thread:$0]  %s353, 512, %s355, %s341, 64, 64, 4
        $region44: #{tpu_custom_call.1} parent=35 // pred_fallthru
          _
      $region36: #{tpu_custom_call.1} parent=5 // pred_fallthru
        _
      %p361 = scmp.le.s32.totalorder 1, %s24
      %p362 = scmp.lt.s32.totalorder %s24, 3
      %p363 = pnand %p361, %p362
      %p364 = pneg %p363
      // Predicated region
      $region45: #{tpu_custom_call.1} parent=5 // pred_check
        _
      $region46: #{tpu_custom_call.1} parent=5 // pred_check_branch
        %366 = sbr.rel (%p363) target = $region48
      $region47: #{tpu_custom_call.1} parent=5 // pred_region
        %s367 = ssub.s32 %s24, 1
        %s368 = sand.u32 %s51, 1
        %s369 = scalar_lea.sflag [#allocation3], %s368
        %s370 = sand.u32 %s51, 1
        %s371 = smul.addr %s370, 128
        %s372 = scalar_lea.vmem [#allocation2], %s371
        // Predicated region
        $region49: #{tpu_custom_call.1} parent=47 // pred_check
          %p373 = pneg %p64
        $region50: #{tpu_custom_call.1} parent=47 // pred_check_branch
          %375 = sbr.rel (%p373) target = $region52
        $region51: #{tpu_custom_call.1} parent=47 // pred_region
          %377 = dma.done %s369, 2048
        $region52: #{tpu_custom_call.1} parent=47 // pred_fallthru
          _
        %s378 = sand.u32 %s29, 1
        %s379 = scalar_lea.sflag [#allocation6], %s378
        %s380 = sand.u32 %s79, 1
        %s381 = smul.addr %s380, 32
        %s382 = scalar_lea.vmem [#allocation5], %s381
        // Predicated region
        $region53: #{tpu_custom_call.1} parent=47 // pred_check
          %p383 = pneg %p92
        $region54: #{tpu_custom_call.1} parent=47 // pred_check_branch
          %385 = sbr.rel (%p383) target = $region56
        $region55: #{tpu_custom_call.1} parent=47 // pred_region
          %387 = dma.done %s379, 512
        $region56: #{tpu_custom_call.1} parent=47 // pred_fallthru
          _
        // Predicated region
        $region57: #{tpu_custom_call.1} parent=47 // pred_check
          %p388 = pneg %p113
        $region58: #{tpu_custom_call.1} parent=47 // pred_check_branch
          %390 = sbr.rel (%p388) target = $region60
        $region59: #{tpu_custom_call.1} parent=47 // pred_region
          %392 = dma.done [#allocation6], 1024
        $region60: #{tpu_custom_call.1} parent=47 // pred_fallthru
          _
        // Predicated region
        $region61: #{tpu_custom_call.1} parent=47 // pred_check
          %p393 = pneg %p134
        $region62: #{tpu_custom_call.1} parent=47 // pred_check_branch
          %395 = sbr.rel (%p393) target = $region64
        $region63: #{tpu_custom_call.1} parent=47 // pred_region
          %397 = dma.done [#allocation9], 1024
        $region64: #{tpu_custom_call.1} parent=47 // pred_fallthru
          _
        // Predicated region
        $region65: #{tpu_custom_call.1} parent=47 // pred_check
          %p398 = pneg %p155
        $region66: #{tpu_custom_call.1} parent=47 // pred_check_branch
          %400 = sbr.rel (%p398) target = $region68
        $region67: #{tpu_custom_call.1} parent=47 // pred_region
          %402 = dma.done [#allocation9], 9216
        $region68: #{tpu_custom_call.1} parent=47 // pred_fallthru
          _
        // Predicated region
        $region69: #{tpu_custom_call.1} parent=47 // pred_check
          %p403 = pneg %p176
        $region70: #{tpu_custom_call.1} parent=47 // pred_check_branch
          %405 = sbr.rel (%p403) target = $region72
        $region71: #{tpu_custom_call.1} parent=47 // pred_region
          %407 = dma.done [#allocation12], 1024
        $region72: #{tpu_custom_call.1} parent=47 // pred_fallthru
          _
        // Predicated region
        $region73: #{tpu_custom_call.1} parent=47 // pred_check
          %p408 = pneg %p197
        $region74: #{tpu_custom_call.1} parent=47 // pred_check_branch
          %410 = sbr.rel (%p408) target = $region76
        $region75: #{tpu_custom_call.1} parent=47 // pred_region
          %412 = dma.done [#allocation12], 128
        $region76: #{tpu_custom_call.1} parent=47 // pred_fallthru
          _
        %s413 = sand.u32 %s51, 1
        %s414 = scalar_lea.sflag [#allocation3], %s413
        %s415 = sand.u32 %s51, 1
        %s416 = smul.addr %s415, 128
        %s417 = scalar_lea.vmem [#allocation2], %s416
        %p418 = pneg %p64
        %p419 = pneg %p61
        %s420 = sand.u32 %s29, 1
        %s421 = scalar_lea.sflag [#allocation6], %s420
        %s422 = sand.u32 %s79, 1
        %s423 = smul.addr %s422, 32
        %s424 = scalar_lea.vmem [#allocation5], %s423
        %p425 = pneg %p92
        %p426 = pneg %p89
        %p427 = pneg %p113
        %p428 = pneg %p110
        %p429 = pneg %p134
        %p430 = pneg %p131
        %p431 = pneg %p155
        %p432 = pneg %p152
        %p433 = pneg %p176
        %p434 = pneg %p173
        %p435 = pneg %p197
        %p436 = pneg %p194
        %p437 = pneg %p225
        %p438 = pneg %p222
        %s439 = sand.u32 %s212, 1
        %s440 = scalar_lea.sflag [#allocation4], %s439
        %s441 = sand.u32 %s212, 1
        %s442 = smul.addr %s441, 256
        %s443 = scalar_lea.vmem [#allocation14], %s442
        %s444 = smul.u32 16, %s34
        %s445 = smul.u32 16, %s34
        %v447 = vld [vmem:[%s372] sm:$0xf]
        %v448 = vld [vmem:[%s372 + $0x4] sm:$0xf]
        %v449 = vld [vmem:[%s372 + $0x8] sm:$0xf]
        %v450 = vld [vmem:[%s372 + $0xc] sm:$0xf]
        %v451 = vld [vmem:[%s372 + $0x10] sm:$0xf]
        %v452 = vld [vmem:[%s372 + $0x14] sm:$0xf]
        %v453 = vld [vmem:[%s372 + $0x18] sm:$0xf]
        %v454 = vld [vmem:[%s372 + $0x1c] sm:$0xf]
        %v455 = vld [vmem:[%s372 + $0x20] sm:$0xf]
        %v456 = vld [vmem:[%s372 + $0x24] sm:$0xf]
        %v457 = vld [vmem:[%s372 + $0x28] sm:$0xf]
        %v458 = vld [vmem:[%s372 + $0x2c] sm:$0xf]
        %v459 = vld [vmem:[%s372 + $0x30] sm:$0xf]
        %v460 = vld [vmem:[%s372 + $0x34] sm:$0xf]
        %v461 = vld [vmem:[%s372 + $0x38] sm:$0xf]
        %v462 = vld [vmem:[%s372 + $0x3c] sm:$0xf]
        %v463 = vld [vmem:[%s372 + $0x40] sm:$0xf]
        %v464 = vld [vmem:[%s372 + $0x44] sm:$0xf]
        %v465 = vld [vmem:[%s372 + $0x48] sm:$0xf]
        %v466 = vld [vmem:[%s372 + $0x4c] sm:$0xf]
        %v467 = vld [vmem:[%s372 + $0x50] sm:$0xf]
        %v468 = vld [vmem:[%s372 + $0x54] sm:$0xf]
        %v469 = vld [vmem:[%s372 + $0x58] sm:$0xf]
        %v470 = vld [vmem:[%s372 + $0x5c] sm:$0xf]
        %v471 = vld [vmem:[%s372 + $0x60] sm:$0xf]
        %v472 = vld [vmem:[%s372 + $0x64] sm:$0xf]
        %v473 = vld [vmem:[%s372 + $0x68] sm:$0xf]
        %v474 = vld [vmem:[%s372 + $0x6c] sm:$0xf]
        %v475 = vld [vmem:[%s372 + $0x70] sm:$0xf]
        %v476 = vld [vmem:[%s372 + $0x74] sm:$0xf]
        %v477 = vld [vmem:[%s372 + $0x78] sm:$0xf]
        %v478 = vld [vmem:[%s372 + $0x7c] sm:$0xf]
        %v479 = vld [vmem:[%s382] sm:$0xf]
        %v480 = vld [vmem:[%s382 + $0x4] sm:$0xf]
        %v481 = vld [vmem:[%s382 + $0x8] sm:$0xf]
        %v482 = vld [vmem:[%s382 + $0xc] sm:$0xf]
        %s483 = scalar_lea.vmem %s382, 16 [#allocation5]
        %v484 = vld [vmem:[%s483] sm:$0xf]
        %v485 = vld [vmem:[%s483 + $0x4] sm:$0xf]
        %v486 = vld [vmem:[%s483 + $0x8] sm:$0xf]
        %v487 = vld [vmem:[%s483 + $0xc] sm:$0xf]
        %v488 = vld [vmem:[#allocation7] sm:$0xf]
        %v489 = vld [vmem:[#allocation7 + $0x4] sm:$0xf]
        %v490 = vld [vmem:[#allocation7 + $0x8] sm:$0xf]
        %v491 = vld [vmem:[#allocation7 + $0xc] sm:$0xf]
        %v492 = vld [vmem:[#allocation7 + $0x10] sm:$0xf]
        %v493 = vld [vmem:[#allocation7 + $0x14] sm:$0xf]
        %v494 = vld [vmem:[#allocation7 + $0x18] sm:$0xf]
        %v495 = vld [vmem:[#allocation7 + $0x1c] sm:$0xf]
        %v496 = vld [vmem:[#allocation7 + $0x20] sm:$0xf]
        %v497 = vld [vmem:[#allocation7 + $0x24] sm:$0xf]
        %v498 = vld [vmem:[#allocation7 + $0x28] sm:$0xf]
        %v499 = vld [vmem:[#allocation7 + $0x2c] sm:$0xf]
        %v500 = vld [vmem:[#allocation7 + $0x30] sm:$0xf]
        %v501 = vld [vmem:[#allocation7 + $0x34] sm:$0xf]
        %v502 = vld [vmem:[#allocation7 + $0x38] sm:$0xf]
        %v503 = vld [vmem:[#allocation7 + $0x3c] sm:$0xf]
        %v544 = vunpack.c.l.b16 %v479
        %v545 = vunpack.c.l.b16 %v480
        %v546 = vunpack.c.l.b16 %v481
        %v547 = vunpack.c.l.b16 %v482
        %v548 = vunpack.c.l.b16 %v447
        %v549 = vunpack.c.l.b16 %v448
        %v550 = vunpack.c.l.b16 %v449
        %v551 = vunpack.c.l.b16 %v450
        %v552 = vunpack.c.l.b16 %v451
        %v553 = vunpack.c.l.b16 %v452
        %v554 = vunpack.c.l.b16 %v453
        %v555 = vunpack.c.l.b16 %v454
        %v556 = vunpack.c.l.b16 %v455
        %v557 = vunpack.c.l.b16 %v456
        %v558 = vunpack.c.l.b16 %v457
        %v559 = vunpack.c.l.b16 %v458
        %v560 = vunpack.c.l.b16 %v459
        %v561 = vunpack.c.l.b16 %v460
        %v562 = vunpack.c.l.b16 %v461
        %v563 = vunpack.c.l.b16 %v462
        %v564 = vunpack.c.l.b16 %v463
        %v565 = vunpack.c.l.b16 %v464
        %v566 = vunpack.c.l.b16 %v465
        %v567 = vunpack.c.l.b16 %v466
        %v568 = vunpack.c.l.b16 %v467
        %v569 = vunpack.c.l.b16 %v468
        %v570 = vunpack.c.l.b16 %v469
        %v571 = vunpack.c.l.b16 %v470
        %v572 = vunpack.c.l.b16 %v471
        %v573 = vunpack.c.l.b16 %v472
        %v574 = vunpack.c.l.b16 %v473
        %v575 = vunpack.c.l.b16 %v474
        %v576 = vunpack.c.l.b16 %v475
        %v577 = vunpack.c.l.b16 %v476
        %v578 = vunpack.c.l.b16 %v477
        %v579 = vunpack.c.l.b16 %v478
        %v580 = vunpack.c.l.b16 %v484
        %v581 = vunpack.c.l.b16 %v485
        %v582 = vunpack.c.l.b16 %v486
        %v583 = vunpack.c.l.b16 %v487
        %v584 = vpack.c.b16 %v545, %v544
        %v585 = vpack.c.b16 %v547, %v546
        %v586 = vpack.c.b16 %v549, %v548
        %v587 = vpack.c.b16 %v551, %v550
        %v588 = vpack.c.b16 %v553, %v552
        %v589 = vpack.c.b16 %v555, %v554
        %v590 = vpack.c.b16 %v557, %v556
        %v591 = vpack.c.b16 %v559, %v558
        %v592 = vpack.c.b16 %v561, %v560
        %v593 = vpack.c.b16 %v563, %v562
        %v594 = vpack.c.b16 %v565, %v564
        %v595 = vpack.c.b16 %v567, %v566
        %v596 = vpack.c.b16 %v569, %v568
        %v597 = vpack.c.b16 %v571, %v570
        %v598 = vpack.c.b16 %v573, %v572
        %v599 = vpack.c.b16 %v575, %v574
        %v600 = vpack.c.b16 %v577, %v576
        %v601 = vpack.c.b16 %v579, %v578
        %v602 = vpack.c.b16 %v581, %v580
        %v603 = vpack.c.b16 %v583, %v582
        %v640 = vunpack.c.l.b16 %v488
        %v641 = vunpack.c.l.b16 %v489
        %v642 = vunpack.c.l.b16 %v490
        %v643 = vunpack.c.l.b16 %v491
        %v644 = vunpack.c.l.b16 %v492
        %v645 = vunpack.c.l.b16 %v493
        %v646 = vunpack.c.l.b16 %v494
        %v647 = vunpack.c.l.b16 %v495
        %v648 = vunpack.c.l.b16 %v496
        %v649 = vunpack.c.l.b16 %v497
        %v650 = vunpack.c.l.b16 %v498
        %v651 = vunpack.c.l.b16 %v499
        %v652 = vunpack.c.l.b16 %v500
        %v653 = vunpack.c.l.b16 %v501
        %v654 = vunpack.c.l.b16 %v502
        %v655 = vunpack.c.l.b16 %v503
        %v656 = vpack.c.b16 %v641, %v640
        %v657 = vpack.c.b16 %v643, %v642
        %v658 = vpack.c.b16 %v645, %v644
        %v659 = vpack.c.b16 %v647, %v646
        %v660 = vpack.c.b16 %v649, %v648
        %v661 = vpack.c.b16 %v651, %v650
        %v662 = vpack.c.b16 %v653, %v652
        %v663 = vpack.c.b16 %v655, %v654
        %672 = vmatpush.bf16.msra.mxu0 %v663
        %673 = vmatpush.bf16.msra.mxu0 %v662
        %674 = vmatpush.bf16.msra.mxu0 %v661
        %675 = vmatpush.bf16.msra.mxu0 %v660
        %676 = vmatpush.bf16.msra.mxu0 %v659
        %677 = vmatpush.bf16.msra.mxu0 %v658
        %678 = vmatpush.bf16.msra.mxu0 %v657
        %679 = vmatpush.bf16.msra.mxu0 %v656
        %680 = vmatmul.bf16.gmra.mxu0 %v584
        %v681 = vpop.f32.mrf.mxu0
        %v682 = vadd.f32 0.0, %v681
        %v683 = vpop.f32.mrf.mxu0
        %v684 = vadd.f32 0.0, %v683
        %685 = vmatmul.bf16.gmra.mxu0 %v585
        %v686 = vpop.f32.mrf.mxu0
        %v687 = vadd.f32 0.0, %v686
        %v688 = vpop.f32.mrf.mxu0
        %v689 = vadd.f32 0.0, %v688
        %690 = vmatmul.bf16.gmra.mxu0 %v586
        %v691 = vpop.f32.mrf.mxu0
        %v692 = vadd.f32 0.0, %v691
        %v693 = vpop.f32.mrf.mxu0
        %v694 = vadd.f32 0.0, %v693
        %695 = vmatmul.bf16.gmra.mxu0 %v587
        %v696 = vpop.f32.mrf.mxu0
        %v697 = vadd.f32 0.0, %v696
        %v698 = vpop.f32.mrf.mxu0
        %v699 = vadd.f32 0.0, %v698
        %700 = vmatmul.bf16.gmra.mxu0 %v588
        %v701 = vpop.f32.mrf.mxu0
        %v702 = vadd.f32 0.0, %v701
        %v703 = vpop.f32.mrf.mxu0
        %v704 = vadd.f32 0.0, %v703
        %705 = vmatmul.bf16.gmra.mxu0 %v589
        %v706 = vpop.f32.mrf.mxu0
        %v707 = vadd.f32 0.0, %v706
        %v708 = vpop.f32.mrf.mxu0
        %v709 = vadd.f32 0.0, %v708
        %710 = vmatmul.bf16.gmra.mxu0 %v590
        %v711 = vpop.f32.mrf.mxu0
        %v712 = vadd.f32 0.0, %v711
        %v713 = vpop.f32.mrf.mxu0
        %v714 = vadd.f32 0.0, %v713
        %715 = vmatmul.bf16.gmra.mxu0 %v591
        %v716 = vpop.f32.mrf.mxu0
        %v717 = vadd.f32 0.0, %v716
        %v718 = vpop.f32.mrf.mxu0
        %v719 = vadd.f32 0.0, %v718
        %720 = vmatmul.bf16.gmra.mxu0 %v592
        %v721 = vpop.f32.mrf.mxu0
        %v722 = vadd.f32 0.0, %v721
        %v723 = vpop.f32.mrf.mxu0
        %v724 = vadd.f32 0.0, %v723
        %725 = vmatmul.bf16.gmra.mxu0 %v593
        %v726 = vpop.f32.mrf.mxu0
        %v727 = vadd.f32 0.0, %v726
        %v728 = vpop.f32.mrf.mxu0
        %v729 = vadd.f32 0.0, %v728
        %730 = vmatmul.bf16.gmra.mxu0 %v594
        %v731 = vpop.f32.mrf.mxu0
        %v732 = vadd.f32 0.0, %v731
        %v733 = vpop.f32.mrf.mxu0
        %v734 = vadd.f32 0.0, %v733
        %735 = vmatmul.bf16.gmra.mxu0 %v595
        %v736 = vpop.f32.mrf.mxu0
        %v737 = vadd.f32 0.0, %v736
        %v738 = vpop.f32.mrf.mxu0
        %v739 = vadd.f32 0.0, %v738
        %740 = vmatmul.bf16.gmra.mxu0 %v596
        %v741 = vpop.f32.mrf.mxu0
        %v742 = vadd.f32 0.0, %v741
        %v743 = vpop.f32.mrf.mxu0
        %v744 = vadd.f32 0.0, %v743
        %745 = vmatmul.bf16.gmra.mxu0 %v597
        %v746 = vpop.f32.mrf.mxu0
        %v747 = vadd.f32 0.0, %v746
        %v748 = vpop.f32.mrf.mxu0
        %v749 = vadd.f32 0.0, %v748
        %750 = vmatmul.bf16.gmra.mxu0 %v598
        %v751 = vpop.f32.mrf.mxu0
        %v752 = vadd.f32 0.0, %v751
        %v753 = vpop.f32.mrf.mxu0
        %v754 = vadd.f32 0.0, %v753
        %755 = vmatmul.bf16.gmra.mxu0 %v599
        %v756 = vpop.f32.mrf.mxu0
        %v757 = vadd.f32 0.0, %v756
        %v758 = vpop.f32.mrf.mxu0
        %v759 = vadd.f32 0.0, %v758
        %760 = vmatmul.bf16.gmra.mxu0 %v600
        %v761 = vpop.f32.mrf.mxu0
        %v762 = vadd.f32 0.0, %v761
        %v763 = vpop.f32.mrf.mxu0
        %v764 = vadd.f32 0.0, %v763
        %765 = vmatmul.bf16.gmra.mxu0 %v601
        %v766 = vpop.f32.mrf.mxu0
        %v767 = vadd.f32 0.0, %v766
        %v768 = vpop.f32.mrf.mxu0
        %v769 = vadd.f32 0.0, %v768
        %770 = vmatmul.bf16.gmra.mxu0 %v602
        %v771 = vpop.f32.mrf.mxu0
        %v772 = vadd.f32 0.0, %v771
        %v773 = vpop.f32.mrf.mxu0
        %v774 = vadd.f32 0.0, %v773
        %775 = vmatmul.bf16.gmra.mxu0 %v603
        %v776 = vpop.f32.mrf.mxu0
        %v777 = vadd.f32 0.0, %v776
        %v778 = vpop.f32.mrf.mxu0
        %v779 = vadd.f32 0.0, %v778
        %780 = vdwg.mxu0
        %v781 = vld [vmem:[#allocation13] sm:$0x1]
        %v782 = vperm.slane %v781, 0
        %v783 = vmul.f32 %v682, %v782
        %v784 = vmul.f32 %v684, %v782
        %v785 = vmul.f32 %v687, %v782
        %v786 = vmul.f32 %v689, %v782
        %v787 = vmul.f32 %v692, %v782
        %v788 = vmul.f32 %v694, %v782
        %v789 = vmul.f32 %v697, %v782
        %v790 = vmul.f32 %v699, %v782
        %v791 = vmul.f32 %v702, %v782
        %v792 = vmul.f32 %v704, %v782
        %v793 = vmul.f32 %v707, %v782
        %v794 = vmul.f32 %v709, %v782
        %v795 = vmul.f32 %v712, %v782
        %v796 = vmul.f32 %v714, %v782
        %v797 = vmul.f32 %v717, %v782
        %v798 = vmul.f32 %v719, %v782
        %v799 = vmul.f32 %v722, %v782
        %v800 = vmul.f32 %v724, %v782
        %v801 = vmul.f32 %v727, %v782
        %v802 = vmul.f32 %v729, %v782
        %v803 = vmul.f32 %v732, %v782
        %v804 = vmul.f32 %v734, %v782
        %v805 = vmul.f32 %v737, %v782
        %v806 = vmul.f32 %v739, %v782
        %v807 = vmul.f32 %v742, %v782
        %v808 = vmul.f32 %v744, %v782
        %v809 = vmul.f32 %v747, %v782
        %v810 = vmul.f32 %v749, %v782
        %v811 = vmul.f32 %v752, %v782
        %v812 = vmul.f32 %v754, %v782
        %v813 = vmul.f32 %v757, %v782
        %v814 = vmul.f32 %v759, %v782
        %v815 = vmul.f32 %v762, %v782
        %v816 = vmul.f32 %v764, %v782
        %v817 = vmul.f32 %v767, %v782
        %v818 = vmul.f32 %v769, %v782
        %v819 = vmul.f32 %v772, %v782
        %v820 = vmul.f32 %v774, %v782
        %v821 = vmul.f32 %v777, %v782
        %v822 = vmul.f32 %v779, %v782
        %v823 = vld [vmem:[#allocation13 + $0x1] sm:$0x1]
        %v824 = vperm.slane %v823, 0
        %v825 = vadd.f32 %v783, %v824
        %v826 = vadd.f32 %v784, %v824
        %v827 = vadd.f32 %v785, %v824
        %v828 = vadd.f32 %v786, %v824
        %v829 = vadd.f32 %v787, %v824
        %v830 = vadd.f32 %v788, %v824
        %v831 = vadd.f32 %v789, %v824
        %v832 = vadd.f32 %v790, %v824
        %v833 = vadd.f32 %v791, %v824
        %v834 = vadd.f32 %v792, %v824
        %v835 = vadd.f32 %v793, %v824
        %v836 = vadd.f32 %v794, %v824
        %v837 = vadd.f32 %v795, %v824
        %v838 = vadd.f32 %v796, %v824
        %v839 = vadd.f32 %v797, %v824
        %v840 = vadd.f32 %v798, %v824
        %v841 = vadd.f32 %v799, %v824
        %v842 = vadd.f32 %v800, %v824
        %v843 = vadd.f32 %v801, %v824
        %v844 = vadd.f32 %v802, %v824
        %v845 = vadd.f32 %v803, %v824
        %v846 = vadd.f32 %v804, %v824
        %v847 = vadd.f32 %v805, %v824
        %v848 = vadd.f32 %v806, %v824
        %v849 = vadd.f32 %v807, %v824
        %v850 = vadd.f32 %v808, %v824
        %v851 = vadd.f32 %v809, %v824
        %v852 = vadd.f32 %v810, %v824
        %v853 = vadd.f32 %v811, %v824
        %v854 = vadd.f32 %v812, %v824
        %v855 = vadd.f32 %v813, %v824
        %v856 = vadd.f32 %v814, %v824
        %v857 = vadd.f32 %v815, %v824
        %v858 = vadd.f32 %v816, %v824
        %v859 = vadd.f32 %v817, %v824
        %v860 = vadd.f32 %v818, %v824
        %v861 = vadd.f32 %v819, %v824
        %v862 = vadd.f32 %v820, %v824
        %v863 = vadd.f32 %v821, %v824
        %v864 = vadd.f32 %v822, %v824
        %v865 = vmax.f32 %v825, 0.0
        %v866 = vmax.f32 %v826, 0.0
        %v867 = vmax.f32 %v827, 0.0
        %v868 = vmax.f32 %v828, 0.0
        %v869 = vmax.f32 %v829, 0.0
        %v870 = vmax.f32 %v830, 0.0
        %v871 = vmax.f32 %v831, 0.0
        %v872 = vmax.f32 %v832, 0.0
        %v873 = vmax.f32 %v833, 0.0
        %v874 = vmax.f32 %v834, 0.0
        %v875 = vmax.f32 %v835, 0.0
        %v876 = vmax.f32 %v836, 0.0
        %v877 = vmax.f32 %v837, 0.0
        %v878 = vmax.f32 %v838, 0.0
        %v879 = vmax.f32 %v839, 0.0
        %v880 = vmax.f32 %v840, 0.0
        %v881 = vmax.f32 %v841, 0.0
        %v882 = vmax.f32 %v842, 0.0
        %v883 = vmax.f32 %v843, 0.0
        %v884 = vmax.f32 %v844, 0.0
        %v885 = vmax.f32 %v845, 0.0
        %v886 = vmax.f32 %v846, 0.0
        %v887 = vmax.f32 %v847, 0.0
        %v888 = vmax.f32 %v848, 0.0
        %v889 = vmax.f32 %v849, 0.0
        %v890 = vmax.f32 %v850, 0.0
        %v891 = vmax.f32 %v851, 0.0
        %v892 = vmax.f32 %v852, 0.0
        %v893 = vmax.f32 %v853, 0.0
        %v894 = vmax.f32 %v854, 0.0
        %v895 = vmax.f32 %v855, 0.0
        %v896 = vmax.f32 %v856, 0.0
        %v897 = vmax.f32 %v857, 0.0
        %v898 = vmax.f32 %v858, 0.0
        %v899 = vmax.f32 %v859, 0.0
        %v900 = vmax.f32 %v860, 0.0
        %v901 = vmax.f32 %v861, 0.0
        %v902 = vmax.f32 %v862, 0.0
        %v903 = vmax.f32 %v863, 0.0
        %v904 = vmax.f32 %v864, 0.0
        %s905 = smul.u32 %s34, 16
        %s906 = ssub.s32 %s905, 2
        %v907 = vstv %s906
        %v908 = vadd.s32 %v907, 1
        %v909 = vadd.s32 %v907, 2
        %v910 = vadd.s32 %v907, 3
        %v911 = vadd.s32 %v907, 4
        %v912 = vadd.s32 %v907, 5
        %v913 = vadd.s32 %v907, 6
        %v914 = vadd.s32 %v907, 7
        %v915 = vadd.s32 %v907, 8
        %v916 = vadd.s32 %v907, 9
        %v917 = vadd.s32 %v907, 10
        %v918 = vadd.s32 %v907, 11
        %v919 = vadd.s32 %v907, 12
        %v920 = vadd.s32 %v907, 13
        %v921 = vadd.s32 %v907, 14
        %v922 = vadd.s32 %v907, 15
        %v923 = vadd.s32 %v907, 16
        %v924 = vadd.s32 %v907, 17
        %v925 = vadd.s32 %v907, 18
        %v926 = vadd.s32 %v907, 19
        %vm927 = vcmp.ge.s32.totalorder %v907, 0
        %vm928 = vcmp.ge.s32.totalorder %v908, 0
        %vm929 = vcmp.ge.s32.totalorder %v909, 0
        %vm930 = vcmp.ge.s32.totalorder %v910, 0
        %vm931 = vcmp.ge.s32.totalorder %v911, 0
        %vm932 = vcmp.ge.s32.totalorder %v912, 0
        %vm933 = vcmp.ge.s32.totalorder %v913, 0
        %vm934 = vcmp.ge.s32.totalorder %v914, 0
        %vm935 = vcmp.ge.s32.totalorder %v915, 0
        %vm936 = vcmp.ge.s32.totalorder %v916, 0
        %vm937 = vcmp.ge.s32.totalorder %v917, 0
        %vm938 = vcmp.ge.s32.totalorder %v918, 0
        %vm939 = vcmp.ge.s32.totalorder %v919, 0
        %vm940 = vcmp.ge.s32.totalorder %v920, 0
        %vm941 = vcmp.ge.s32.totalorder %v921, 0
        %vm942 = vcmp.ge.s32.totalorder %v922, 0
        %vm943 = vcmp.ge.s32.totalorder %v923, 0
        %vm944 = vcmp.ge.s32.totalorder %v924, 0
        %vm945 = vcmp.ge.s32.totalorder %v925, 0
        %vm946 = vcmp.ge.s32.totalorder %v926, 0
        %vm947 = vcmp.lt.s32.totalorder %v907, 16
        %vm948 = vcmp.lt.s32.totalorder %v908, 16
        %vm949 = vcmp.lt.s32.totalorder %v909, 16
        %vm950 = vcmp.lt.s32.totalorder %v910, 16
        %vm951 = vcmp.lt.s32.totalorder %v911, 16
        %vm952 = vcmp.lt.s32.totalorder %v912, 16
        %vm953 = vcmp.lt.s32.totalorder %v913, 16
        %vm954 = vcmp.lt.s32.totalorder %v914, 16
        %vm955 = vcmp.lt.s32.totalorder %v915, 16
        %vm956 = vcmp.lt.s32.totalorder %v916, 16
        %vm957 = vcmp.lt.s32.totalorder %v917, 16
        %vm958 = vcmp.lt.s32.totalorder %v918, 16
        %vm959 = vcmp.lt.s32.totalorder %v919, 16
        %vm960 = vcmp.lt.s32.totalorder %v920, 16
        %vm961 = vcmp.lt.s32.totalorder %v921, 16
        %vm962 = vcmp.lt.s32.totalorder %v922, 16
        %vm963 = vcmp.lt.s32.totalorder %v923, 16
        %vm964 = vcmp.lt.s32.totalorder %v924, 16
        %vm965 = vcmp.lt.s32.totalorder %v925, 16
        %vm966 = vcmp.lt.s32.totalorder %v926, 16
        %vm967 = vmand %vm927, %vm947
        %vm968 = vmand %vm928, %vm948
        %vm969 = vmand %vm929, %vm949
        %vm970 = vmand %vm930, %vm950
        %vm971 = vmand %vm931, %vm951
        %vm972 = vmand %vm932, %vm952
        %vm973 = vmand %vm933, %vm953
        %vm974 = vmand %vm934, %vm954
        %vm975 = vmand %vm935, %vm955
        %vm976 = vmand %vm936, %vm956
        %vm977 = vmand %vm937, %vm957
        %vm978 = vmand %vm938, %vm958
        %vm979 = vmand %vm939, %vm959
        %vm980 = vmand %vm940, %vm960
        %vm981 = vmand %vm941, %vm961
        %vm982 = vmand %vm942, %vm962
        %vm983 = vmand %vm943, %vm963
        %vm984 = vmand %vm944, %vm964
        %vm985 = vmand %vm945, %vm965
        %vm986 = vmand %vm946, %vm966
        %v987 = vsel %vm967, 1, 0
        %v988 = vsel %vm968, 1, 0
        %v989 = vsel %vm969, 1, 0
        %v990 = vsel %vm970, 1, 0
        %v991 = vsel %vm971, 1, 0
        %v992 = vsel %vm972, 1, 0
        %v993 = vsel %vm973, 1, 0
        %v994 = vsel %vm974, 1, 0
        %v995 = vsel %vm975, 1, 0
        %v996 = vsel %vm976, 1, 0
        %v997 = vsel %vm977, 1, 0
        %v998 = vsel %vm978, 1, 0
        %v999 = vsel %vm979, 1, 0
        %v1000 = vsel %vm980, 1, 0
        %v1001 = vsel %vm981, 1, 0
        %v1002 = vsel %vm982, 1, 0
        %v1003 = vsel %vm983, 1, 0
        %v1004 = vsel %vm984, 1, 0
        %v1005 = vsel %vm985, 1, 0
        %v1006 = vsel %vm986, 1, 0
        %vm1007 = vcmp.eq.s32.totalorder %v987, 1
        %vm1008 = vcmp.eq.s32.totalorder %v988, 1
        %vm1009 = vcmp.eq.s32.totalorder %v989, 1
        %vm1010 = vcmp.eq.s32.totalorder %v990, 1
        %vm1011 = vcmp.eq.s32.totalorder %v991, 1
        %vm1012 = vcmp.eq.s32.totalorder %v992, 1
        %vm1013 = vcmp.eq.s32.totalorder %v993, 1
        %vm1014 = vcmp.eq.s32.totalorder %v994, 1
        %vm1015 = vcmp.eq.s32.totalorder %v995, 1
        %vm1016 = vcmp.eq.s32.totalorder %v996, 1
        %vm1017 = vcmp.eq.s32.totalorder %v997, 1
        %vm1018 = vcmp.eq.s32.totalorder %v998, 1
        %vm1019 = vcmp.eq.s32.totalorder %v999, 1
        %vm1020 = vcmp.eq.s32.totalorder %v1000, 1
        %vm1021 = vcmp.eq.s32.totalorder %v1001, 1
        %vm1022 = vcmp.eq.s32.totalorder %v1002, 1
        %vm1023 = vcmp.eq.s32.totalorder %v1003, 1
        %vm1024 = vcmp.eq.s32.totalorder %v1004, 1
        %vm1025 = vcmp.eq.s32.totalorder %v1005, 1
        %vm1026 = vcmp.eq.s32.totalorder %v1006, 1
        %v1027 = vsel %vm1007, %v865, 0.0
        %v1028 = vsel %vm1007, %v866, 0.0
        %v1029 = vsel %vm1008, %v867, 0.0
        %v1030 = vsel %vm1008, %v868, 0.0
        %v1031 = vsel %vm1009, %v869, 0.0
        %v1032 = vsel %vm1009, %v870, 0.0
        %v1033 = vsel %vm1010, %v871, 0.0
        %v1034 = vsel %vm1010, %v872, 0.0
        %v1035 = vsel %vm1011, %v873, 0.0
        %v1036 = vsel %vm1011, %v874, 0.0
        %v1037 = vsel %vm1012, %v875, 0.0
        %v1038 = vsel %vm1012, %v876, 0.0
        %v1039 = vsel %vm1013, %v877, 0.0
        %v1040 = vsel %vm1013, %v878, 0.0
        %v1041 = vsel %vm1014, %v879, 0.0
        %v1042 = vsel %vm1014, %v880, 0.0
        %v1043 = vsel %vm1015, %v881, 0.0
        %v1044 = vsel %vm1015, %v882, 0.0
        %v1045 = vsel %vm1016, %v883, 0.0
        %v1046 = vsel %vm1016, %v884, 0.0
        %v1047 = vsel %vm1017, %v885, 0.0
        %v1048 = vsel %vm1017, %v886, 0.0
        %v1049 = vsel %vm1018, %v887, 0.0
        %v1050 = vsel %vm1018, %v888, 0.0
        %v1051 = vsel %vm1019, %v889, 0.0
        %v1052 = vsel %vm1019, %v890, 0.0
        %v1053 = vsel %vm1020, %v891, 0.0
        %v1054 = vsel %vm1020, %v892, 0.0
        %v1055 = vsel %vm1021, %v893, 0.0
        %v1056 = vsel %vm1021, %v894, 0.0
        %v1057 = vsel %vm1022, %v895, 0.0
        %v1058 = vsel %vm1022, %v896, 0.0
        %v1059 = vsel %vm1023, %v897, 0.0
        %v1060 = vsel %vm1023, %v898, 0.0
        %v1061 = vsel %vm1024, %v899, 0.0
        %v1062 = vsel %vm1024, %v900, 0.0
        %v1063 = vsel %vm1025, %v901, 0.0
        %v1064 = vsel %vm1025, %v902, 0.0
        %v1065 = vsel %vm1026, %v903, 0.0
        %v1066 = vsel %vm1026, %v904, 0.0
        %v1067 = vpack.c.bf16 %v1027, %v1027
        %v1068 = vpack.c.bf16 %v1028, %v1028
        %v1069 = vpack.c.bf16 %v1029, %v1029
        %v1070 = vpack.c.bf16 %v1030, %v1030
        %v1071 = vpack.c.bf16 %v1031, %v1031
        %v1072 = vpack.c.bf16 %v1032, %v1032
        %v1073 = vpack.c.bf16 %v1033, %v1033
        %v1074 = vpack.c.bf16 %v1034, %v1034
        %v1075 = vpack.c.bf16 %v1035, %v1035
        %v1076 = vpack.c.bf16 %v1036, %v1036
        %v1077 = vpack.c.bf16 %v1037, %v1037
        %v1078 = vpack.c.bf16 %v1038, %v1038
        %v1079 = vpack.c.bf16 %v1039, %v1039
        %v1080 = vpack.c.bf16 %v1040, %v1040
        %v1081 = vpack.c.bf16 %v1041, %v1041
        %v1082 = vpack.c.bf16 %v1042, %v1042
        %v1083 = vpack.c.bf16 %v1043, %v1043
        %v1084 = vpack.c.bf16 %v1044, %v1044
        %v1085 = vpack.c.bf16 %v1045, %v1045
        %v1086 = vpack.c.bf16 %v1046, %v1046
        %v1087 = vpack.c.bf16 %v1047, %v1047
        %v1088 = vpack.c.bf16 %v1048, %v1048
        %v1089 = vpack.c.bf16 %v1049, %v1049
        %v1090 = vpack.c.bf16 %v1050, %v1050
        %v1091 = vpack.c.bf16 %v1051, %v1051
        %v1092 = vpack.c.bf16 %v1052, %v1052
        %v1093 = vpack.c.bf16 %v1053, %v1053
        %v1094 = vpack.c.bf16 %v1054, %v1054
        %v1095 = vpack.c.bf16 %v1055, %v1055
        %v1096 = vpack.c.bf16 %v1056, %v1056
        %v1097 = vpack.c.bf16 %v1057, %v1057
        %v1098 = vpack.c.bf16 %v1058, %v1058
        %v1099 = vpack.c.bf16 %v1059, %v1059
        %v1100 = vpack.c.bf16 %v1060, %v1060
        %v1101 = vpack.c.bf16 %v1061, %v1061
        %v1102 = vpack.c.bf16 %v1062, %v1062
        %v1103 = vpack.c.bf16 %v1063, %v1063
        %v1104 = vpack.c.bf16 %v1064, %v1064
        %v1105 = vpack.c.bf16 %v1065, %v1065
        %v1106 = vpack.c.bf16 %v1066, %v1066
        %v1147 = vunpack.c.l.b16 %v1067
        %v1148 = vunpack.c.l.b16 %v1068
        %v1149 = vunpack.c.l.b16 %v1069
        %v1150 = vunpack.c.l.b16 %v1070
        %v1151 = vunpack.c.l.b16 %v1071
        %v1152 = vunpack.c.l.b16 %v1072
        %v1153 = vunpack.c.l.b16 %v1073
        %v1154 = vunpack.c.l.b16 %v1074
        %v1155 = vunpack.c.l.b16 %v1075
        %v1156 = vunpack.c.l.b16 %v1076
        %v1157 = vunpack.c.l.b16 %v1077
        %v1158 = vunpack.c.l.b16 %v1078
        %v1159 = vunpack.c.l.b16 %v1079
        %v1160 = vunpack.c.l.b16 %v1080
        %v1161 = vunpack.c.l.b16 %v1081
        %v1162 = vunpack.c.l.b16 %v1082
        %v1163 = vunpack.c.l.b16 %v1083
        %v1164 = vunpack.c.l.b16 %v1084
        %v1165 = vunpack.c.l.b16 %v1085
        %v1166 = vunpack.c.l.b16 %v1086
        %v1167 = vunpack.c.l.b16 %v1087
        %v1168 = vunpack.c.l.b16 %v1088
        %v1169 = vunpack.c.l.b16 %v1089
        %v1170 = vunpack.c.l.b16 %v1090
        %v1171 = vunpack.c.l.b16 %v1091
        %v1172 = vunpack.c.l.b16 %v1092
        %v1173 = vunpack.c.l.b16 %v1093
        %v1174 = vunpack.c.l.b16 %v1094
        %v1175 = vunpack.c.l.b16 %v1095
        %v1176 = vunpack.c.l.b16 %v1096
        %v1177 = vunpack.c.l.b16 %v1097
        %v1178 = vunpack.c.l.b16 %v1098
        %v1179 = vunpack.c.l.b16 %v1099
        %v1180 = vunpack.c.l.b16 %v1100
        %v1181 = vunpack.c.l.b16 %v1101
        %v1182 = vunpack.c.l.b16 %v1102
        %v1183 = vunpack.c.l.b16 %v1103
        %v1184 = vunpack.c.l.b16 %v1104
        %v1185 = vunpack.c.l.b16 %v1105
        %v1186 = vunpack.c.l.b16 %v1106
        %v1187 = vpack.c.b16 %v1147, %v1147
        %v1188 = vpack.c.b16 %v1148, %v1148
        %v1189 = vpack.c.b16 %v1149, %v1149
        %v1190 = vpack.c.b16 %v1150, %v1150
        %v1191 = vpack.c.b16 %v1151, %v1151
        %v1192 = vpack.c.b16 %v1152, %v1152
        %v1193 = vpack.c.b16 %v1153, %v1153
        %v1194 = vpack.c.b16 %v1154, %v1154
        %v1195 = vpack.c.b16 %v1155, %v1155
        %v1196 = vpack.c.b16 %v1156, %v1156
        %v1197 = vpack.c.b16 %v1157, %v1157
        %v1198 = vpack.c.b16 %v1158, %v1158
        %v1199 = vpack.c.b16 %v1159, %v1159
        %v1200 = vpack.c.b16 %v1160, %v1160
        %v1201 = vpack.c.b16 %v1161, %v1161
        %v1202 = vpack.c.b16 %v1162, %v1162
        %v1203 = vpack.c.b16 %v1163, %v1163
        %v1204 = vpack.c.b16 %v1164, %v1164
        %v1205 = vpack.c.b16 %v1165, %v1165
        %v1206 = vpack.c.b16 %v1166, %v1166
        %v1207 = vpack.c.b16 %v1167, %v1167
        %v1208 = vpack.c.b16 %v1168, %v1168
        %v1209 = vpack.c.b16 %v1169, %v1169
        %v1210 = vpack.c.b16 %v1170, %v1170
        %v1211 = vpack.c.b16 %v1171, %v1171
        %v1212 = vpack.c.b16 %v1172, %v1172
        %v1213 = vpack.c.b16 %v1173, %v1173
        %v1214 = vpack.c.b16 %v1174, %v1174
        %v1215 = vpack.c.b16 %v1175, %v1175
        %v1216 = vpack.c.b16 %v1176, %v1176
        %v1217 = vpack.c.b16 %v1177, %v1177
        %v1218 = vpack.c.b16 %v1178, %v1178
        %v1219 = vpack.c.b16 %v1179, %v1179
        %v1220 = vpack.c.b16 %v1180, %v1180
        %v1221 = vpack.c.b16 %v1181, %v1181
        %v1222 = vpack.c.b16 %v1182, %v1182
        %v1223 = vpack.c.b16 %v1183, %v1183
        %v1224 = vpack.c.b16 %v1184, %v1184
        %v1225 = vpack.c.b16 %v1185, %v1185
        %v1226 = vpack.c.b16 %v1186, %v1186
        %vm1227 = vcmask 1043456
        %v1230 = vsel %vm1227, 0, %v1187
        %v1232 = vsel %vm1227, 0, %v1189
        %v1234 = vsel %vm1227, 0, %v1191
        %v1236 = vsel %vm1227, 0, %v1193
        %v1238 = vsel %vm1227, 0, %v1195
        %v1240 = vsel %vm1227, 0, %v1197
        %v1242 = vsel %vm1227, 0, %v1199
        %v1244 = vsel %vm1227, 0, %v1201
        %v1246 = vsel %vm1227, 0, %v1203
        %v1248 = vsel %vm1227, 0, %v1205
        %v1250 = vsel %vm1227, 0, %v1207
        %v1252 = vsel %vm1227, 0, %v1209
        %v1254 = vsel %vm1227, 0, %v1211
        %v1256 = vsel %vm1227, 0, %v1213
        %v1258 = vsel %vm1227, 0, %v1215
        %v1260 = vsel %vm1227, 0, %v1217
        %v1262 = vsel %vm1227, 0, %v1219
        %v1264 = vsel %vm1227, 0, %v1221
        %v1266 = vsel %vm1227, 0, %v1223
        %v1268 = vsel %vm1227, 0, %v1225
        %v1270 = vsel %vm1227, %v1188, 0
        %v1272 = vsel %vm1227, %v1190, 0
        %v1274 = vsel %vm1227, %v1192, 0
        %v1276 = vsel %vm1227, %v1194, 0
        %v1278 = vsel %vm1227, %v1196, 0
        %v1280 = vsel %vm1227, %v1198, 0
        %v1282 = vsel %vm1227, %v1200, 0
        %v1284 = vsel %vm1227, %v1202, 0
        %v1286 = vsel %vm1227, %v1204, 0
        %v1288 = vsel %vm1227, %v1206, 0
        %v1290 = vsel %vm1227, %v1208, 0
        %v1292 = vsel %vm1227, %v1210, 0
        %v1294 = vsel %vm1227, %v1212, 0
        %v1296 = vsel %vm1227, %v1214, 0
        %v1298 = vsel %vm1227, %v1216, 0
        %v1300 = vsel %vm1227, %v1218, 0
        %v1302 = vsel %vm1227, %v1220, 0
        %v1304 = vsel %vm1227, %v1222, 0
        %v1306 = vsel %vm1227, %v1224, 0
        %v1308 = vsel %vm1227, %v1226, 0
        %vm1341 = vcmask 1044480
        %v1342 = vrot.slane %v1230, 3
        %v1343 = vrot.slane %v1270, 3
        %v1344 = vsel %vm1341, %v1342, %v1343
        %v1345 = vrot.slane %v1232, 3
        %v1346 = vrot.slane %v1272, 3
        %v1347 = vsel %vm1341, %v1345, %v1346
        %v1348 = vrot.slane %v1234, 3
        %v1349 = vrot.slane %v1274, 3
        %v1350 = vsel %vm1341, %v1348, %v1349
        %v1351 = vrot.slane %v1236, 3
        %v1352 = vrot.slane %v1276, 3
        %v1353 = vsel %vm1341, %v1351, %v1352
        %v1354 = vrot.slane %v1238, 3
        %v1355 = vrot.slane %v1278, 3
        %v1356 = vsel %vm1341, %v1354, %v1355
        %v1357 = vrot.slane %v1240, 3
        %v1358 = vrot.slane %v1280, 3
        %v1359 = vsel %vm1341, %v1357, %v1358
        %v1360 = vrot.slane %v1242, 3
        %v1361 = vrot.slane %v1282, 3
        %v1362 = vsel %vm1341, %v1360, %v1361
        %v1363 = vrot.slane %v1244, 3
        %v1364 = vrot.slane %v1284, 3
        %v1365 = vsel %vm1341, %v1363, %v1364
        %v1366 = vrot.slane %v1246, 3
        %v1367 = vrot.slane %v1286, 3
        %v1368 = vsel %vm1341, %v1366, %v1367
        %v1369 = vrot.slane %v1248, 3
        %v1370 = vrot.slane %v1288, 3
        %v1371 = vsel %vm1341, %v1369, %v1370
        %v1372 = vrot.slane %v1250, 3
        %v1373 = vrot.slane %v1290, 3
        %v1374 = vsel %vm1341, %v1372, %v1373
        %v1375 = vrot.slane %v1252, 3
        %v1376 = vrot.slane %v1292, 3
        %v1377 = vsel %vm1341, %v1375, %v1376
        %v1378 = vrot.slane %v1254, 3
        %v1379 = vrot.slane %v1294, 3
        %v1380 = vsel %vm1341, %v1378, %v1379
        %v1381 = vrot.slane %v1256, 3
        %v1382 = vrot.slane %v1296, 3
        %v1383 = vsel %vm1341, %v1381, %v1382
        %v1384 = vrot.slane %v1258, 3
        %v1385 = vrot.slane %v1298, 3
        %v1386 = vsel %vm1341, %v1384, %v1385
        %v1387 = vrot.slane %v1260, 3
        %v1388 = vrot.slane %v1300, 3
        %v1389 = vsel %vm1341, %v1387, %v1388
        %v1406 = vld [vmem:[#allocation10] sm:$0xf]
        %v1407 = vld [vmem:[#allocation10 + $0x4] sm:$0xf]
        %v1408 = vld [vmem:[#allocation10 + $0x8] sm:$0xf]
        %v1409 = vld [vmem:[#allocation10 + $0xc] sm:$0xf]
        %v1410 = vld [vmem:[#allocation10 + $0x10] sm:$0xf]
        %v1411 = vld [vmem:[#allocation10 + $0x14] sm:$0xf]
        %v1412 = vld [vmem:[#allocation10 + $0x18] sm:$0xf]
        %v1413 = vld [vmem:[#allocation10 + $0x1c] sm:$0xf]
        %v1414 = vld [vmem:[#allocation10 + $0x20] sm:$0xf]
        %v1415 = vld [vmem:[#allocation10 + $0x24] sm:$0xf]
        %v1416 = vld [vmem:[#allocation10 + $0x28] sm:$0xf]
        %v1417 = vld [vmem:[#allocation10 + $0x2c] sm:$0xf]
        %v1418 = vld [vmem:[#allocation10 + $0x30] sm:$0xf]
        %v1419 = vld [vmem:[#allocation10 + $0x34] sm:$0xf]
        %v1420 = vld [vmem:[#allocation10 + $0x38] sm:$0xf]
        %v1421 = vld [vmem:[#allocation10 + $0x3c] sm:$0xf]
        %s1422 = scalar_lea.vmem [#allocation10], 64
        %v1423 = vld [vmem:[%s1422] sm:$0xf]
        %v1424 = vld [vmem:[%s1422 + $0x4] sm:$0xf]
        %v1425 = vld [vmem:[%s1422 + $0x8] sm:$0xf]
        %v1426 = vld [vmem:[%s1422 + $0xc] sm:$0xf]
        %v1427 = vld [vmem:[%s1422 + $0x10] sm:$0xf]
        %v1428 = vld [vmem:[%s1422 + $0x14] sm:$0xf]
        %v1429 = vld [vmem:[%s1422 + $0x18] sm:$0xf]
        %v1430 = vld [vmem:[%s1422 + $0x1c] sm:$0xf]
        %v1431 = vld [vmem:[%s1422 + $0x20] sm:$0xf]
        %v1432 = vld [vmem:[%s1422 + $0x24] sm:$0xf]
        %v1433 = vld [vmem:[%s1422 + $0x28] sm:$0xf]
        %v1434 = vld [vmem:[%s1422 + $0x2c] sm:$0xf]
        %v1435 = vld [vmem:[%s1422 + $0x30] sm:$0xf]
        %v1436 = vld [vmem:[%s1422 + $0x34] sm:$0xf]
        %v1437 = vld [vmem:[%s1422 + $0x38] sm:$0xf]
        %v1438 = vld [vmem:[%s1422 + $0x3c] sm:$0xf]
        %v1439 = vpack.c.b16 %v1148, %v1147
        %v1440 = vpack.c.b16 %v1150, %v1149
        %v1441 = vpack.c.b16 %v1152, %v1151
        %v1442 = vpack.c.b16 %v1154, %v1153
        %v1443 = vpack.c.b16 %v1156, %v1155
        %v1444 = vpack.c.b16 %v1158, %v1157
        %v1445 = vpack.c.b16 %v1160, %v1159
        %v1446 = vpack.c.b16 %v1162, %v1161
        %v1447 = vpack.c.b16 %v1164, %v1163
        %v1448 = vpack.c.b16 %v1166, %v1165
        %v1449 = vpack.c.b16 %v1168, %v1167
        %v1450 = vpack.c.b16 %v1170, %v1169
        %v1451 = vpack.c.b16 %v1172, %v1171
        %v1452 = vpack.c.b16 %v1174, %v1173
        %v1453 = vpack.c.b16 %v1176, %v1175
        %v1454 = vpack.c.b16 %v1178, %v1177
        %v1487 = vunpack.c.l.b16 %v1423
        %v1488 = vunpack.c.l.b16 %v1424
        %v1489 = vunpack.c.l.b16 %v1425
        %v1490 = vunpack.c.l.b16 %v1426
        %v1491 = vunpack.c.l.b16 %v1427
        %v1492 = vunpack.c.l.b16 %v1428
        %v1493 = vunpack.c.l.b16 %v1429
        %v1494 = vunpack.c.l.b16 %v1430
        %v1495 = vunpack.c.l.b16 %v1431
        %v1496 = vunpack.c.l.b16 %v1432
        %v1497 = vunpack.c.l.b16 %v1433
        %v1498 = vunpack.c.l.b16 %v1434
        %v1499 = vunpack.c.l.b16 %v1435
        %v1500 = vunpack.c.l.b16 %v1436
        %v1501 = vunpack.c.l.b16 %v1437
        %v1502 = vunpack.c.l.b16 %v1438
        %v1503 = vpack.c.b16 %v1488, %v1487
        %v1504 = vpack.c.b16 %v1490, %v1489
        %v1505 = vpack.c.b16 %v1492, %v1491
        %v1506 = vpack.c.b16 %v1494, %v1493
        %v1507 = vpack.c.b16 %v1496, %v1495
        %v1508 = vpack.c.b16 %v1498, %v1497
        %v1509 = vpack.c.b16 %v1500, %v1499
        %v1510 = vpack.c.b16 %v1502, %v1501
        %1519 = vmatpush.bf16.msra.mxu0 %v1510
        %1520 = vmatpush.bf16.msra.mxu0 %v1509
        %1521 = vmatpush.bf16.msra.mxu0 %v1508
        %1522 = vmatpush.bf16.msra.mxu0 %v1507
        %1523 = vmatpush.bf16.msra.mxu0 %v1506
        %1524 = vmatpush.bf16.msra.mxu0 %v1505
        %1525 = vmatpush.bf16.msra.mxu0 %v1504
        %1526 = vmatpush.bf16.msra.mxu0 %v1503
        %1527 = vmatmul.bf16.gmra.mxu0 %v1439
        %v1528 = vpop.f32.mrf.mxu0
        %v1529 = vadd.f32 0.0, %v1528
        %v1530 = vpop.f32.mrf.mxu0
        %v1531 = vadd.f32 0.0, %v1530
        %1532 = vmatmul.bf16.gmra.mxu0 %v1440
        %v1533 = vpop.f32.mrf.mxu0
        %v1534 = vadd.f32 0.0, %v1533
        %v1535 = vpop.f32.mrf.mxu0
        %v1536 = vadd.f32 0.0, %v1535
        %1537 = vmatmul.bf16.gmra.mxu0 %v1441
        %v1538 = vpop.f32.mrf.mxu0
        %v1539 = vadd.f32 0.0, %v1538
        %v1540 = vpop.f32.mrf.mxu0
        %v1541 = vadd.f32 0.0, %v1540
        %1542 = vmatmul.bf16.gmra.mxu0 %v1442
        %v1543 = vpop.f32.mrf.mxu0
        %v1544 = vadd.f32 0.0, %v1543
        %v1545 = vpop.f32.mrf.mxu0
        %v1546 = vadd.f32 0.0, %v1545
        %1547 = vmatmul.bf16.gmra.mxu0 %v1443
        %v1548 = vpop.f32.mrf.mxu0
        %v1549 = vadd.f32 0.0, %v1548
        %v1550 = vpop.f32.mrf.mxu0
        %v1551 = vadd.f32 0.0, %v1550
        %1552 = vmatmul.bf16.gmra.mxu0 %v1444
        %v1553 = vpop.f32.mrf.mxu0
        %v1554 = vadd.f32 0.0, %v1553
        %v1555 = vpop.f32.mrf.mxu0
        %v1556 = vadd.f32 0.0, %v1555
        %1557 = vmatmul.bf16.gmra.mxu0 %v1445
        %v1558 = vpop.f32.mrf.mxu0
        %v1559 = vadd.f32 0.0, %v1558
        %v1560 = vpop.f32.mrf.mxu0
        %v1561 = vadd.f32 0.0, %v1560
        %1562 = vmatmul.bf16.gmra.mxu0 %v1446
        %v1563 = vpop.f32.mrf.mxu0
        %v1564 = vadd.f32 0.0, %v1563
        %v1565 = vpop.f32.mrf.mxu0
        %v1566 = vadd.f32 0.0, %v1565
        %1567 = vmatmul.bf16.gmra.mxu0 %v1447
        %v1568 = vpop.f32.mrf.mxu0
        %v1569 = vadd.f32 0.0, %v1568
        %v1570 = vpop.f32.mrf.mxu0
        %v1571 = vadd.f32 0.0, %v1570
        %1572 = vmatmul.bf16.gmra.mxu0 %v1448
        %v1573 = vpop.f32.mrf.mxu0
        %v1574 = vadd.f32 0.0, %v1573
        %v1575 = vpop.f32.mrf.mxu0
        %v1576 = vadd.f32 0.0, %v1575
        %1577 = vmatmul.bf16.gmra.mxu0 %v1449
        %v1578 = vpop.f32.mrf.mxu0
        %v1579 = vadd.f32 0.0, %v1578
        %v1580 = vpop.f32.mrf.mxu0
        %v1581 = vadd.f32 0.0, %v1580
        %1582 = vmatmul.bf16.gmra.mxu0 %v1450
        %v1583 = vpop.f32.mrf.mxu0
        %v1584 = vadd.f32 0.0, %v1583
        %v1585 = vpop.f32.mrf.mxu0
        %v1586 = vadd.f32 0.0, %v1585
        %1587 = vmatmul.bf16.gmra.mxu0 %v1451
        %v1588 = vpop.f32.mrf.mxu0
        %v1589 = vadd.f32 0.0, %v1588
        %v1590 = vpop.f32.mrf.mxu0
        %v1591 = vadd.f32 0.0, %v1590
        %1592 = vmatmul.bf16.gmra.mxu0 %v1452
        %v1593 = vpop.f32.mrf.mxu0
        %v1594 = vadd.f32 0.0, %v1593
        %v1595 = vpop.f32.mrf.mxu0
        %v1596 = vadd.f32 0.0, %v1595
        %1597 = vmatmul.bf16.gmra.mxu0 %v1453
        %v1598 = vpop.f32.mrf.mxu0
        %v1599 = vadd.f32 0.0, %v1598
        %v1600 = vpop.f32.mrf.mxu0
        %v1601 = vadd.f32 0.0, %v1600
        %1602 = vmatmul.bf16.gmra.mxu0 %v1454
        %v1603 = vpop.f32.mrf.mxu0
        %v1604 = vadd.f32 0.0, %v1603
        %v1605 = vpop.f32.mrf.mxu0
        %v1606 = vadd.f32 0.0, %v1605
        %1607 = vdwg.mxu0
        %v1624 = vunpack.c.l.b16 %v1406
        %v1625 = vunpack.c.l.b16 %v1407
        %v1626 = vunpack.c.l.b16 %v1408
        %v1627 = vunpack.c.l.b16 %v1409
        %v1628 = vunpack.c.l.b16 %v1410
        %v1629 = vunpack.c.l.b16 %v1411
        %v1630 = vunpack.c.l.b16 %v1412
        %v1631 = vunpack.c.l.b16 %v1413
        %v1632 = vunpack.c.l.b16 %v1414
        %v1633 = vunpack.c.l.b16 %v1415
        %v1634 = vunpack.c.l.b16 %v1416
        %v1635 = vunpack.c.l.b16 %v1417
        %v1636 = vunpack.c.l.b16 %v1418
        %v1637 = vunpack.c.l.b16 %v1419
        %v1638 = vunpack.c.l.b16 %v1420
        %v1639 = vunpack.c.l.b16 %v1421
        %v1640 = vpack.c.b16 %v1625, %v1624
        %v1641 = vpack.c.b16 %v1627, %v1626
        %v1642 = vpack.c.b16 %v1629, %v1628
        %v1643 = vpack.c.b16 %v1631, %v1630
        %v1644 = vpack.c.b16 %v1633, %v1632
        %v1645 = vpack.c.b16 %v1635, %v1634
        %v1646 = vpack.c.b16 %v1637, %v1636
        %v1647 = vpack.c.b16 %v1639, %v1638
        %1656 = vmatpush.bf16.msra.mxu0 %v1647
        %1657 = vmatpush.bf16.msra.mxu0 %v1646
        %1658 = vmatpush.bf16.msra.mxu0 %v1645
        %1659 = vmatpush.bf16.msra.mxu0 %v1644
        %1660 = vmatpush.bf16.msra.mxu0 %v1643
        %1661 = vmatpush.bf16.msra.mxu0 %v1642
        %1662 = vmatpush.bf16.msra.mxu0 %v1641
        %1663 = vmatpush.bf16.msra.mxu0 %v1640
        %1664 = vmatmul.bf16.gmra.mxu0 %v1344
        %v1665 = vpop.f32.mrf.mxu0
        %v1666 = vadd.f32 %v1529, %v1665
        %v1667 = vpop.f32.mrf.mxu0
        %v1668 = vadd.f32 %v1531, %v1667
        %1669 = vmatmul.bf16.gmra.mxu0 %v1347
        %v1670 = vpop.f32.mrf.mxu0
        %v1671 = vadd.f32 %v1534, %v1670
        %v1672 = vpop.f32.mrf.mxu0
        %v1673 = vadd.f32 %v1536, %v1672
        %1674 = vmatmul.bf16.gmra.mxu0 %v1350
        %v1675 = vpop.f32.mrf.mxu0
        %v1676 = vadd.f32 %v1539, %v1675
        %v1677 = vpop.f32.mrf.mxu0
        %v1678 = vadd.f32 %v1541, %v1677
        %1679 = vmatmul.bf16.gmra.mxu0 %v1353
        %v1680 = vpop.f32.mrf.mxu0
        %v1681 = vadd.f32 %v1544, %v1680
        %v1682 = vpop.f32.mrf.mxu0
        %v1683 = vadd.f32 %v1546, %v1682
        %1684 = vmatmul.bf16.gmra.mxu0 %v1356
        %v1685 = vpop.f32.mrf.mxu0
        %v1686 = vadd.f32 %v1549, %v1685
        %v1687 = vpop.f32.mrf.mxu0
        %v1688 = vadd.f32 %v1551, %v1687
        %1689 = vmatmul.bf16.gmra.mxu0 %v1359
        %v1690 = vpop.f32.mrf.mxu0
        %v1691 = vadd.f32 %v1554, %v1690
        %v1692 = vpop.f32.mrf.mxu0
        %v1693 = vadd.f32 %v1556, %v1692
        %1694 = vmatmul.bf16.gmra.mxu0 %v1362
        %v1695 = vpop.f32.mrf.mxu0
        %v1696 = vadd.f32 %v1559, %v1695
        %v1697 = vpop.f32.mrf.mxu0
        %v1698 = vadd.f32 %v1561, %v1697
        %1699 = vmatmul.bf16.gmra.mxu0 %v1365
        %v1700 = vpop.f32.mrf.mxu0
        %v1701 = vadd.f32 %v1564, %v1700
        %v1702 = vpop.f32.mrf.mxu0
        %v1703 = vadd.f32 %v1566, %v1702
        %1704 = vmatmul.bf16.gmra.mxu0 %v1368
        %v1705 = vpop.f32.mrf.mxu0
        %v1706 = vadd.f32 %v1569, %v1705
        %v1707 = vpop.f32.mrf.mxu0
        %v1708 = vadd.f32 %v1571, %v1707
        %1709 = vmatmul.bf16.gmra.mxu0 %v1371
        %v1710 = vpop.f32.mrf.mxu0
        %v1711 = vadd.f32 %v1574, %v1710
        %v1712 = vpop.f32.mrf.mxu0
        %v1713 = vadd.f32 %v1576, %v1712
        %1714 = vmatmul.bf16.gmra.mxu0 %v1374
        %v1715 = vpop.f32.mrf.mxu0
        %v1716 = vadd.f32 %v1579, %v1715
        %v1717 = vpop.f32.mrf.mxu0
        %v1718 = vadd.f32 %v1581, %v1717
        %1719 = vmatmul.bf16.gmra.mxu0 %v1377
        %v1720 = vpop.f32.mrf.mxu0
        %v1721 = vadd.f32 %v1584, %v1720
        %v1722 = vpop.f32.mrf.mxu0
        %v1723 = vadd.f32 %v1586, %v1722
        %1724 = vmatmul.bf16.gmra.mxu0 %v1380
        %v1725 = vpop.f32.mrf.mxu0
        %v1726 = vadd.f32 %v1589, %v1725
        %v1727 = vpop.f32.mrf.mxu0
        %v1728 = vadd.f32 %v1591, %v1727
        %1729 = vmatmul.bf16.gmra.mxu0 %v1383
        %v1730 = vpop.f32.mrf.mxu0
        %v1731 = vadd.f32 %v1594, %v1730
        %v1732 = vpop.f32.mrf.mxu0
        %v1733 = vadd.f32 %v1596, %v1732
        %1734 = vmatmul.bf16.gmra.mxu0 %v1386
        %v1735 = vpop.f32.mrf.mxu0
        %v1736 = vadd.f32 %v1599, %v1735
        %v1737 = vpop.f32.mrf.mxu0
        %v1738 = vadd.f32 %v1601, %v1737
        %1739 = vmatmul.bf16.gmra.mxu0 %v1389
        %v1740 = vpop.f32.mrf.mxu0
        %v1741 = vadd.f32 %v1604, %v1740
        %v1742 = vpop.f32.mrf.mxu0
        %v1743 = vadd.f32 %v1606, %v1742
        %1744 = vdwg.mxu0
        %vm1745 = vcmask 1042432
        %v1746 = vrot.slane %v1230, 5
        %v1747 = vrot.slane %v1270, 5
        %v1748 = vsel %vm1745, %v1746, %v1747
        %v1749 = vrot.slane %v1232, 5
        %v1750 = vrot.slane %v1272, 5
        %v1751 = vsel %vm1745, %v1749, %v1750
        %v1752 = vrot.slane %v1234, 5
        %v1753 = vrot.slane %v1274, 5
        %v1754 = vsel %vm1745, %v1752, %v1753
        %v1755 = vrot.slane %v1236, 5
        %v1756 = vrot.slane %v1276, 5
        %v1757 = vsel %vm1745, %v1755, %v1756
        %v1758 = vrot.slane %v1238, 5
        %v1759 = vrot.slane %v1278, 5
        %v1760 = vsel %vm1745, %v1758, %v1759
        %v1761 = vrot.slane %v1240, 5
        %v1762 = vrot.slane %v1280, 5
        %v1763 = vsel %vm1745, %v1761, %v1762
        %v1764 = vrot.slane %v1242, 5
        %v1765 = vrot.slane %v1282, 5
        %v1766 = vsel %vm1745, %v1764, %v1765
        %v1767 = vrot.slane %v1244, 5
        %v1768 = vrot.slane %v1284, 5
        %v1769 = vsel %vm1745, %v1767, %v1768
        %v1770 = vrot.slane %v1246, 5
        %v1771 = vrot.slane %v1286, 5
        %v1772 = vsel %vm1745, %v1770, %v1771
        %v1773 = vrot.slane %v1248, 5
        %v1774 = vrot.slane %v1288, 5
        %v1775 = vsel %vm1745, %v1773, %v1774
        %v1776 = vrot.slane %v1250, 5
        %v1777 = vrot.slane %v1290, 5
        %v1778 = vsel %vm1745, %v1776, %v1777
        %v1779 = vrot.slane %v1252, 5
        %v1780 = vrot.slane %v1292, 5
        %v1781 = vsel %vm1745, %v1779, %v1780
        %v1782 = vrot.slane %v1254, 5
        %v1783 = vrot.slane %v1294, 5
        %v1784 = vsel %vm1745, %v1782, %v1783
        %v1785 = vrot.slane %v1256, 5
        %v1786 = vrot.slane %v1296, 5
        %v1787 = vsel %vm1745, %v1785, %v1786
        %v1788 = vrot.slane %v1258, 5
        %v1789 = vrot.slane %v1298, 5
        %v1790 = vsel %vm1745, %v1788, %v1789
        %v1791 = vrot.slane %v1260, 5
        %v1792 = vrot.slane %v1300, 5
        %v1793 = vsel %vm1745, %v1791, %v1792
        %s1810 = scalar_lea.vmem [#allocation10], 128
        %v1811 = vld [vmem:[%s1810] sm:$0xf]
        %v1812 = vld [vmem:[%s1810 + $0x4] sm:$0xf]
        %v1813 = vld [vmem:[%s1810 + $0x8] sm:$0xf]
        %v1814 = vld [vmem:[%s1810 + $0xc] sm:$0xf]
        %v1815 = vld [vmem:[%s1810 + $0x10] sm:$0xf]
        %v1816 = vld [vmem:[%s1810 + $0x14] sm:$0xf]
        %v1817 = vld [vmem:[%s1810 + $0x18] sm:$0xf]
        %v1818 = vld [vmem:[%s1810 + $0x1c] sm:$0xf]
        %v1819 = vld [vmem:[%s1810 + $0x20] sm:$0xf]
        %v1820 = vld [vmem:[%s1810 + $0x24] sm:$0xf]
        %v1821 = vld [vmem:[%s1810 + $0x28] sm:$0xf]
        %v1822 = vld [vmem:[%s1810 + $0x2c] sm:$0xf]
        %v1823 = vld [vmem:[%s1810 + $0x30] sm:$0xf]
        %v1824 = vld [vmem:[%s1810 + $0x34] sm:$0xf]
        %v1825 = vld [vmem:[%s1810 + $0x38] sm:$0xf]
        %v1826 = vld [vmem:[%s1810 + $0x3c] sm:$0xf]
        %v1843 = vunpack.c.l.b16 %v1811
        %v1844 = vunpack.c.l.b16 %v1812
        %v1845 = vunpack.c.l.b16 %v1813
        %v1846 = vunpack.c.l.b16 %v1814
        %v1847 = vunpack.c.l.b16 %v1815
        %v1848 = vunpack.c.l.b16 %v1816
        %v1849 = vunpack.c.l.b16 %v1817
        %v1850 = vunpack.c.l.b16 %v1818
        %v1851 = vunpack.c.l.b16 %v1819
        %v1852 = vunpack.c.l.b16 %v1820
        %v1853 = vunpack.c.l.b16 %v1821
        %v1854 = vunpack.c.l.b16 %v1822
        %v1855 = vunpack.c.l.b16 %v1823
        %v1856 = vunpack.c.l.b16 %v1824
        %v1857 = vunpack.c.l.b16 %v1825
        %v1858 = vunpack.c.l.b16 %v1826
        %v1859 = vpack.c.b16 %v1844, %v1843
        %v1860 = vpack.c.b16 %v1846, %v1845
        %v1861 = vpack.c.b16 %v1848, %v1847
        %v1862 = vpack.c.b16 %v1850, %v1849
        %v1863 = vpack.c.b16 %v1852, %v1851
        %v1864 = vpack.c.b16 %v1854, %v1853
        %v1865 = vpack.c.b16 %v1856, %v1855
        %v1866 = vpack.c.b16 %v1858, %v1857
        %1875 = vmatpush.bf16.msra.mxu0 %v1866
        %1876 = vmatpush.bf16.msra.mxu0 %v1865
        %1877 = vmatpush.bf16.msra.mxu0 %v1864
        %1878 = vmatpush.bf16.msra.mxu0 %v1863
        %1879 = vmatpush.bf16.msra.mxu0 %v1862
        %1880 = vmatpush.bf16.msra.mxu0 %v1861
        %1881 = vmatpush.bf16.msra.mxu0 %v1860
        %1882 = vmatpush.bf16.msra.mxu0 %v1859
        %1883 = vmatmul.bf16.gmra.mxu0 %v1748
        %v1884 = vpop.f32.mrf.mxu0
        %v1885 = vadd.f32 0.0, %v1884
        %v1886 = vpop.f32.mrf.mxu0
        %v1887 = vadd.f32 0.0, %v1886
        %1888 = vmatmul.bf16.gmra.mxu0 %v1751
        %v1889 = vpop.f32.mrf.mxu0
        %v1890 = vadd.f32 0.0, %v1889
        %v1891 = vpop.f32.mrf.mxu0
        %v1892 = vadd.f32 0.0, %v1891
        %1893 = vmatmul.bf16.gmra.mxu0 %v1754
        %v1894 = vpop.f32.mrf.mxu0
        %v1895 = vadd.f32 0.0, %v1894
        %v1896 = vpop.f32.mrf.mxu0
        %v1897 = vadd.f32 0.0, %v1896
        %1898 = vmatmul.bf16.gmra.mxu0 %v1757
        %v1899 = vpop.f32.mrf.mxu0
        %v1900 = vadd.f32 0.0, %v1899
        %v1901 = vpop.f32.mrf.mxu0
        %v1902 = vadd.f32 0.0, %v1901
        %1903 = vmatmul.bf16.gmra.mxu0 %v1760
        %v1904 = vpop.f32.mrf.mxu0
        %v1905 = vadd.f32 0.0, %v1904
        %v1906 = vpop.f32.mrf.mxu0
        %v1907 = vadd.f32 0.0, %v1906
        %1908 = vmatmul.bf16.gmra.mxu0 %v1763
        %v1909 = vpop.f32.mrf.mxu0
        %v1910 = vadd.f32 0.0, %v1909
        %v1911 = vpop.f32.mrf.mxu0
        %v1912 = vadd.f32 0.0, %v1911
        %1913 = vmatmul.bf16.gmra.mxu0 %v1766
        %v1914 = vpop.f32.mrf.mxu0
        %v1915 = vadd.f32 0.0, %v1914
        %v1916 = vpop.f32.mrf.mxu0
        %v1917 = vadd.f32 0.0, %v1916
        %1918 = vmatmul.bf16.gmra.mxu0 %v1769
        %v1919 = vpop.f32.mrf.mxu0
        %v1920 = vadd.f32 0.0, %v1919
        %v1921 = vpop.f32.mrf.mxu0
        %v1922 = vadd.f32 0.0, %v1921
        %1923 = vmatmul.bf16.gmra.mxu0 %v1772
        %v1924 = vpop.f32.mrf.mxu0
        %v1925 = vadd.f32 0.0, %v1924
        %v1926 = vpop.f32.mrf.mxu0
        %v1927 = vadd.f32 0.0, %v1926
        %1928 = vmatmul.bf16.gmra.mxu0 %v1775
        %v1929 = vpop.f32.mrf.mxu0
        %v1930 = vadd.f32 0.0, %v1929
        %v1931 = vpop.f32.mrf.mxu0
        %v1932 = vadd.f32 0.0, %v1931
        %1933 = vmatmul.bf16.gmra.mxu0 %v1778
        %v1934 = vpop.f32.mrf.mxu0
        %v1935 = vadd.f32 0.0, %v1934
        %v1936 = vpop.f32.mrf.mxu0
        %v1937 = vadd.f32 0.0, %v1936
        %1938 = vmatmul.bf16.gmra.mxu0 %v1781
        %v1939 = vpop.f32.mrf.mxu0
        %v1940 = vadd.f32 0.0, %v1939
        %v1941 = vpop.f32.mrf.mxu0
        %v1942 = vadd.f32 0.0, %v1941
        %1943 = vmatmul.bf16.gmra.mxu0 %v1784
        %v1944 = vpop.f32.mrf.mxu0
        %v1945 = vadd.f32 0.0, %v1944
        %v1946 = vpop.f32.mrf.mxu0
        %v1947 = vadd.f32 0.0, %v1946
        %1948 = vmatmul.bf16.gmra.mxu0 %v1787
        %v1949 = vpop.f32.mrf.mxu0
        %v1950 = vadd.f32 0.0, %v1949
        %v1951 = vpop.f32.mrf.mxu0
        %v1952 = vadd.f32 0.0, %v1951
        %1953 = vmatmul.bf16.gmra.mxu0 %v1790
        %v1954 = vpop.f32.mrf.mxu0
        %v1955 = vadd.f32 0.0, %v1954
        %v1956 = vpop.f32.mrf.mxu0
        %v1957 = vadd.f32 0.0, %v1956
        %1958 = vmatmul.bf16.gmra.mxu0 %v1793
        %v1959 = vpop.f32.mrf.mxu0
        %v1960 = vadd.f32 0.0, %v1959
        %v1961 = vpop.f32.mrf.mxu0
        %v1962 = vadd.f32 0.0, %v1961
        %1963 = vdwg.mxu0
        %v1964 = vadd.f32 %v1666, %v1885
        %v1965 = vadd.f32 %v1668, %v1887
        %v1966 = vadd.f32 %v1671, %v1890
        %v1967 = vadd.f32 %v1673, %v1892
        %v1968 = vadd.f32 %v1676, %v1895
        %v1969 = vadd.f32 %v1678, %v1897
        %v1970 = vadd.f32 %v1681, %v1900
        %v1971 = vadd.f32 %v1683, %v1902
        %v1972 = vadd.f32 %v1686, %v1905
        %v1973 = vadd.f32 %v1688, %v1907
        %v1974 = vadd.f32 %v1691, %v1910
        %v1975 = vadd.f32 %v1693, %v1912
        %v1976 = vadd.f32 %v1696, %v1915
        %v1977 = vadd.f32 %v1698, %v1917
        %v1978 = vadd.f32 %v1701, %v1920
        %v1979 = vadd.f32 %v1703, %v1922
        %v1980 = vadd.f32 %v1706, %v1925
        %v1981 = vadd.f32 %v1708, %v1927
        %v1982 = vadd.f32 %v1711, %v1930
        %v1983 = vadd.f32 %v1713, %v1932
        %v1984 = vadd.f32 %v1716, %v1935
        %v1985 = vadd.f32 %v1718, %v1937
        %v1986 = vadd.f32 %v1721, %v1940
        %v1987 = vadd.f32 %v1723, %v1942
        %v1988 = vadd.f32 %v1726, %v1945
        %v1989 = vadd.f32 %v1728, %v1947
        %v1990 = vadd.f32 %v1731, %v1950
        %v1991 = vadd.f32 %v1733, %v1952
        %v1992 = vadd.f32 %v1736, %v1955
        %v1993 = vadd.f32 %v1738, %v1957
        %v1994 = vadd.f32 %v1741, %v1960
        %v1995 = vadd.f32 %v1743, %v1962
        %v2000 = vrot.slane %v1262, 3
        %v2001 = vrot.slane %v1302, 3
        %v2002 = vsel %vm1341, %v2000, %v2001
        %v2003 = vrot.slane %v1264, 3
        %v2004 = vrot.slane %v1304, 3
        %v2005 = vsel %vm1341, %v2003, %v2004
        %s2008 = scalar_lea.vmem [#allocation10], 192
        %v2009 = vld [vmem:[%s2008] sm:$0xf]
        %v2010 = vld [vmem:[%s2008 + $0x4] sm:$0xf]
        %v2011 = vld [vmem:[%s2008 + $0x8] sm:$0xf]
        %v2012 = vld [vmem:[%s2008 + $0xc] sm:$0xf]
        %v2013 = vld [vmem:[%s2008 + $0x10] sm:$0xf]
        %v2014 = vld [vmem:[%s2008 + $0x14] sm:$0xf]
        %v2015 = vld [vmem:[%s2008 + $0x18] sm:$0xf]
        %v2016 = vld [vmem:[%s2008 + $0x1c] sm:$0xf]
        %v2017 = vld [vmem:[%s2008 + $0x20] sm:$0xf]
        %v2018 = vld [vmem:[%s2008 + $0x24] sm:$0xf]
        %v2019 = vld [vmem:[%s2008 + $0x28] sm:$0xf]
        %v2020 = vld [vmem:[%s2008 + $0x2c] sm:$0xf]
        %v2021 = vld [vmem:[%s2008 + $0x30] sm:$0xf]
        %v2022 = vld [vmem:[%s2008 + $0x34] sm:$0xf]
        %v2023 = vld [vmem:[%s2008 + $0x38] sm:$0xf]
        %v2024 = vld [vmem:[%s2008 + $0x3c] sm:$0xf]
        %v2041 = vunpack.c.l.b16 %v2009
        %v2042 = vunpack.c.l.b16 %v2010
        %v2043 = vunpack.c.l.b16 %v2011
        %v2044 = vunpack.c.l.b16 %v2012
        %v2045 = vunpack.c.l.b16 %v2013
        %v2046 = vunpack.c.l.b16 %v2014
        %v2047 = vunpack.c.l.b16 %v2015
        %v2048 = vunpack.c.l.b16 %v2016
        %v2049 = vunpack.c.l.b16 %v2017
        %v2050 = vunpack.c.l.b16 %v2018
        %v2051 = vunpack.c.l.b16 %v2019
        %v2052 = vunpack.c.l.b16 %v2020
        %v2053 = vunpack.c.l.b16 %v2021
        %v2054 = vunpack.c.l.b16 %v2022
        %v2055 = vunpack.c.l.b16 %v2023
        %v2056 = vunpack.c.l.b16 %v2024
        %v2057 = vpack.c.b16 %v2042, %v2041
        %v2058 = vpack.c.b16 %v2044, %v2043
        %v2059 = vpack.c.b16 %v2046, %v2045
        %v2060 = vpack.c.b16 %v2048, %v2047
        %v2061 = vpack.c.b16 %v2050, %v2049
        %v2062 = vpack.c.b16 %v2052, %v2051
        %v2063 = vpack.c.b16 %v2054, %v2053
        %v2064 = vpack.c.b16 %v2056, %v2055
        %2073 = vmatpush.bf16.msra.mxu0 %v2064
        %2074 = vmatpush.bf16.msra.mxu0 %v2063
        %2075 = vmatpush.bf16.msra.mxu0 %v2062
        %2076 = vmatpush.bf16.msra.mxu0 %v2061
        %2077 = vmatpush.bf16.msra.mxu0 %v2060
        %2078 = vmatpush.bf16.msra.mxu0 %v2059
        %2079 = vmatpush.bf16.msra.mxu0 %v2058
        %2080 = vmatpush.bf16.msra.mxu0 %v2057
        %2081 = vmatmul.bf16.gmra.mxu0 %v1350
        %v2082 = vpop.f32.mrf.mxu0
        %v2083 = vadd.f32 0.0, %v2082
        %v2084 = vpop.f32.mrf.mxu0
        %v2085 = vadd.f32 0.0, %v2084
        %2086 = vmatmul.bf16.gmra.mxu0 %v1353
        %v2087 = vpop.f32.mrf.mxu0
        %v2088 = vadd.f32 0.0, %v2087
        %v2089 = vpop.f32.mrf.mxu0
        %v2090 = vadd.f32 0.0, %v2089
        %2091 = vmatmul.bf16.gmra.mxu0 %v1356
        %v2092 = vpop.f32.mrf.mxu0
        %v2093 = vadd.f32 0.0, %v2092
        %v2094 = vpop.f32.mrf.mxu0
        %v2095 = vadd.f32 0.0, %v2094
        %2096 = vmatmul.bf16.gmra.mxu0 %v1359
        %v2097 = vpop.f32.mrf.mxu0
        %v2098 = vadd.f32 0.0, %v2097
        %v2099 = vpop.f32.mrf.mxu0
        %v2100 = vadd.f32 0.0, %v2099
        %2101 = vmatmul.bf16.gmra.mxu0 %v1362
        %v2102 = vpop.f32.mrf.mxu0
        %v2103 = vadd.f32 0.0, %v2102
        %v2104 = vpop.f32.mrf.mxu0
        %v2105 = vadd.f32 0.0, %v2104
        %2106 = vmatmul.bf16.gmra.mxu0 %v1365
        %v2107 = vpop.f32.mrf.mxu0
        %v2108 = vadd.f32 0.0, %v2107
        %v2109 = vpop.f32.mrf.mxu0
        %v2110 = vadd.f32 0.0, %v2109
        %2111 = vmatmul.bf16.gmra.mxu0 %v1368
        %v2112 = vpop.f32.mrf.mxu0
        %v2113 = vadd.f32 0.0, %v2112
        %v2114 = vpop.f32.mrf.mxu0
        %v2115 = vadd.f32 0.0, %v2114
        %2116 = vmatmul.bf16.gmra.mxu0 %v1371
        %v2117 = vpop.f32.mrf.mxu0
        %v2118 = vadd.f32 0.0, %v2117
        %v2119 = vpop.f32.mrf.mxu0
        %v2120 = vadd.f32 0.0, %v2119
        %2121 = vmatmul.bf16.gmra.mxu0 %v1374
        %v2122 = vpop.f32.mrf.mxu0
        %v2123 = vadd.f32 0.0, %v2122
        %v2124 = vpop.f32.mrf.mxu0
        %v2125 = vadd.f32 0.0, %v2124
        %2126 = vmatmul.bf16.gmra.mxu0 %v1377
        %v2127 = vpop.f32.mrf.mxu0
        %v2128 = vadd.f32 0.0, %v2127
        %v2129 = vpop.f32.mrf.mxu0
        %v2130 = vadd.f32 0.0, %v2129
        %2131 = vmatmul.bf16.gmra.mxu0 %v1380
        %v2132 = vpop.f32.mrf.mxu0
        %v2133 = vadd.f32 0.0, %v2132
        %v2134 = vpop.f32.mrf.mxu0
        %v2135 = vadd.f32 0.0, %v2134
        %2136 = vmatmul.bf16.gmra.mxu0 %v1383
        %v2137 = vpop.f32.mrf.mxu0
        %v2138 = vadd.f32 0.0, %v2137
        %v2139 = vpop.f32.mrf.mxu0
        %v2140 = vadd.f32 0.0, %v2139
        %2141 = vmatmul.bf16.gmra.mxu0 %v1386
        %v2142 = vpop.f32.mrf.mxu0
        %v2143 = vadd.f32 0.0, %v2142
        %v2144 = vpop.f32.mrf.mxu0
        %v2145 = vadd.f32 0.0, %v2144
        %2146 = vmatmul.bf16.gmra.mxu0 %v1389
        %v2147 = vpop.f32.mrf.mxu0
        %v2148 = vadd.f32 0.0, %v2147
        %v2149 = vpop.f32.mrf.mxu0
        %v2150 = vadd.f32 0.0, %v2149
        %2151 = vmatmul.bf16.gmra.mxu0 %v2002
        %v2152 = vpop.f32.mrf.mxu0
        %v2153 = vadd.f32 0.0, %v2152
        %v2154 = vpop.f32.mrf.mxu0
        %v2155 = vadd.f32 0.0, %v2154
        %2156 = vmatmul.bf16.gmra.mxu0 %v2005
        %v2157 = vpop.f32.mrf.mxu0
        %v2158 = vadd.f32 0.0, %v2157
        %v2159 = vpop.f32.mrf.mxu0
        %v2160 = vadd.f32 0.0, %v2159
        %2161 = vdwg.mxu0
        %v2162 = vadd.f32 %v1964, %v2083
        %v2163 = vadd.f32 %v1965, %v2085
        %v2164 = vadd.f32 %v1966, %v2088
        %v2165 = vadd.f32 %v1967, %v2090
        %v2166 = vadd.f32 %v1968, %v2093
        %v2167 = vadd.f32 %v1969, %v2095
        %v2168 = vadd.f32 %v1970, %v2098
        %v2169 = vadd.f32 %v1971, %v2100
        %v2170 = vadd.f32 %v1972, %v2103
        %v2171 = vadd.f32 %v1973, %v2105
        %v2172 = vadd.f32 %v1974, %v2108
        %v2173 = vadd.f32 %v1975, %v2110
        %v2174 = vadd.f32 %v1976, %v2113
        %v2175 = vadd.f32 %v1977, %v2115
        %v2176 = vadd.f32 %v1978, %v2118
        %v2177 = vadd.f32 %v1979, %v2120
        %v2178 = vadd.f32 %v1980, %v2123
        %v2179 = vadd.f32 %v1981, %v2125
        %v2180 = vadd.f32 %v1982, %v2128
        %v2181 = vadd.f32 %v1983, %v2130
        %v2182 = vadd.f32 %v1984, %v2133
        %v2183 = vadd.f32 %v1985, %v2135
        %v2184 = vadd.f32 %v1986, %v2138
        %v2185 = vadd.f32 %v1987, %v2140
        %v2186 = vadd.f32 %v1988, %v2143
        %v2187 = vadd.f32 %v1989, %v2145
        %v2188 = vadd.f32 %v1990, %v2148
        %v2189 = vadd.f32 %v1991, %v2150
        %v2190 = vadd.f32 %v1992, %v2153
        %v2191 = vadd.f32 %v1993, %v2155
        %v2192 = vadd.f32 %v1994, %v2158
        %v2193 = vadd.f32 %v1995, %v2160
        %s2194 = scalar_lea.vmem [#allocation10], 256
        %v2195 = vld [vmem:[%s2194] sm:$0xf]
        %v2196 = vld [vmem:[%s2194 + $0x4] sm:$0xf]
        %v2197 = vld [vmem:[%s2194 + $0x8] sm:$0xf]
        %v2198 = vld [vmem:[%s2194 + $0xc] sm:$0xf]
        %v2199 = vld [vmem:[%s2194 + $0x10] sm:$0xf]
        %v2200 = vld [vmem:[%s2194 + $0x14] sm:$0xf]
        %v2201 = vld [vmem:[%s2194 + $0x18] sm:$0xf]
        %v2202 = vld [vmem:[%s2194 + $0x1c] sm:$0xf]
        %v2203 = vld [vmem:[%s2194 + $0x20] sm:$0xf]
        %v2204 = vld [vmem:[%s2194 + $0x24] sm:$0xf]
        %v2205 = vld [vmem:[%s2194 + $0x28] sm:$0xf]
        %v2206 = vld [vmem:[%s2194 + $0x2c] sm:$0xf]
        %v2207 = vld [vmem:[%s2194 + $0x30] sm:$0xf]
        %v2208 = vld [vmem:[%s2194 + $0x34] sm:$0xf]
        %v2209 = vld [vmem:[%s2194 + $0x38] sm:$0xf]
        %v2210 = vld [vmem:[%s2194 + $0x3c] sm:$0xf]
        %v2211 = vpack.c.b16 %v1180, %v1179
        %v2212 = vpack.c.b16 %v1182, %v1181
        %v2231 = vunpack.c.l.b16 %v2195
        %v2232 = vunpack.c.l.b16 %v2196
        %v2233 = vunpack.c.l.b16 %v2197
        %v2234 = vunpack.c.l.b16 %v2198
        %v2235 = vunpack.c.l.b16 %v2199
        %v2236 = vunpack.c.l.b16 %v2200
        %v2237 = vunpack.c.l.b16 %v2201
        %v2238 = vunpack.c.l.b16 %v2202
        %v2239 = vunpack.c.l.b16 %v2203
        %v2240 = vunpack.c.l.b16 %v2204
        %v2241 = vunpack.c.l.b16 %v2205
        %v2242 = vunpack.c.l.b16 %v2206
        %v2243 = vunpack.c.l.b16 %v2207
        %v2244 = vunpack.c.l.b16 %v2208
        %v2245 = vunpack.c.l.b16 %v2209
        %v2246 = vunpack.c.l.b16 %v2210
        %v2247 = vpack.c.b16 %v2232, %v2231
        %v2248 = vpack.c.b16 %v2234, %v2233
        %v2249 = vpack.c.b16 %v2236, %v2235
        %v2250 = vpack.c.b16 %v2238, %v2237
        %v2251 = vpack.c.b16 %v2240, %v2239
        %v2252 = vpack.c.b16 %v2242, %v2241
        %v2253 = vpack.c.b16 %v2244, %v2243
        %v2254 = vpack.c.b16 %v2246, %v2245
        %2263 = vmatpush.bf16.msra.mxu0 %v2254
        %2264 = vmatpush.bf16.msra.mxu0 %v2253
        %2265 = vmatpush.bf16.msra.mxu0 %v2252
        %2266 = vmatpush.bf16.msra.mxu0 %v2251
        %2267 = vmatpush.bf16.msra.mxu0 %v2250
        %2268 = vmatpush.bf16.msra.mxu0 %v2249
        %2269 = vmatpush.bf16.msra.mxu0 %v2248
        %2270 = vmatpush.bf16.msra.mxu0 %v2247
        %2271 = vmatmul.bf16.gmra.mxu0 %v1441
        %v2272 = vpop.f32.mrf.mxu0
        %v2273 = vadd.f32 0.0, %v2272
        %v2274 = vpop.f32.mrf.mxu0
        %v2275 = vadd.f32 0.0, %v2274
        %2276 = vmatmul.bf16.gmra.mxu0 %v1442
        %v2277 = vpop.f32.mrf.mxu0
        %v2278 = vadd.f32 0.0, %v2277
        %v2279 = vpop.f32.mrf.mxu0
        %v2280 = vadd.f32 0.0, %v2279
        %2281 = vmatmul.bf16.gmra.mxu0 %v1443
        %v2282 = vpop.f32.mrf.mxu0
        %v2283 = vadd.f32 0.0, %v2282
        %v2284 = vpop.f32.mrf.mxu0
        %v2285 = vadd.f32 0.0, %v2284
        %2286 = vmatmul.bf16.gmra.mxu0 %v1444
        %v2287 = vpop.f32.mrf.mxu0
        %v2288 = vadd.f32 0.0, %v2287
        %v2289 = vpop.f32.mrf.mxu0
        %v2290 = vadd.f32 0.0, %v2289
        %2291 = vmatmul.bf16.gmra.mxu0 %v1445
        %v2292 = vpop.f32.mrf.mxu0
        %v2293 = vadd.f32 0.0, %v2292
        %v2294 = vpop.f32.mrf.mxu0
        %v2295 = vadd.f32 0.0, %v2294
        %2296 = vmatmul.bf16.gmra.mxu0 %v1446
        %v2297 = vpop.f32.mrf.mxu0
        %v2298 = vadd.f32 0.0, %v2297
        %v2299 = vpop.f32.mrf.mxu0
        %v2300 = vadd.f32 0.0, %v2299
        %2301 = vmatmul.bf16.gmra.mxu0 %v1447
        %v2302 = vpop.f32.mrf.mxu0
        %v2303 = vadd.f32 0.0, %v2302
        %v2304 = vpop.f32.mrf.mxu0
        %v2305 = vadd.f32 0.0, %v2304
        %2306 = vmatmul.bf16.gmra.mxu0 %v1448
        %v2307 = vpop.f32.mrf.mxu0
        %v2308 = vadd.f32 0.0, %v2307
        %v2309 = vpop.f32.mrf.mxu0
        %v2310 = vadd.f32 0.0, %v2309
        %2311 = vmatmul.bf16.gmra.mxu0 %v1449
        %v2312 = vpop.f32.mrf.mxu0
        %v2313 = vadd.f32 0.0, %v2312
        %v2314 = vpop.f32.mrf.mxu0
        %v2315 = vadd.f32 0.0, %v2314
        %2316 = vmatmul.bf16.gmra.mxu0 %v1450
        %v2317 = vpop.f32.mrf.mxu0
        %v2318 = vadd.f32 0.0, %v2317
        %v2319 = vpop.f32.mrf.mxu0
        %v2320 = vadd.f32 0.0, %v2319
        %2321 = vmatmul.bf16.gmra.mxu0 %v1451
        %v2322 = vpop.f32.mrf.mxu0
        %v2323 = vadd.f32 0.0, %v2322
        %v2324 = vpop.f32.mrf.mxu0
        %v2325 = vadd.f32 0.0, %v2324
        %2326 = vmatmul.bf16.gmra.mxu0 %v1452
        %v2327 = vpop.f32.mrf.mxu0
        %v2328 = vadd.f32 0.0, %v2327
        %v2329 = vpop.f32.mrf.mxu0
        %v2330 = vadd.f32 0.0, %v2329
        %2331 = vmatmul.bf16.gmra.mxu0 %v1453
        %v2332 = vpop.f32.mrf.mxu0
        %v2333 = vadd.f32 0.0, %v2332
        %v2334 = vpop.f32.mrf.mxu0
        %v2335 = vadd.f32 0.0, %v2334
        %2336 = vmatmul.bf16.gmra.mxu0 %v1454
        %v2337 = vpop.f32.mrf.mxu0
        %v2338 = vadd.f32 0.0, %v2337
        %v2339 = vpop.f32.mrf.mxu0
        %v2340 = vadd.f32 0.0, %v2339
        %2341 = vmatmul.bf16.gmra.mxu0 %v2211
        %v2342 = vpop.f32.mrf.mxu0
        %v2343 = vadd.f32 0.0, %v2342
        %v2344 = vpop.f32.mrf.mxu0
        %v2345 = vadd.f32 0.0, %v2344
        %2346 = vmatmul.bf16.gmra.mxu0 %v2212
        %v2347 = vpop.f32.mrf.mxu0
        %v2348 = vadd.f32 0.0, %v2347
        %v2349 = vpop.f32.mrf.mxu0
        %v2350 = vadd.f32 0.0, %v2349
        %2351 = vdwg.mxu0
        %v2352 = vadd.f32 %v2162, %v2273
        %v2353 = vadd.f32 %v2163, %v2275
        %v2354 = vadd.f32 %v2164, %v2278
        %v2355 = vadd.f32 %v2165, %v2280
        %v2356 = vadd.f32 %v2166, %v2283
        %v2357 = vadd.f32 %v2167, %v2285
        %v2358 = vadd.f32 %v2168, %v2288
        %v2359 = vadd.f32 %v2169, %v2290
        %v2360 = vadd.f32 %v2170, %v2293
        %v2361 = vadd.f32 %v2171, %v2295
        %v2362 = vadd.f32 %v2172, %v2298
        %v2363 = vadd.f32 %v2173, %v2300
        %v2364 = vadd.f32 %v2174, %v2303
        %v2365 = vadd.f32 %v2175, %v2305
        %v2366 = vadd.f32 %v2176, %v2308
        %v2367 = vadd.f32 %v2177, %v2310
        %v2368 = vadd.f32 %v2178, %v2313
        %v2369 = vadd.f32 %v2179, %v2315
        %v2370 = vadd.f32 %v2180, %v2318
        %v2371 = vadd.f32 %v2181, %v2320
        %v2372 = vadd.f32 %v2182, %v2323
        %v2373 = vadd.f32 %v2183, %v2325
        %v2374 = vadd.f32 %v2184, %v2328
        %v2375 = vadd.f32 %v2185, %v2330
        %v2376 = vadd.f32 %v2186, %v2333
        %v2377 = vadd.f32 %v2187, %v2335
        %v2378 = vadd.f32 %v2188, %v2338
        %v2379 = vadd.f32 %v2189, %v2340
        %v2380 = vadd.f32 %v2190, %v2343
        %v2381 = vadd.f32 %v2191, %v2345
        %v2382 = vadd.f32 %v2192, %v2348
        %v2383 = vadd.f32 %v2193, %v2350
        %v2384 = vrot.slane %v1262, 5
        %v2385 = vrot.slane %v1302, 5
        %v2386 = vsel %vm1745, %v2384, %v2385
        %v2387 = vrot.slane %v1264, 5
        %v2388 = vrot.slane %v1304, 5
        %v2389 = vsel %vm1745, %v2387, %v2388
        %s2392 = scalar_lea.vmem [#allocation10], 320
        %v2393 = vld [vmem:[%s2392] sm:$0xf]
        %v2394 = vld [vmem:[%s2392 + $0x4] sm:$0xf]
        %v2395 = vld [vmem:[%s2392 + $0x8] sm:$0xf]
        %v2396 = vld [vmem:[%s2392 + $0xc] sm:$0xf]
        %v2397 = vld [vmem:[%s2392 + $0x10] sm:$0xf]
        %v2398 = vld [vmem:[%s2392 + $0x14] sm:$0xf]
        %v2399 = vld [vmem:[%s2392 + $0x18] sm:$0xf]
        %v2400 = vld [vmem:[%s2392 + $0x1c] sm:$0xf]
        %v2401 = vld [vmem:[%s2392 + $0x20] sm:$0xf]
        %v2402 = vld [vmem:[%s2392 + $0x24] sm:$0xf]
        %v2403 = vld [vmem:[%s2392 + $0x28] sm:$0xf]
        %v2404 = vld [vmem:[%s2392 + $0x2c] sm:$0xf]
        %v2405 = vld [vmem:[%s2392 + $0x30] sm:$0xf]
        %v2406 = vld [vmem:[%s2392 + $0x34] sm:$0xf]
        %v2407 = vld [vmem:[%s2392 + $0x38] sm:$0xf]
        %v2408 = vld [vmem:[%s2392 + $0x3c] sm:$0xf]
        %v2425 = vunpack.c.l.b16 %v2393
        %v2426 = vunpack.c.l.b16 %v2394
        %v2427 = vunpack.c.l.b16 %v2395
        %v2428 = vunpack.c.l.b16 %v2396
        %v2429 = vunpack.c.l.b16 %v2397
        %v2430 = vunpack.c.l.b16 %v2398
        %v2431 = vunpack.c.l.b16 %v2399
        %v2432 = vunpack.c.l.b16 %v2400
        %v2433 = vunpack.c.l.b16 %v2401
        %v2434 = vunpack.c.l.b16 %v2402
        %v2435 = vunpack.c.l.b16 %v2403
        %v2436 = vunpack.c.l.b16 %v2404
        %v2437 = vunpack.c.l.b16 %v2405
        %v2438 = vunpack.c.l.b16 %v2406
        %v2439 = vunpack.c.l.b16 %v2407
        %v2440 = vunpack.c.l.b16 %v2408
        %v2441 = vpack.c.b16 %v2426, %v2425
        %v2442 = vpack.c.b16 %v2428, %v2427
        %v2443 = vpack.c.b16 %v2430, %v2429
        %v2444 = vpack.c.b16 %v2432, %v2431
        %v2445 = vpack.c.b16 %v2434, %v2433
        %v2446 = vpack.c.b16 %v2436, %v2435
        %v2447 = vpack.c.b16 %v2438, %v2437
        %v2448 = vpack.c.b16 %v2440, %v2439
        %2457 = vmatpush.bf16.msra.mxu0 %v2448
        %2458 = vmatpush.bf16.msra.mxu0 %v2447
        %2459 = vmatpush.bf16.msra.mxu0 %v2446
        %2460 = vmatpush.bf16.msra.mxu0 %v2445
        %2461 = vmatpush.bf16.msra.mxu0 %v2444
        %2462 = vmatpush.bf16.msra.mxu0 %v2443
        %2463 = vmatpush.bf16.msra.mxu0 %v2442
        %2464 = vmatpush.bf16.msra.mxu0 %v2441
        %2465 = vmatmul.bf16.gmra.mxu0 %v1754
        %v2466 = vpop.f32.mrf.mxu0
        %v2467 = vadd.f32 0.0, %v2466
        %v2468 = vpop.f32.mrf.mxu0
        %v2469 = vadd.f32 0.0, %v2468
        %2470 = vmatmul.bf16.gmra.mxu0 %v1757
        %v2471 = vpop.f32.mrf.mxu0
        %v2472 = vadd.f32 0.0, %v2471
        %v2473 = vpop.f32.mrf.mxu0
        %v2474 = vadd.f32 0.0, %v2473
        %2475 = vmatmul.bf16.gmra.mxu0 %v1760
        %v2476 = vpop.f32.mrf.mxu0
        %v2477 = vadd.f32 0.0, %v2476
        %v2478 = vpop.f32.mrf.mxu0
        %v2479 = vadd.f32 0.0, %v2478
        %2480 = vmatmul.bf16.gmra.mxu0 %v1763
        %v2481 = vpop.f32.mrf.mxu0
        %v2482 = vadd.f32 0.0, %v2481
        %v2483 = vpop.f32.mrf.mxu0
        %v2484 = vadd.f32 0.0, %v2483
        %2485 = vmatmul.bf16.gmra.mxu0 %v1766
        %v2486 = vpop.f32.mrf.mxu0
        %v2487 = vadd.f32 0.0, %v2486
        %v2488 = vpop.f32.mrf.mxu0
        %v2489 = vadd.f32 0.0, %v2488
        %2490 = vmatmul.bf16.gmra.mxu0 %v1769
        %v2491 = vpop.f32.mrf.mxu0
        %v2492 = vadd.f32 0.0, %v2491
        %v2493 = vpop.f32.mrf.mxu0
        %v2494 = vadd.f32 0.0, %v2493
        %2495 = vmatmul.bf16.gmra.mxu0 %v1772
        %v2496 = vpop.f32.mrf.mxu0
        %v2497 = vadd.f32 0.0, %v2496
        %v2498 = vpop.f32.mrf.mxu0
        %v2499 = vadd.f32 0.0, %v2498
        %2500 = vmatmul.bf16.gmra.mxu0 %v1775
        %v2501 = vpop.f32.mrf.mxu0
        %v2502 = vadd.f32 0.0, %v2501
        %v2503 = vpop.f32.mrf.mxu0
        %v2504 = vadd.f32 0.0, %v2503
        %2505 = vmatmul.bf16.gmra.mxu0 %v1778
        %v2506 = vpop.f32.mrf.mxu0
        %v2507 = vadd.f32 0.0, %v2506
        %v2508 = vpop.f32.mrf.mxu0
        %v2509 = vadd.f32 0.0, %v2508
        %2510 = vmatmul.bf16.gmra.mxu0 %v1781
        %v2511 = vpop.f32.mrf.mxu0
        %v2512 = vadd.f32 0.0, %v2511
        %v2513 = vpop.f32.mrf.mxu0
        %v2514 = vadd.f32 0.0, %v2513
        %2515 = vmatmul.bf16.gmra.mxu0 %v1784
        %v2516 = vpop.f32.mrf.mxu0
        %v2517 = vadd.f32 0.0, %v2516
        %v2518 = vpop.f32.mrf.mxu0
        %v2519 = vadd.f32 0.0, %v2518
        %2520 = vmatmul.bf16.gmra.mxu0 %v1787
        %v2521 = vpop.f32.mrf.mxu0
        %v2522 = vadd.f32 0.0, %v2521
        %v2523 = vpop.f32.mrf.mxu0
        %v2524 = vadd.f32 0.0, %v2523
        %2525 = vmatmul.bf16.gmra.mxu0 %v1790
        %v2526 = vpop.f32.mrf.mxu0
        %v2527 = vadd.f32 0.0, %v2526
        %v2528 = vpop.f32.mrf.mxu0
        %v2529 = vadd.f32 0.0, %v2528
        %2530 = vmatmul.bf16.gmra.mxu0 %v1793
        %v2531 = vpop.f32.mrf.mxu0
        %v2532 = vadd.f32 0.0, %v2531
        %v2533 = vpop.f32.mrf.mxu0
        %v2534 = vadd.f32 0.0, %v2533
        %2535 = vmatmul.bf16.gmra.mxu0 %v2386
        %v2536 = vpop.f32.mrf.mxu0
        %v2537 = vadd.f32 0.0, %v2536
        %v2538 = vpop.f32.mrf.mxu0
        %v2539 = vadd.f32 0.0, %v2538
        %2540 = vmatmul.bf16.gmra.mxu0 %v2389
        %v2541 = vpop.f32.mrf.mxu0
        %v2542 = vadd.f32 0.0, %v2541
        %v2543 = vpop.f32.mrf.mxu0
        %v2544 = vadd.f32 0.0, %v2543
        %2545 = vdwg.mxu0
        %v2546 = vadd.f32 %v2352, %v2467
        %v2547 = vadd.f32 %v2353, %v2469
        %v2548 = vadd.f32 %v2354, %v2472
        %v2549 = vadd.f32 %v2355, %v2474
        %v2550 = vadd.f32 %v2356, %v2477
        %v2551 = vadd.f32 %v2357, %v2479
        %v2552 = vadd.f32 %v2358, %v2482
        %v2553 = vadd.f32 %v2359, %v2484
        %v2554 = vadd.f32 %v2360, %v2487
        %v2555 = vadd.f32 %v2361, %v2489
        %v2556 = vadd.f32 %v2362, %v2492
        %v2557 = vadd.f32 %v2363, %v2494
        %v2558 = vadd.f32 %v2364, %v2497
        %v2559 = vadd.f32 %v2365, %v2499
        %v2560 = vadd.f32 %v2366, %v2502
        %v2561 = vadd.f32 %v2367, %v2504
        %v2562 = vadd.f32 %v2368, %v2507
        %v2563 = vadd.f32 %v2369, %v2509
        %v2564 = vadd.f32 %v2370, %v2512
        %v2565 = vadd.f32 %v2371, %v2514
        %v2566 = vadd.f32 %v2372, %v2517
        %v2567 = vadd.f32 %v2373, %v2519
        %v2568 = vadd.f32 %v2374, %v2522
        %v2569 = vadd.f32 %v2375, %v2524
        %v2570 = vadd.f32 %v2376, %v2527
        %v2571 = vadd.f32 %v2377, %v2529
        %v2572 = vadd.f32 %v2378, %v2532
        %v2573 = vadd.f32 %v2379, %v2534
        %v2574 = vadd.f32 %v2380, %v2537
        %v2575 = vadd.f32 %v2381, %v2539
        %v2576 = vadd.f32 %v2382, %v2542
        %v2577 = vadd.f32 %v2383, %v2544
        %v2582 = vrot.slane %v1266, 3
        %v2583 = vrot.slane %v1306, 3
        %v2584 = vsel %vm1341, %v2582, %v2583
        %v2585 = vrot.slane %v1268, 3
        %v2586 = vrot.slane %v1308, 3
        %v2587 = vsel %vm1341, %v2585, %v2586
        %s2590 = scalar_lea.vmem [#allocation10], 384
        %v2591 = vld [vmem:[%s2590] sm:$0xf]
        %v2592 = vld [vmem:[%s2590 + $0x4] sm:$0xf]
        %v2593 = vld [vmem:[%s2590 + $0x8] sm:$0xf]
        %v2594 = vld [vmem:[%s2590 + $0xc] sm:$0xf]
        %v2595 = vld [vmem:[%s2590 + $0x10] sm:$0xf]
        %v2596 = vld [vmem:[%s2590 + $0x14] sm:$0xf]
        %v2597 = vld [vmem:[%s2590 + $0x18] sm:$0xf]
        %v2598 = vld [vmem:[%s2590 + $0x1c] sm:$0xf]
        %v2599 = vld [vmem:[%s2590 + $0x20] sm:$0xf]
        %v2600 = vld [vmem:[%s2590 + $0x24] sm:$0xf]
        %v2601 = vld [vmem:[%s2590 + $0x28] sm:$0xf]
        %v2602 = vld [vmem:[%s2590 + $0x2c] sm:$0xf]
        %v2603 = vld [vmem:[%s2590 + $0x30] sm:$0xf]
        %v2604 = vld [vmem:[%s2590 + $0x34] sm:$0xf]
        %v2605 = vld [vmem:[%s2590 + $0x38] sm:$0xf]
        %v2606 = vld [vmem:[%s2590 + $0x3c] sm:$0xf]
        %v2623 = vunpack.c.l.b16 %v2591
        %v2624 = vunpack.c.l.b16 %v2592
        %v2625 = vunpack.c.l.b16 %v2593
        %v2626 = vunpack.c.l.b16 %v2594
        %v2627 = vunpack.c.l.b16 %v2595
        %v2628 = vunpack.c.l.b16 %v2596
        %v2629 = vunpack.c.l.b16 %v2597
        %v2630 = vunpack.c.l.b16 %v2598
        %v2631 = vunpack.c.l.b16 %v2599
        %v2632 = vunpack.c.l.b16 %v2600
        %v2633 = vunpack.c.l.b16 %v2601
        %v2634 = vunpack.c.l.b16 %v2602
        %v2635 = vunpack.c.l.b16 %v2603
        %v2636 = vunpack.c.l.b16 %v2604
        %v2637 = vunpack.c.l.b16 %v2605
        %v2638 = vunpack.c.l.b16 %v2606
        %v2639 = vpack.c.b16 %v2624, %v2623
        %v2640 = vpack.c.b16 %v2626, %v2625
        %v2641 = vpack.c.b16 %v2628, %v2627
        %v2642 = vpack.c.b16 %v2630, %v2629
        %v2643 = vpack.c.b16 %v2632, %v2631
        %v2644 = vpack.c.b16 %v2634, %v2633
        %v2645 = vpack.c.b16 %v2636, %v2635
        %v2646 = vpack.c.b16 %v2638, %v2637
        %2655 = vmatpush.bf16.msra.mxu0 %v2646
        %2656 = vmatpush.bf16.msra.mxu0 %v2645
        %2657 = vmatpush.bf16.msra.mxu0 %v2644
        %2658 = vmatpush.bf16.msra.mxu0 %v2643
        %2659 = vmatpush.bf16.msra.mxu0 %v2642
        %2660 = vmatpush.bf16.msra.mxu0 %v2641
        %2661 = vmatpush.bf16.msra.mxu0 %v2640
        %2662 = vmatpush.bf16.msra.mxu0 %v2639
        %2663 = vmatmul.bf16.gmra.mxu0 %v1356
        %v2664 = vpop.f32.mrf.mxu0
        %v2665 = vadd.f32 0.0, %v2664
        %v2666 = vpop.f32.mrf.mxu0
        %v2667 = vadd.f32 0.0, %v2666
        %2668 = vmatmul.bf16.gmra.mxu0 %v1359
        %v2669 = vpop.f32.mrf.mxu0
        %v2670 = vadd.f32 0.0, %v2669
        %v2671 = vpop.f32.mrf.mxu0
        %v2672 = vadd.f32 0.0, %v2671
        %2673 = vmatmul.bf16.gmra.mxu0 %v1362
        %v2674 = vpop.f32.mrf.mxu0
        %v2675 = vadd.f32 0.0, %v2674
        %v2676 = vpop.f32.mrf.mxu0
        %v2677 = vadd.f32 0.0, %v2676
        %2678 = vmatmul.bf16.gmra.mxu0 %v1365
        %v2679 = vpop.f32.mrf.mxu0
        %v2680 = vadd.f32 0.0, %v2679
        %v2681 = vpop.f32.mrf.mxu0
        %v2682 = vadd.f32 0.0, %v2681
        %2683 = vmatmul.bf16.gmra.mxu0 %v1368
        %v2684 = vpop.f32.mrf.mxu0
        %v2685 = vadd.f32 0.0, %v2684
        %v2686 = vpop.f32.mrf.mxu0
        %v2687 = vadd.f32 0.0, %v2686
        %2688 = vmatmul.bf16.gmra.mxu0 %v1371
        %v2689 = vpop.f32.mrf.mxu0
        %v2690 = vadd.f32 0.0, %v2689
        %v2691 = vpop.f32.mrf.mxu0
        %v2692 = vadd.f32 0.0, %v2691
        %2693 = vmatmul.bf16.gmra.mxu0 %v1374
        %v2694 = vpop.f32.mrf.mxu0
        %v2695 = vadd.f32 0.0, %v2694
        %v2696 = vpop.f32.mrf.mxu0
        %v2697 = vadd.f32 0.0, %v2696
        %2698 = vmatmul.bf16.gmra.mxu0 %v1377
        %v2699 = vpop.f32.mrf.mxu0
        %v2700 = vadd.f32 0.0, %v2699
        %v2701 = vpop.f32.mrf.mxu0
        %v2702 = vadd.f32 0.0, %v2701
        %2703 = vmatmul.bf16.gmra.mxu0 %v1380
        %v2704 = vpop.f32.mrf.mxu0
        %v2705 = vadd.f32 0.0, %v2704
        %v2706 = vpop.f32.mrf.mxu0
        %v2707 = vadd.f32 0.0, %v2706
        %2708 = vmatmul.bf16.gmra.mxu0 %v1383
        %v2709 = vpop.f32.mrf.mxu0
        %v2710 = vadd.f32 0.0, %v2709
        %v2711 = vpop.f32.mrf.mxu0
        %v2712 = vadd.f32 0.0, %v2711
        %2713 = vmatmul.bf16.gmra.mxu0 %v1386
        %v2714 = vpop.f32.mrf.mxu0
        %v2715 = vadd.f32 0.0, %v2714
        %v2716 = vpop.f32.mrf.mxu0
        %v2717 = vadd.f32 0.0, %v2716
        %2718 = vmatmul.bf16.gmra.mxu0 %v1389
        %v2719 = vpop.f32.mrf.mxu0
        %v2720 = vadd.f32 0.0, %v2719
        %v2721 = vpop.f32.mrf.mxu0
        %v2722 = vadd.f32 0.0, %v2721
        %2723 = vmatmul.bf16.gmra.mxu0 %v2002
        %v2724 = vpop.f32.mrf.mxu0
        %v2725 = vadd.f32 0.0, %v2724
        %v2726 = vpop.f32.mrf.mxu0
        %v2727 = vadd.f32 0.0, %v2726
        %2728 = vmatmul.bf16.gmra.mxu0 %v2005
        %v2729 = vpop.f32.mrf.mxu0
        %v2730 = vadd.f32 0.0, %v2729
        %v2731 = vpop.f32.mrf.mxu0
        %v2732 = vadd.f32 0.0, %v2731
        %2733 = vmatmul.bf16.gmra.mxu0 %v2584
        %v2734 = vpop.f32.mrf.mxu0
        %v2735 = vadd.f32 0.0, %v2734
        %v2736 = vpop.f32.mrf.mxu0
        %v2737 = vadd.f32 0.0, %v2736
        %2738 = vmatmul.bf16.gmra.mxu0 %v2587
        %v2739 = vpop.f32.mrf.mxu0
        %v2740 = vadd.f32 0.0, %v2739
        %v2741 = vpop.f32.mrf.mxu0
        %v2742 = vadd.f32 0.0, %v2741
        %2743 = vdwg.mxu0
        %v2744 = vadd.f32 %v2546, %v2665
        %v2745 = vadd.f32 %v2547, %v2667
        %v2746 = vadd.f32 %v2548, %v2670
        %v2747 = vadd.f32 %v2549, %v2672
        %v2748 = vadd.f32 %v2550, %v2675
        %v2749 = vadd.f32 %v2551, %v2677
        %v2750 = vadd.f32 %v2552, %v2680
        %v2751 = vadd.f32 %v2553, %v2682
        %v2752 = vadd.f32 %v2554, %v2685
        %v2753 = vadd.f32 %v2555, %v2687
        %v2754 = vadd.f32 %v2556, %v2690
        %v2755 = vadd.f32 %v2557, %v2692
        %v2756 = vadd.f32 %v2558, %v2695
        %v2757 = vadd.f32 %v2559, %v2697
        %v2758 = vadd.f32 %v2560, %v2700
        %v2759 = vadd.f32 %v2561, %v2702
        %v2760 = vadd.f32 %v2562, %v2705
        %v2761 = vadd.f32 %v2563, %v2707
        %v2762 = vadd.f32 %v2564, %v2710
        %v2763 = vadd.f32 %v2565, %v2712
        %v2764 = vadd.f32 %v2566, %v2715
        %v2765 = vadd.f32 %v2567, %v2717
        %v2766 = vadd.f32 %v2568, %v2720
        %v2767 = vadd.f32 %v2569, %v2722
        %v2768 = vadd.f32 %v2570, %v2725
        %v2769 = vadd.f32 %v2571, %v2727
        %v2770 = vadd.f32 %v2572, %v2730
        %v2771 = vadd.f32 %v2573, %v2732
        %v2772 = vadd.f32 %v2574, %v2735
        %v2773 = vadd.f32 %v2575, %v2737
        %v2774 = vadd.f32 %v2576, %v2740
        %v2775 = vadd.f32 %v2577, %v2742
        %s2776 = scalar_lea.vmem [#allocation10], 448
        %v2777 = vld [vmem:[%s2776] sm:$0xf]
        %v2778 = vld [vmem:[%s2776 + $0x4] sm:$0xf]
        %v2779 = vld [vmem:[%s2776 + $0x8] sm:$0xf]
        %v2780 = vld [vmem:[%s2776 + $0xc] sm:$0xf]
        %v2781 = vld [vmem:[%s2776 + $0x10] sm:$0xf]
        %v2782 = vld [vmem:[%s2776 + $0x14] sm:$0xf]
        %v2783 = vld [vmem:[%s2776 + $0x18] sm:$0xf]
        %v2784 = vld [vmem:[%s2776 + $0x1c] sm:$0xf]
        %v2785 = vld [vmem:[%s2776 + $0x20] sm:$0xf]
        %v2786 = vld [vmem:[%s2776 + $0x24] sm:$0xf]
        %v2787 = vld [vmem:[%s2776 + $0x28] sm:$0xf]
        %v2788 = vld [vmem:[%s2776 + $0x2c] sm:$0xf]
        %v2789 = vld [vmem:[%s2776 + $0x30] sm:$0xf]
        %v2790 = vld [vmem:[%s2776 + $0x34] sm:$0xf]
        %v2791 = vld [vmem:[%s2776 + $0x38] sm:$0xf]
        %v2792 = vld [vmem:[%s2776 + $0x3c] sm:$0xf]
        %v2793 = vpack.c.b16 %v1184, %v1183
        %v2794 = vpack.c.b16 %v1186, %v1185
        %v2813 = vunpack.c.l.b16 %v2777
        %v2814 = vunpack.c.l.b16 %v2778
        %v2815 = vunpack.c.l.b16 %v2779
        %v2816 = vunpack.c.l.b16 %v2780
        %v2817 = vunpack.c.l.b16 %v2781
        %v2818 = vunpack.c.l.b16 %v2782
        %v2819 = vunpack.c.l.b16 %v2783
        %v2820 = vunpack.c.l.b16 %v2784
        %v2821 = vunpack.c.l.b16 %v2785
        %v2822 = vunpack.c.l.b16 %v2786
        %v2823 = vunpack.c.l.b16 %v2787
        %v2824 = vunpack.c.l.b16 %v2788
        %v2825 = vunpack.c.l.b16 %v2789
        %v2826 = vunpack.c.l.b16 %v2790
        %v2827 = vunpack.c.l.b16 %v2791
        %v2828 = vunpack.c.l.b16 %v2792
        %v2829 = vpack.c.b16 %v2814, %v2813
        %v2830 = vpack.c.b16 %v2816, %v2815
        %v2831 = vpack.c.b16 %v2818, %v2817
        %v2832 = vpack.c.b16 %v2820, %v2819
        %v2833 = vpack.c.b16 %v2822, %v2821
        %v2834 = vpack.c.b16 %v2824, %v2823
        %v2835 = vpack.c.b16 %v2826, %v2825
        %v2836 = vpack.c.b16 %v2828, %v2827
        %2845 = vmatpush.bf16.msra.mxu0 %v2836
        %2846 = vmatpush.bf16.msra.mxu0 %v2835
        %2847 = vmatpush.bf16.msra.mxu0 %v2834
        %2848 = vmatpush.bf16.msra.mxu0 %v2833
        %2849 = vmatpush.bf16.msra.mxu0 %v2832
        %2850 = vmatpush.bf16.msra.mxu0 %v2831
        %2851 = vmatpush.bf16.msra.mxu0 %v2830
        %2852 = vmatpush.bf16.msra.mxu0 %v2829
        %2853 = vmatmul.bf16.gmra.mxu0 %v1443
        %v2854 = vpop.f32.mrf.mxu0
        %v2855 = vadd.f32 0.0, %v2854
        %v2856 = vpop.f32.mrf.mxu0
        %v2857 = vadd.f32 0.0, %v2856
        %2858 = vmatmul.bf16.gmra.mxu0 %v1444
        %v2859 = vpop.f32.mrf.mxu0
        %v2860 = vadd.f32 0.0, %v2859
        %v2861 = vpop.f32.mrf.mxu0
        %v2862 = vadd.f32 0.0, %v2861
        %2863 = vmatmul.bf16.gmra.mxu0 %v1445
        %v2864 = vpop.f32.mrf.mxu0
        %v2865 = vadd.f32 0.0, %v2864
        %v2866 = vpop.f32.mrf.mxu0
        %v2867 = vadd.f32 0.0, %v2866
        %2868 = vmatmul.bf16.gmra.mxu0 %v1446
        %v2869 = vpop.f32.mrf.mxu0
        %v2870 = vadd.f32 0.0, %v2869
        %v2871 = vpop.f32.mrf.mxu0
        %v2872 = vadd.f32 0.0, %v2871
        %2873 = vmatmul.bf16.gmra.mxu0 %v1447
        %v2874 = vpop.f32.mrf.mxu0
        %v2875 = vadd.f32 0.0, %v2874
        %v2876 = vpop.f32.mrf.mxu0
        %v2877 = vadd.f32 0.0, %v2876
        %2878 = vmatmul.bf16.gmra.mxu0 %v1448
        %v2879 = vpop.f32.mrf.mxu0
        %v2880 = vadd.f32 0.0, %v2879
        %v2881 = vpop.f32.mrf.mxu0
        %v2882 = vadd.f32 0.0, %v2881
        %2883 = vmatmul.bf16.gmra.mxu0 %v1449
        %v2884 = vpop.f32.mrf.mxu0
        %v2885 = vadd.f32 0.0, %v2884
        %v2886 = vpop.f32.mrf.mxu0
        %v2887 = vadd.f32 0.0, %v2886
        %2888 = vmatmul.bf16.gmra.mxu0 %v1450
        %v2889 = vpop.f32.mrf.mxu0
        %v2890 = vadd.f32 0.0, %v2889
        %v2891 = vpop.f32.mrf.mxu0
        %v2892 = vadd.f32 0.0, %v2891
        %2893 = vmatmul.bf16.gmra.mxu0 %v1451
        %v2894 = vpop.f32.mrf.mxu0
        %v2895 = vadd.f32 0.0, %v2894
        %v2896 = vpop.f32.mrf.mxu0
        %v2897 = vadd.f32 0.0, %v2896
        %2898 = vmatmul.bf16.gmra.mxu0 %v1452
        %v2899 = vpop.f32.mrf.mxu0
        %v2900 = vadd.f32 0.0, %v2899
        %v2901 = vpop.f32.mrf.mxu0
        %v2902 = vadd.f32 0.0, %v2901
        %2903 = vmatmul.bf16.gmra.mxu0 %v1453
        %v2904 = vpop.f32.mrf.mxu0
        %v2905 = vadd.f32 0.0, %v2904
        %v2906 = vpop.f32.mrf.mxu0
        %v2907 = vadd.f32 0.0, %v2906
        %2908 = vmatmul.bf16.gmra.mxu0 %v1454
        %v2909 = vpop.f32.mrf.mxu0
        %v2910 = vadd.f32 0.0, %v2909
        %v2911 = vpop.f32.mrf.mxu0
        %v2912 = vadd.f32 0.0, %v2911
        %2913 = vmatmul.bf16.gmra.mxu0 %v2211
        %v2914 = vpop.f32.mrf.mxu0
        %v2915 = vadd.f32 0.0, %v2914
        %v2916 = vpop.f32.mrf.mxu0
        %v2917 = vadd.f32 0.0, %v2916
        %2918 = vmatmul.bf16.gmra.mxu0 %v2212
        %v2919 = vpop.f32.mrf.mxu0
        %v2920 = vadd.f32 0.0, %v2919
        %v2921 = vpop.f32.mrf.mxu0
        %v2922 = vadd.f32 0.0, %v2921
        %2923 = vmatmul.bf16.gmra.mxu0 %v2793
        %v2924 = vpop.f32.mrf.mxu0
        %v2925 = vadd.f32 0.0, %v2924
        %v2926 = vpop.f32.mrf.mxu0
        %v2927 = vadd.f32 0.0, %v2926
        %2928 = vmatmul.bf16.gmra.mxu0 %v2794
        %v2929 = vpop.f32.mrf.mxu0
        %v2930 = vadd.f32 0.0, %v2929
        %v2931 = vpop.f32.mrf.mxu0
        %v2932 = vadd.f32 0.0, %v2931
        %2933 = vdwg.mxu0
        %v2934 = vadd.f32 %v2744, %v2855
        %v2935 = vadd.f32 %v2745, %v2857
        %v2936 = vadd.f32 %v2746, %v2860
        %v2937 = vadd.f32 %v2747, %v2862
        %v2938 = vadd.f32 %v2748, %v2865
        %v2939 = vadd.f32 %v2749, %v2867
        %v2940 = vadd.f32 %v2750, %v2870
        %v2941 = vadd.f32 %v2751, %v2872
        %v2942 = vadd.f32 %v2752, %v2875
        %v2943 = vadd.f32 %v2753, %v2877
        %v2944 = vadd.f32 %v2754, %v2880
        %v2945 = vadd.f32 %v2755, %v2882
        %v2946 = vadd.f32 %v2756, %v2885
        %v2947 = vadd.f32 %v2757, %v2887
        %v2948 = vadd.f32 %v2758, %v2890
        %v2949 = vadd.f32 %v2759, %v2892
        %v2950 = vadd.f32 %v2760, %v2895
        %v2951 = vadd.f32 %v2761, %v2897
        %v2952 = vadd.f32 %v2762, %v2900
        %v2953 = vadd.f32 %v2763, %v2902
        %v2954 = vadd.f32 %v2764, %v2905
        %v2955 = vadd.f32 %v2765, %v2907
        %v2956 = vadd.f32 %v2766, %v2910
        %v2957 = vadd.f32 %v2767, %v2912
        %v2958 = vadd.f32 %v2768, %v2915
        %v2959 = vadd.f32 %v2769, %v2917
        %v2960 = vadd.f32 %v2770, %v2920
        %v2961 = vadd.f32 %v2771, %v2922
        %v2962 = vadd.f32 %v2772, %v2925
        %v2963 = vadd.f32 %v2773, %v2927
        %v2964 = vadd.f32 %v2774, %v2930
        %v2965 = vadd.f32 %v2775, %v2932
        %v2966 = vrot.slane %v1266, 5
        %v2967 = vrot.slane %v1306, 5
        %v2968 = vsel %vm1745, %v2966, %v2967
        %v2969 = vrot.slane %v1268, 5
        %v2970 = vrot.slane %v1308, 5
        %v2971 = vsel %vm1745, %v2969, %v2970
        %s2974 = scalar_lea.vmem [#allocation10], 512
        %v2975 = vld [vmem:[%s2974] sm:$0xf]
        %v2976 = vld [vmem:[%s2974 + $0x4] sm:$0xf]
        %v2977 = vld [vmem:[%s2974 + $0x8] sm:$0xf]
        %v2978 = vld [vmem:[%s2974 + $0xc] sm:$0xf]
        %v2979 = vld [vmem:[%s2974 + $0x10] sm:$0xf]
        %v2980 = vld [vmem:[%s2974 + $0x14] sm:$0xf]
        %v2981 = vld [vmem:[%s2974 + $0x18] sm:$0xf]
        %v2982 = vld [vmem:[%s2974 + $0x1c] sm:$0xf]
        %v2983 = vld [vmem:[%s2974 + $0x20] sm:$0xf]
        %v2984 = vld [vmem:[%s2974 + $0x24] sm:$0xf]
        %v2985 = vld [vmem:[%s2974 + $0x28] sm:$0xf]
        %v2986 = vld [vmem:[%s2974 + $0x2c] sm:$0xf]
        %v2987 = vld [vmem:[%s2974 + $0x30] sm:$0xf]
        %v2988 = vld [vmem:[%s2974 + $0x34] sm:$0xf]
        %v2989 = vld [vmem:[%s2974 + $0x38] sm:$0xf]
        %v2990 = vld [vmem:[%s2974 + $0x3c] sm:$0xf]
        %v3007 = vunpack.c.l.b16 %v2975
        %v3008 = vunpack.c.l.b16 %v2976
        %v3009 = vunpack.c.l.b16 %v2977
        %v3010 = vunpack.c.l.b16 %v2978
        %v3011 = vunpack.c.l.b16 %v2979
        %v3012 = vunpack.c.l.b16 %v2980
        %v3013 = vunpack.c.l.b16 %v2981
        %v3014 = vunpack.c.l.b16 %v2982
        %v3015 = vunpack.c.l.b16 %v2983
        %v3016 = vunpack.c.l.b16 %v2984
        %v3017 = vunpack.c.l.b16 %v2985
        %v3018 = vunpack.c.l.b16 %v2986
        %v3019 = vunpack.c.l.b16 %v2987
        %v3020 = vunpack.c.l.b16 %v2988
        %v3021 = vunpack.c.l.b16 %v2989
        %v3022 = vunpack.c.l.b16 %v2990
        %v3023 = vpack.c.b16 %v3008, %v3007
        %v3024 = vpack.c.b16 %v3010, %v3009
        %v3025 = vpack.c.b16 %v3012, %v3011
        %v3026 = vpack.c.b16 %v3014, %v3013
        %v3027 = vpack.c.b16 %v3016, %v3015
        %v3028 = vpack.c.b16 %v3018, %v3017
        %v3029 = vpack.c.b16 %v3020, %v3019
        %v3030 = vpack.c.b16 %v3022, %v3021
        %3039 = vmatpush.bf16.msra.mxu0 %v3030
        %3040 = vmatpush.bf16.msra.mxu0 %v3029
        %3041 = vmatpush.bf16.msra.mxu0 %v3028
        %3042 = vmatpush.bf16.msra.mxu0 %v3027
        %3043 = vmatpush.bf16.msra.mxu0 %v3026
        %3044 = vmatpush.bf16.msra.mxu0 %v3025
        %3045 = vmatpush.bf16.msra.mxu0 %v3024
        %3046 = vmatpush.bf16.msra.mxu0 %v3023
        %3047 = vmatmul.bf16.gmra.mxu0 %v1760
        %v3048 = vpop.f32.mrf.mxu0
        %v3049 = vadd.f32 0.0, %v3048
        %v3050 = vpop.f32.mrf.mxu0
        %v3051 = vadd.f32 0.0, %v3050
        %3052 = vmatmul.bf16.gmra.mxu0 %v1763
        %v3053 = vpop.f32.mrf.mxu0
        %v3054 = vadd.f32 0.0, %v3053
        %v3055 = vpop.f32.mrf.mxu0
        %v3056 = vadd.f32 0.0, %v3055
        %3057 = vmatmul.bf16.gmra.mxu0 %v1766
        %v3058 = vpop.f32.mrf.mxu0
        %v3059 = vadd.f32 0.0, %v3058
        %v3060 = vpop.f32.mrf.mxu0
        %v3061 = vadd.f32 0.0, %v3060
        %3062 = vmatmul.bf16.gmra.mxu0 %v1769
        %v3063 = vpop.f32.mrf.mxu0
        %v3064 = vadd.f32 0.0, %v3063
        %v3065 = vpop.f32.mrf.mxu0
        %v3066 = vadd.f32 0.0, %v3065
        %3067 = vmatmul.bf16.gmra.mxu0 %v1772
        %v3068 = vpop.f32.mrf.mxu0
        %v3069 = vadd.f32 0.0, %v3068
        %v3070 = vpop.f32.mrf.mxu0
        %v3071 = vadd.f32 0.0, %v3070
        %3072 = vmatmul.bf16.gmra.mxu0 %v1775
        %v3073 = vpop.f32.mrf.mxu0
        %v3074 = vadd.f32 0.0, %v3073
        %v3075 = vpop.f32.mrf.mxu0
        %v3076 = vadd.f32 0.0, %v3075
        %3077 = vmatmul.bf16.gmra.mxu0 %v1778
        %v3078 = vpop.f32.mrf.mxu0
        %v3079 = vadd.f32 0.0, %v3078
        %v3080 = vpop.f32.mrf.mxu0
        %v3081 = vadd.f32 0.0, %v3080
        %3082 = vmatmul.bf16.gmra.mxu0 %v1781
        %v3083 = vpop.f32.mrf.mxu0
        %v3084 = vadd.f32 0.0, %v3083
        %v3085 = vpop.f32.mrf.mxu0
        %v3086 = vadd.f32 0.0, %v3085
        %3087 = vmatmul.bf16.gmra.mxu0 %v1784
        %v3088 = vpop.f32.mrf.mxu0
        %v3089 = vadd.f32 0.0, %v3088
        %v3090 = vpop.f32.mrf.mxu0
        %v3091 = vadd.f32 0.0, %v3090
        %3092 = vmatmul.bf16.gmra.mxu0 %v1787
        %v3093 = vpop.f32.mrf.mxu0
        %v3094 = vadd.f32 0.0, %v3093
        %v3095 = vpop.f32.mrf.mxu0
        %v3096 = vadd.f32 0.0, %v3095
        %3097 = vmatmul.bf16.gmra.mxu0 %v1790
        %v3098 = vpop.f32.mrf.mxu0
        %v3099 = vadd.f32 0.0, %v3098
        %v3100 = vpop.f32.mrf.mxu0
        %v3101 = vadd.f32 0.0, %v3100
        %3102 = vmatmul.bf16.gmra.mxu0 %v1793
        %v3103 = vpop.f32.mrf.mxu0
        %v3104 = vadd.f32 0.0, %v3103
        %v3105 = vpop.f32.mrf.mxu0
        %v3106 = vadd.f32 0.0, %v3105
        %3107 = vmatmul.bf16.gmra.mxu0 %v2386
        %v3108 = vpop.f32.mrf.mxu0
        %v3109 = vadd.f32 0.0, %v3108
        %v3110 = vpop.f32.mrf.mxu0
        %v3111 = vadd.f32 0.0, %v3110
        %3112 = vmatmul.bf16.gmra.mxu0 %v2389
        %v3113 = vpop.f32.mrf.mxu0
        %v3114 = vadd.f32 0.0, %v3113
        %v3115 = vpop.f32.mrf.mxu0
        %v3116 = vadd.f32 0.0, %v3115
        %3117 = vmatmul.bf16.gmra.mxu0 %v2968
        %v3118 = vpop.f32.mrf.mxu0
        %v3119 = vadd.f32 0.0, %v3118
        %v3120 = vpop.f32.mrf.mxu0
        %v3121 = vadd.f32 0.0, %v3120
        %3122 = vmatmul.bf16.gmra.mxu0 %v2971
        %v3123 = vpop.f32.mrf.mxu0
        %v3124 = vadd.f32 0.0, %v3123
        %v3125 = vpop.f32.mrf.mxu0
        %v3126 = vadd.f32 0.0, %v3125
        %3127 = vdwg.mxu0
        %v3128 = vadd.f32 %v2934, %v3049
        %v3129 = vadd.f32 %v2935, %v3051
        %v3130 = vadd.f32 %v2936, %v3054
        %v3131 = vadd.f32 %v2937, %v3056
        %v3132 = vadd.f32 %v2938, %v3059
        %v3133 = vadd.f32 %v2939, %v3061
        %v3134 = vadd.f32 %v2940, %v3064
        %v3135 = vadd.f32 %v2941, %v3066
        %v3136 = vadd.f32 %v2942, %v3069
        %v3137 = vadd.f32 %v2943, %v3071
        %v3138 = vadd.f32 %v2944, %v3074
        %v3139 = vadd.f32 %v2945, %v3076
        %v3140 = vadd.f32 %v2946, %v3079
        %v3141 = vadd.f32 %v2947, %v3081
        %v3142 = vadd.f32 %v2948, %v3084
        %v3143 = vadd.f32 %v2949, %v3086
        %v3144 = vadd.f32 %v2950, %v3089
        %v3145 = vadd.f32 %v2951, %v3091
        %v3146 = vadd.f32 %v2952, %v3094
        %v3147 = vadd.f32 %v2953, %v3096
        %v3148 = vadd.f32 %v2954, %v3099
        %v3149 = vadd.f32 %v2955, %v3101
        %v3150 = vadd.f32 %v2956, %v3104
        %v3151 = vadd.f32 %v2957, %v3106
        %v3152 = vadd.f32 %v2958, %v3109
        %v3153 = vadd.f32 %v2959, %v3111
        %v3154 = vadd.f32 %v2960, %v3114
        %v3155 = vadd.f32 %v2961, %v3116
        %v3156 = vadd.f32 %v2962, %v3119
        %v3157 = vadd.f32 %v2963, %v3121
        %v3158 = vadd.f32 %v2964, %v3124
        %v3159 = vadd.f32 %v2965, %v3126
        %v3160 = vld [vmem:[#allocation13 + $0x2] sm:$0x1]
        %v3161 = vperm.slane %v3160, 0
        %v3162 = vmul.f32 %v3128, %v3161
        %v3163 = vmul.f32 %v3129, %v3161
        %v3164 = vmul.f32 %v3130, %v3161
        %v3165 = vmul.f32 %v3131, %v3161
        %v3166 = vmul.f32 %v3132, %v3161
        %v3167 = vmul.f32 %v3133, %v3161
        %v3168 = vmul.f32 %v3134, %v3161
        %v3169 = vmul.f32 %v3135, %v3161
        %v3170 = vmul.f32 %v3136, %v3161
        %v3171 = vmul.f32 %v3137, %v3161
        %v3172 = vmul.f32 %v3138, %v3161
        %v3173 = vmul.f32 %v3139, %v3161
        %v3174 = vmul.f32 %v3140, %v3161
        %v3175 = vmul.f32 %v3141, %v3161
        %v3176 = vmul.f32 %v3142, %v3161
        %v3177 = vmul.f32 %v3143, %v3161
        %v3178 = vmul.f32 %v3144, %v3161
        %v3179 = vmul.f32 %v3145, %v3161
        %v3180 = vmul.f32 %v3146, %v3161
        %v3181 = vmul.f32 %v3147, %v3161
        %v3182 = vmul.f32 %v3148, %v3161
        %v3183 = vmul.f32 %v3149, %v3161
        %v3184 = vmul.f32 %v3150, %v3161
        %v3185 = vmul.f32 %v3151, %v3161
        %v3186 = vmul.f32 %v3152, %v3161
        %v3187 = vmul.f32 %v3153, %v3161
        %v3188 = vmul.f32 %v3154, %v3161
        %v3189 = vmul.f32 %v3155, %v3161
        %v3190 = vmul.f32 %v3156, %v3161
        %v3191 = vmul.f32 %v3157, %v3161
        %v3192 = vmul.f32 %v3158, %v3161
        %v3193 = vmul.f32 %v3159, %v3161
        %v3194 = vld [vmem:[#allocation13 + $0x3] sm:$0x1]
        %v3195 = vperm.slane %v3194, 0
        %v3196 = vadd.f32 %v3162, %v3195
        %v3197 = vadd.f32 %v3163, %v3195
        %v3198 = vadd.f32 %v3164, %v3195
        %v3199 = vadd.f32 %v3165, %v3195
        %v3200 = vadd.f32 %v3166, %v3195
        %v3201 = vadd.f32 %v3167, %v3195
        %v3202 = vadd.f32 %v3168, %v3195
        %v3203 = vadd.f32 %v3169, %v3195
        %v3204 = vadd.f32 %v3170, %v3195
        %v3205 = vadd.f32 %v3171, %v3195
        %v3206 = vadd.f32 %v3172, %v3195
        %v3207 = vadd.f32 %v3173, %v3195
        %v3208 = vadd.f32 %v3174, %v3195
        %v3209 = vadd.f32 %v3175, %v3195
        %v3210 = vadd.f32 %v3176, %v3195
        %v3211 = vadd.f32 %v3177, %v3195
        %v3212 = vadd.f32 %v3178, %v3195
        %v3213 = vadd.f32 %v3179, %v3195
        %v3214 = vadd.f32 %v3180, %v3195
        %v3215 = vadd.f32 %v3181, %v3195
        %v3216 = vadd.f32 %v3182, %v3195
        %v3217 = vadd.f32 %v3183, %v3195
        %v3218 = vadd.f32 %v3184, %v3195
        %v3219 = vadd.f32 %v3185, %v3195
        %v3220 = vadd.f32 %v3186, %v3195
        %v3221 = vadd.f32 %v3187, %v3195
        %v3222 = vadd.f32 %v3188, %v3195
        %v3223 = vadd.f32 %v3189, %v3195
        %v3224 = vadd.f32 %v3190, %v3195
        %v3225 = vadd.f32 %v3191, %v3195
        %v3226 = vadd.f32 %v3192, %v3195
        %v3227 = vadd.f32 %v3193, %v3195
        %v3228 = vmax.f32 %v3196, 0.0
        %v3229 = vmax.f32 %v3197, 0.0
        %v3230 = vmax.f32 %v3198, 0.0
        %v3231 = vmax.f32 %v3199, 0.0
        %v3232 = vmax.f32 %v3200, 0.0
        %v3233 = vmax.f32 %v3201, 0.0
        %v3234 = vmax.f32 %v3202, 0.0
        %v3235 = vmax.f32 %v3203, 0.0
        %v3236 = vmax.f32 %v3204, 0.0
        %v3237 = vmax.f32 %v3205, 0.0
        %v3238 = vmax.f32 %v3206, 0.0
        %v3239 = vmax.f32 %v3207, 0.0
        %v3240 = vmax.f32 %v3208, 0.0
        %v3241 = vmax.f32 %v3209, 0.0
        %v3242 = vmax.f32 %v3210, 0.0
        %v3243 = vmax.f32 %v3211, 0.0
        %v3244 = vmax.f32 %v3212, 0.0
        %v3245 = vmax.f32 %v3213, 0.0
        %v3246 = vmax.f32 %v3214, 0.0
        %v3247 = vmax.f32 %v3215, 0.0
        %v3248 = vmax.f32 %v3216, 0.0
        %v3249 = vmax.f32 %v3217, 0.0
        %v3250 = vmax.f32 %v3218, 0.0
        %v3251 = vmax.f32 %v3219, 0.0
        %v3252 = vmax.f32 %v3220, 0.0
        %v3253 = vmax.f32 %v3221, 0.0
        %v3254 = vmax.f32 %v3222, 0.0
        %v3255 = vmax.f32 %v3223, 0.0
        %v3256 = vmax.f32 %v3224, 0.0
        %v3257 = vmax.f32 %v3225, 0.0
        %v3258 = vmax.f32 %v3226, 0.0
        %v3259 = vmax.f32 %v3227, 0.0
        %v3260 = vpack.c.bf16 %v3229, %v3228
        %v3261 = vpack.c.bf16 %v3231, %v3230
        %v3262 = vpack.c.bf16 %v3233, %v3232
        %v3263 = vpack.c.bf16 %v3235, %v3234
        %v3264 = vpack.c.bf16 %v3237, %v3236
        %v3265 = vpack.c.bf16 %v3239, %v3238
        %v3266 = vpack.c.bf16 %v3241, %v3240
        %v3267 = vpack.c.bf16 %v3243, %v3242
        %v3268 = vpack.c.bf16 %v3245, %v3244
        %v3269 = vpack.c.bf16 %v3247, %v3246
        %v3270 = vpack.c.bf16 %v3249, %v3248
        %v3271 = vpack.c.bf16 %v3251, %v3250
        %v3272 = vpack.c.bf16 %v3253, %v3252
        %v3273 = vpack.c.bf16 %v3255, %v3254
        %v3274 = vpack.c.bf16 %v3257, %v3256
        %v3275 = vpack.c.bf16 %v3259, %v3258
        %v3276 = vld [vmem:[#allocation11] sm:$0xf]
        %v3277 = vld [vmem:[#allocation11 + $0x4] sm:$0xf]
        %v3278 = vld [vmem:[#allocation11 + $0x8] sm:$0xf]
        %v3279 = vld [vmem:[#allocation11 + $0xc] sm:$0xf]
        %v3280 = vld [vmem:[#allocation11 + $0x10] sm:$0xf]
        %v3281 = vld [vmem:[#allocation11 + $0x14] sm:$0xf]
        %v3282 = vld [vmem:[#allocation11 + $0x18] sm:$0xf]
        %v3283 = vld [vmem:[#allocation11 + $0x1c] sm:$0xf]
        %v3284 = vld [vmem:[#allocation11 + $0x20] sm:$0xf]
        %v3285 = vld [vmem:[#allocation11 + $0x24] sm:$0xf]
        %v3286 = vld [vmem:[#allocation11 + $0x28] sm:$0xf]
        %v3287 = vld [vmem:[#allocation11 + $0x2c] sm:$0xf]
        %v3288 = vld [vmem:[#allocation11 + $0x30] sm:$0xf]
        %v3289 = vld [vmem:[#allocation11 + $0x34] sm:$0xf]
        %v3290 = vld [vmem:[#allocation11 + $0x38] sm:$0xf]
        %v3291 = vld [vmem:[#allocation11 + $0x3c] sm:$0xf]
        %v3308 = vunpack.c.l.b16 %v3276
        %v3309 = vunpack.c.l.b16 %v3277
        %v3310 = vunpack.c.l.b16 %v3278
        %v3311 = vunpack.c.l.b16 %v3279
        %v3312 = vunpack.c.l.b16 %v3280
        %v3313 = vunpack.c.l.b16 %v3281
        %v3314 = vunpack.c.l.b16 %v3282
        %v3315 = vunpack.c.l.b16 %v3283
        %v3316 = vunpack.c.l.b16 %v3284
        %v3317 = vunpack.c.l.b16 %v3285
        %v3318 = vunpack.c.l.b16 %v3286
        %v3319 = vunpack.c.l.b16 %v3287
        %v3320 = vunpack.c.l.b16 %v3288
        %v3321 = vunpack.c.l.b16 %v3289
        %v3322 = vunpack.c.l.b16 %v3290
        %v3323 = vunpack.c.l.b16 %v3291
        %v3324 = vpack.c.b16 %v3309, %v3308
        %v3325 = vpack.c.b16 %v3311, %v3310
        %v3326 = vpack.c.b16 %v3313, %v3312
        %v3327 = vpack.c.b16 %v3315, %v3314
        %v3328 = vpack.c.b16 %v3317, %v3316
        %v3329 = vpack.c.b16 %v3319, %v3318
        %v3330 = vpack.c.b16 %v3321, %v3320
        %v3331 = vpack.c.b16 %v3323, %v3322
        %3340 = vmatpush.bf16.msra.mxu0 %v3331
        %3341 = vmatpush.bf16.msra.mxu0 %v3330
        %3342 = vmatpush.bf16.msra.mxu0 %v3329
        %3343 = vmatpush.bf16.msra.mxu0 %v3328
        %3344 = vmatpush.bf16.msra.mxu0 %v3327
        %3345 = vmatpush.bf16.msra.mxu0 %v3326
        %3346 = vmatpush.bf16.msra.mxu0 %v3325
        %3347 = vmatpush.bf16.msra.mxu0 %v3324
        %3348 = vmatmul.bf16.gmra.mxu0 %v3260
        %v3349 = vpop.f32.mrf.mxu0
        %v3350 = vadd.f32 0.0, %v3349
        %v3351 = vpop.f32.mrf.mxu0
        %v3352 = vadd.f32 0.0, %v3351
        %3353 = vmatmul.bf16.gmra.mxu0 %v3261
        %v3354 = vpop.f32.mrf.mxu0
        %v3355 = vadd.f32 0.0, %v3354
        %v3356 = vpop.f32.mrf.mxu0
        %v3357 = vadd.f32 0.0, %v3356
        %3358 = vmatmul.bf16.gmra.mxu0 %v3262
        %v3359 = vpop.f32.mrf.mxu0
        %v3360 = vadd.f32 0.0, %v3359
        %v3361 = vpop.f32.mrf.mxu0
        %v3362 = vadd.f32 0.0, %v3361
        %3363 = vmatmul.bf16.gmra.mxu0 %v3263
        %v3364 = vpop.f32.mrf.mxu0
        %v3365 = vadd.f32 0.0, %v3364
        %v3366 = vpop.f32.mrf.mxu0
        %v3367 = vadd.f32 0.0, %v3366
        %3368 = vmatmul.bf16.gmra.mxu0 %v3264
        %v3369 = vpop.f32.mrf.mxu0
        %v3370 = vadd.f32 0.0, %v3369
        %v3371 = vpop.f32.mrf.mxu0
        %v3372 = vadd.f32 0.0, %v3371
        %3373 = vmatmul.bf16.gmra.mxu0 %v3265
        %v3374 = vpop.f32.mrf.mxu0
        %v3375 = vadd.f32 0.0, %v3374
        %v3376 = vpop.f32.mrf.mxu0
        %v3377 = vadd.f32 0.0, %v3376
        %3378 = vmatmul.bf16.gmra.mxu0 %v3266
        %v3379 = vpop.f32.mrf.mxu0
        %v3380 = vadd.f32 0.0, %v3379
        %v3381 = vpop.f32.mrf.mxu0
        %v3382 = vadd.f32 0.0, %v3381
        %3383 = vmatmul.bf16.gmra.mxu0 %v3267
        %v3384 = vpop.f32.mrf.mxu0
        %v3385 = vadd.f32 0.0, %v3384
        %v3386 = vpop.f32.mrf.mxu0
        %v3387 = vadd.f32 0.0, %v3386
        %3388 = vmatmul.bf16.gmra.mxu0 %v3268
        %v3389 = vpop.f32.mrf.mxu0
        %v3390 = vadd.f32 0.0, %v3389
        %v3391 = vpop.f32.mrf.mxu0
        %v3392 = vadd.f32 0.0, %v3391
        %3393 = vmatmul.bf16.gmra.mxu0 %v3269
        %v3394 = vpop.f32.mrf.mxu0
        %v3395 = vadd.f32 0.0, %v3394
        %v3396 = vpop.f32.mrf.mxu0
        %v3397 = vadd.f32 0.0, %v3396
        %3398 = vmatmul.bf16.gmra.mxu0 %v3270
        %v3399 = vpop.f32.mrf.mxu0
        %v3400 = vadd.f32 0.0, %v3399
        %v3401 = vpop.f32.mrf.mxu0
        %v3402 = vadd.f32 0.0, %v3401
        %3403 = vmatmul.bf16.gmra.mxu0 %v3271
        %v3404 = vpop.f32.mrf.mxu0
        %v3405 = vadd.f32 0.0, %v3404
        %v3406 = vpop.f32.mrf.mxu0
        %v3407 = vadd.f32 0.0, %v3406
        %3408 = vmatmul.bf16.gmra.mxu0 %v3272
        %v3409 = vpop.f32.mrf.mxu0
        %v3410 = vadd.f32 0.0, %v3409
        %v3411 = vpop.f32.mrf.mxu0
        %v3412 = vadd.f32 0.0, %v3411
        %3413 = vmatmul.bf16.gmra.mxu0 %v3273
        %v3414 = vpop.f32.mrf.mxu0
        %v3415 = vadd.f32 0.0, %v3414
        %v3416 = vpop.f32.mrf.mxu0
        %v3417 = vadd.f32 0.0, %v3416
        %3418 = vmatmul.bf16.gmra.mxu0 %v3274
        %v3419 = vpop.f32.mrf.mxu0
        %v3420 = vadd.f32 0.0, %v3419
        %v3421 = vpop.f32.mrf.mxu0
        %v3422 = vadd.f32 0.0, %v3421
        %3423 = vmatmul.bf16.gmra.mxu0 %v3275
        %v3424 = vpop.f32.mrf.mxu0
        %v3425 = vadd.f32 0.0, %v3424
        %v3426 = vpop.f32.mrf.mxu0
        %v3427 = vadd.f32 0.0, %v3426
        %3428 = vdwg.mxu0
        %v3429 = vld [vmem:[#allocation13 + $0x4] sm:$0x1]
        %v3430 = vperm.slane %v3429, 0
        %v3431 = vmul.f32 %v3350, %v3430
        %v3432 = vmul.f32 %v3352, %v3430
        %v3433 = vmul.f32 %v3355, %v3430
        %v3434 = vmul.f32 %v3357, %v3430
        %v3435 = vmul.f32 %v3360, %v3430
        %v3436 = vmul.f32 %v3362, %v3430
        %v3437 = vmul.f32 %v3365, %v3430
        %v3438 = vmul.f32 %v3367, %v3430
        %v3439 = vmul.f32 %v3370, %v3430
        %v3440 = vmul.f32 %v3372, %v3430
        %v3441 = vmul.f32 %v3375, %v3430
        %v3442 = vmul.f32 %v3377, %v3430
        %v3443 = vmul.f32 %v3380, %v3430
        %v3444 = vmul.f32 %v3382, %v3430
        %v3445 = vmul.f32 %v3385, %v3430
        %v3446 = vmul.f32 %v3387, %v3430
        %v3447 = vmul.f32 %v3390, %v3430
        %v3448 = vmul.f32 %v3392, %v3430
        %v3449 = vmul.f32 %v3395, %v3430
        %v3450 = vmul.f32 %v3397, %v3430
        %v3451 = vmul.f32 %v3400, %v3430
        %v3452 = vmul.f32 %v3402, %v3430
        %v3453 = vmul.f32 %v3405, %v3430
        %v3454 = vmul.f32 %v3407, %v3430
        %v3455 = vmul.f32 %v3410, %v3430
        %v3456 = vmul.f32 %v3412, %v3430
        %v3457 = vmul.f32 %v3415, %v3430
        %v3458 = vmul.f32 %v3417, %v3430
        %v3459 = vmul.f32 %v3420, %v3430
        %v3460 = vmul.f32 %v3422, %v3430
        %v3461 = vmul.f32 %v3425, %v3430
        %v3462 = vmul.f32 %v3427, %v3430
        %v3463 = vld [vmem:[#allocation13 + $0x5] sm:$0x1]
        %v3464 = vperm.slane %v3463, 0
        %v3465 = vadd.f32 %v3431, %v3464
        %v3466 = vadd.f32 %v3432, %v3464
        %v3467 = vadd.f32 %v3433, %v3464
        %v3468 = vadd.f32 %v3434, %v3464
        %v3469 = vadd.f32 %v3435, %v3464
        %v3470 = vadd.f32 %v3436, %v3464
        %v3471 = vadd.f32 %v3437, %v3464
        %v3472 = vadd.f32 %v3438, %v3464
        %v3473 = vadd.f32 %v3439, %v3464
        %v3474 = vadd.f32 %v3440, %v3464
        %v3475 = vadd.f32 %v3441, %v3464
        %v3476 = vadd.f32 %v3442, %v3464
        %v3477 = vadd.f32 %v3443, %v3464
        %v3478 = vadd.f32 %v3444, %v3464
        %v3479 = vadd.f32 %v3445, %v3464
        %v3480 = vadd.f32 %v3446, %v3464
        %v3481 = vadd.f32 %v3447, %v3464
        %v3482 = vadd.f32 %v3448, %v3464
        %v3483 = vadd.f32 %v3449, %v3464
        %v3484 = vadd.f32 %v3450, %v3464
        %v3485 = vadd.f32 %v3451, %v3464
        %v3486 = vadd.f32 %v3452, %v3464
        %v3487 = vadd.f32 %v3453, %v3464
        %v3488 = vadd.f32 %v3454, %v3464
        %v3489 = vadd.f32 %v3455, %v3464
        %v3490 = vadd.f32 %v3456, %v3464
        %v3491 = vadd.f32 %v3457, %v3464
        %v3492 = vadd.f32 %v3458, %v3464
        %v3493 = vadd.f32 %v3459, %v3464
        %v3494 = vadd.f32 %v3460, %v3464
        %v3495 = vadd.f32 %v3461, %v3464
        %v3496 = vadd.f32 %v3462, %v3464
        %v3497 = vld [vmem:[#allocation8] sm:$0xf]
        %v3498 = vld [vmem:[#allocation8 + $0x4] sm:$0xf]
        %v3499 = vld [vmem:[#allocation8 + $0x8] sm:$0xf]
        %v3500 = vld [vmem:[#allocation8 + $0xc] sm:$0xf]
        %v3501 = vld [vmem:[#allocation8 + $0x10] sm:$0xf]
        %v3502 = vld [vmem:[#allocation8 + $0x14] sm:$0xf]
        %v3503 = vld [vmem:[#allocation8 + $0x18] sm:$0xf]
        %v3504 = vld [vmem:[#allocation8 + $0x1c] sm:$0xf]
        %v3505 = vld [vmem:[#allocation8 + $0x20] sm:$0xf]
        %v3506 = vld [vmem:[#allocation8 + $0x24] sm:$0xf]
        %v3507 = vld [vmem:[#allocation8 + $0x28] sm:$0xf]
        %v3508 = vld [vmem:[#allocation8 + $0x2c] sm:$0xf]
        %v3509 = vld [vmem:[#allocation8 + $0x30] sm:$0xf]
        %v3510 = vld [vmem:[#allocation8 + $0x34] sm:$0xf]
        %v3511 = vld [vmem:[#allocation8 + $0x38] sm:$0xf]
        %v3512 = vld [vmem:[#allocation8 + $0x3c] sm:$0xf]
        %v3529 = vunpack.c.l.b16 %v3497
        %v3530 = vunpack.c.l.b16 %v3498
        %v3531 = vunpack.c.l.b16 %v3499
        %v3532 = vunpack.c.l.b16 %v3500
        %v3533 = vunpack.c.l.b16 %v3501
        %v3534 = vunpack.c.l.b16 %v3502
        %v3535 = vunpack.c.l.b16 %v3503
        %v3536 = vunpack.c.l.b16 %v3504
        %v3537 = vunpack.c.l.b16 %v3505
        %v3538 = vunpack.c.l.b16 %v3506
        %v3539 = vunpack.c.l.b16 %v3507
        %v3540 = vunpack.c.l.b16 %v3508
        %v3541 = vunpack.c.l.b16 %v3509
        %v3542 = vunpack.c.l.b16 %v3510
        %v3543 = vunpack.c.l.b16 %v3511
        %v3544 = vunpack.c.l.b16 %v3512
        %v3545 = vpack.c.b16 %v3530, %v3529
        %v3546 = vpack.c.b16 %v3532, %v3531
        %v3547 = vpack.c.b16 %v3534, %v3533
        %v3548 = vpack.c.b16 %v3536, %v3535
        %v3549 = vpack.c.b16 %v3538, %v3537
        %v3550 = vpack.c.b16 %v3540, %v3539
        %v3551 = vpack.c.b16 %v3542, %v3541
        %v3552 = vpack.c.b16 %v3544, %v3543
        %3561 = vmatpush.bf16.msra.mxu0 %v3552
        %3562 = vmatpush.bf16.msra.mxu0 %v3551
        %3563 = vmatpush.bf16.msra.mxu0 %v3550
        %3564 = vmatpush.bf16.msra.mxu0 %v3549
        %3565 = vmatpush.bf16.msra.mxu0 %v3548
        %3566 = vmatpush.bf16.msra.mxu0 %v3547
        %3567 = vmatpush.bf16.msra.mxu0 %v3546
        %3568 = vmatpush.bf16.msra.mxu0 %v3545
        %3569 = vmatmul.bf16.gmra.mxu0 %v586
        %v3570 = vpop.f32.mrf.mxu0
        %v3571 = vadd.f32 0.0, %v3570
        %v3572 = vpop.f32.mrf.mxu0
        %v3573 = vadd.f32 0.0, %v3572
        %3574 = vmatmul.bf16.gmra.mxu0 %v587
        %v3575 = vpop.f32.mrf.mxu0
        %v3576 = vadd.f32 0.0, %v3575
        %v3577 = vpop.f32.mrf.mxu0
        %v3578 = vadd.f32 0.0, %v3577
        %3579 = vmatmul.bf16.gmra.mxu0 %v588
        %v3580 = vpop.f32.mrf.mxu0
        %v3581 = vadd.f32 0.0, %v3580
        %v3582 = vpop.f32.mrf.mxu0
        %v3583 = vadd.f32 0.0, %v3582
        %3584 = vmatmul.bf16.gmra.mxu0 %v589
        %v3585 = vpop.f32.mrf.mxu0
        %v3586 = vadd.f32 0.0, %v3585
        %v3587 = vpop.f32.mrf.mxu0
        %v3588 = vadd.f32 0.0, %v3587
        %3589 = vmatmul.bf16.gmra.mxu0 %v590
        %v3590 = vpop.f32.mrf.mxu0
        %v3591 = vadd.f32 0.0, %v3590
        %v3592 = vpop.f32.mrf.mxu0
        %v3593 = vadd.f32 0.0, %v3592
        %3594 = vmatmul.bf16.gmra.mxu0 %v591
        %v3595 = vpop.f32.mrf.mxu0
        %v3596 = vadd.f32 0.0, %v3595
        %v3597 = vpop.f32.mrf.mxu0
        %v3598 = vadd.f32 0.0, %v3597
        %3599 = vmatmul.bf16.gmra.mxu0 %v592
        %v3600 = vpop.f32.mrf.mxu0
        %v3601 = vadd.f32 0.0, %v3600
        %v3602 = vpop.f32.mrf.mxu0
        %v3603 = vadd.f32 0.0, %v3602
        %3604 = vmatmul.bf16.gmra.mxu0 %v593
        %v3605 = vpop.f32.mrf.mxu0
        %v3606 = vadd.f32 0.0, %v3605
        %v3607 = vpop.f32.mrf.mxu0
        %v3608 = vadd.f32 0.0, %v3607
        %3609 = vmatmul.bf16.gmra.mxu0 %v594
        %v3610 = vpop.f32.mrf.mxu0
        %v3611 = vadd.f32 0.0, %v3610
        %v3612 = vpop.f32.mrf.mxu0
        %v3613 = vadd.f32 0.0, %v3612
        %3614 = vmatmul.bf16.gmra.mxu0 %v595
        %v3615 = vpop.f32.mrf.mxu0
        %v3616 = vadd.f32 0.0, %v3615
        %v3617 = vpop.f32.mrf.mxu0
        %v3618 = vadd.f32 0.0, %v3617
        %3619 = vmatmul.bf16.gmra.mxu0 %v596
        %v3620 = vpop.f32.mrf.mxu0
        %v3621 = vadd.f32 0.0, %v3620
        %v3622 = vpop.f32.mrf.mxu0
        %v3623 = vadd.f32 0.0, %v3622
        %3624 = vmatmul.bf16.gmra.mxu0 %v597
        %v3625 = vpop.f32.mrf.mxu0
        %v3626 = vadd.f32 0.0, %v3625
        %v3627 = vpop.f32.mrf.mxu0
        %v3628 = vadd.f32 0.0, %v3627
        %3629 = vmatmul.bf16.gmra.mxu0 %v598
        %v3630 = vpop.f32.mrf.mxu0
        %v3631 = vadd.f32 0.0, %v3630
        %v3632 = vpop.f32.mrf.mxu0
        %v3633 = vadd.f32 0.0, %v3632
        %3634 = vmatmul.bf16.gmra.mxu0 %v599
        %v3635 = vpop.f32.mrf.mxu0
        %v3636 = vadd.f32 0.0, %v3635
        %v3637 = vpop.f32.mrf.mxu0
        %v3638 = vadd.f32 0.0, %v3637
        %3639 = vmatmul.bf16.gmra.mxu0 %v600
        %v3640 = vpop.f32.mrf.mxu0
        %v3641 = vadd.f32 0.0, %v3640
        %v3642 = vpop.f32.mrf.mxu0
        %v3643 = vadd.f32 0.0, %v3642
        %3644 = vmatmul.bf16.gmra.mxu0 %v601
        %v3645 = vpop.f32.mrf.mxu0
        %v3646 = vadd.f32 0.0, %v3645
        %v3647 = vpop.f32.mrf.mxu0
        %v3648 = vadd.f32 0.0, %v3647
        %3649 = vdwg.mxu0
        %v3650 = vld [vmem:[#allocation13 + $0x6] sm:$0x1]
        %v3651 = vperm.slane %v3650, 0
        %v3652 = vmul.f32 %v3571, %v3651
        %v3653 = vmul.f32 %v3573, %v3651
        %v3654 = vmul.f32 %v3576, %v3651
        %v3655 = vmul.f32 %v3578, %v3651
        %v3656 = vmul.f32 %v3581, %v3651
        %v3657 = vmul.f32 %v3583, %v3651
        %v3658 = vmul.f32 %v3586, %v3651
        %v3659 = vmul.f32 %v3588, %v3651
        %v3660 = vmul.f32 %v3591, %v3651
        %v3661 = vmul.f32 %v3593, %v3651
        %v3662 = vmul.f32 %v3596, %v3651
        %v3663 = vmul.f32 %v3598, %v3651
        %v3664 = vmul.f32 %v3601, %v3651
        %v3665 = vmul.f32 %v3603, %v3651
        %v3666 = vmul.f32 %v3606, %v3651
        %v3667 = vmul.f32 %v3608, %v3651
        %v3668 = vmul.f32 %v3611, %v3651
        %v3669 = vmul.f32 %v3613, %v3651
        %v3670 = vmul.f32 %v3616, %v3651
        %v3671 = vmul.f32 %v3618, %v3651
        %v3672 = vmul.f32 %v3621, %v3651
        %v3673 = vmul.f32 %v3623, %v3651
        %v3674 = vmul.f32 %v3626, %v3651
        %v3675 = vmul.f32 %v3628, %v3651
        %v3676 = vmul.f32 %v3631, %v3651
        %v3677 = vmul.f32 %v3633, %v3651
        %v3678 = vmul.f32 %v3636, %v3651
        %v3679 = vmul.f32 %v3638, %v3651
        %v3680 = vmul.f32 %v3641, %v3651
        %v3681 = vmul.f32 %v3643, %v3651
        %v3682 = vmul.f32 %v3646, %v3651
        %v3683 = vmul.f32 %v3648, %v3651
        %v3684 = vld [vmem:[#allocation13 + $0x7] sm:$0x1]
        %v3685 = vperm.slane %v3684, 0
        %v3686 = vadd.f32 %v3652, %v3685
        %v3687 = vadd.f32 %v3653, %v3685
        %v3688 = vadd.f32 %v3654, %v3685
        %v3689 = vadd.f32 %v3655, %v3685
        %v3690 = vadd.f32 %v3656, %v3685
        %v3691 = vadd.f32 %v3657, %v3685
        %v3692 = vadd.f32 %v3658, %v3685
        %v3693 = vadd.f32 %v3659, %v3685
        %v3694 = vadd.f32 %v3660, %v3685
        %v3695 = vadd.f32 %v3661, %v3685
        %v3696 = vadd.f32 %v3662, %v3685
        %v3697 = vadd.f32 %v3663, %v3685
        %v3698 = vadd.f32 %v3664, %v3685
        %v3699 = vadd.f32 %v3665, %v3685
        %v3700 = vadd.f32 %v3666, %v3685
        %v3701 = vadd.f32 %v3667, %v3685
        %v3702 = vadd.f32 %v3668, %v3685
        %v3703 = vadd.f32 %v3669, %v3685
        %v3704 = vadd.f32 %v3670, %v3685
        %v3705 = vadd.f32 %v3671, %v3685
        %v3706 = vadd.f32 %v3672, %v3685
        %v3707 = vadd.f32 %v3673, %v3685
        %v3708 = vadd.f32 %v3674, %v3685
        %v3709 = vadd.f32 %v3675, %v3685
        %v3710 = vadd.f32 %v3676, %v3685
        %v3711 = vadd.f32 %v3677, %v3685
        %v3712 = vadd.f32 %v3678, %v3685
        %v3713 = vadd.f32 %v3679, %v3685
        %v3714 = vadd.f32 %v3680, %v3685
        %v3715 = vadd.f32 %v3681, %v3685
        %v3716 = vadd.f32 %v3682, %v3685
        %v3717 = vadd.f32 %v3683, %v3685
        %v3718 = vadd.f32 %v3465, %v3686
        %v3719 = vadd.f32 %v3466, %v3687
        %v3720 = vadd.f32 %v3467, %v3688
        %v3721 = vadd.f32 %v3468, %v3689
        %v3722 = vadd.f32 %v3469, %v3690
        %v3723 = vadd.f32 %v3470, %v3691
        %v3724 = vadd.f32 %v3471, %v3692
        %v3725 = vadd.f32 %v3472, %v3693
        %v3726 = vadd.f32 %v3473, %v3694
        %v3727 = vadd.f32 %v3474, %v3695
        %v3728 = vadd.f32 %v3475, %v3696
        %v3729 = vadd.f32 %v3476, %v3697
        %v3730 = vadd.f32 %v3477, %v3698
        %v3731 = vadd.f32 %v3478, %v3699
        %v3732 = vadd.f32 %v3479, %v3700
        %v3733 = vadd.f32 %v3480, %v3701
        %v3734 = vadd.f32 %v3481, %v3702
        %v3735 = vadd.f32 %v3482, %v3703
        %v3736 = vadd.f32 %v3483, %v3704
        %v3737 = vadd.f32 %v3484, %v3705
        %v3738 = vadd.f32 %v3485, %v3706
        %v3739 = vadd.f32 %v3486, %v3707
        %v3740 = vadd.f32 %v3487, %v3708
        %v3741 = vadd.f32 %v3488, %v3709
        %v3742 = vadd.f32 %v3489, %v3710
        %v3743 = vadd.f32 %v3490, %v3711
        %v3744 = vadd.f32 %v3491, %v3712
        %v3745 = vadd.f32 %v3492, %v3713
        %v3746 = vadd.f32 %v3493, %v3714
        %v3747 = vadd.f32 %v3494, %v3715
        %v3748 = vadd.f32 %v3495, %v3716
        %v3749 = vadd.f32 %v3496, %v3717
        %v3750 = vmax.f32 %v3718, 0.0
        %v3751 = vmax.f32 %v3719, 0.0
        %v3752 = vmax.f32 %v3720, 0.0
        %v3753 = vmax.f32 %v3721, 0.0
        %v3754 = vmax.f32 %v3722, 0.0
        %v3755 = vmax.f32 %v3723, 0.0
        %v3756 = vmax.f32 %v3724, 0.0
        %v3757 = vmax.f32 %v3725, 0.0
        %v3758 = vmax.f32 %v3726, 0.0
        %v3759 = vmax.f32 %v3727, 0.0
        %v3760 = vmax.f32 %v3728, 0.0
        %v3761 = vmax.f32 %v3729, 0.0
        %v3762 = vmax.f32 %v3730, 0.0
        %v3763 = vmax.f32 %v3731, 0.0
        %v3764 = vmax.f32 %v3732, 0.0
        %v3765 = vmax.f32 %v3733, 0.0
        %v3766 = vmax.f32 %v3734, 0.0
        %v3767 = vmax.f32 %v3735, 0.0
        %v3768 = vmax.f32 %v3736, 0.0
        %v3769 = vmax.f32 %v3737, 0.0
        %v3770 = vmax.f32 %v3738, 0.0
        %v3771 = vmax.f32 %v3739, 0.0
        %v3772 = vmax.f32 %v3740, 0.0
        %v3773 = vmax.f32 %v3741, 0.0
        %v3774 = vmax.f32 %v3742, 0.0
        %v3775 = vmax.f32 %v3743, 0.0
        %v3776 = vmax.f32 %v3744, 0.0
        %v3777 = vmax.f32 %v3745, 0.0
        %v3778 = vmax.f32 %v3746, 0.0
        %v3779 = vmax.f32 %v3747, 0.0
        %v3780 = vmax.f32 %v3748, 0.0
        %v3781 = vmax.f32 %v3749, 0.0
        %3782 = vst [vmem:[%s443] sm:$0xff] %v3750
        %3783 = vst [vmem:[%s443 + $0x8] sm:$0xff] %v3751
        %3784 = vst [vmem:[%s443 + $0x10] sm:$0xff] %v3752
        %3785 = vst [vmem:[%s443 + $0x18] sm:$0xff] %v3753
        %3786 = vst [vmem:[%s443 + $0x20] sm:$0xff] %v3754
        %3787 = vst [vmem:[%s443 + $0x28] sm:$0xff] %v3755
        %3788 = vst [vmem:[%s443 + $0x30] sm:$0xff] %v3756
        %3789 = vst [vmem:[%s443 + $0x38] sm:$0xff] %v3757
        %3790 = vst [vmem:[%s443 + $0x40] sm:$0xff] %v3758
        %3791 = vst [vmem:[%s443 + $0x48] sm:$0xff] %v3759
        %3792 = vst [vmem:[%s443 + $0x50] sm:$0xff] %v3760
        %3793 = vst [vmem:[%s443 + $0x58] sm:$0xff] %v3761
        %3794 = vst [vmem:[%s443 + $0x60] sm:$0xff] %v3762
        %3795 = vst [vmem:[%s443 + $0x68] sm:$0xff] %v3763
        %3796 = vst [vmem:[%s443 + $0x70] sm:$0xff] %v3764
        %3797 = vst [vmem:[%s443 + $0x78] sm:$0xff] %v3765
        %3798 = vst [vmem:[%s443 + $0x80] sm:$0xff] %v3766
        %3799 = vst [vmem:[%s443 + $0x88] sm:$0xff] %v3767
        %3800 = vst [vmem:[%s443 + $0x90] sm:$0xff] %v3768
        %3801 = vst [vmem:[%s443 + $0x98] sm:$0xff] %v3769
        %3802 = vst [vmem:[%s443 + $0xa0] sm:$0xff] %v3770
        %3803 = vst [vmem:[%s443 + $0xa8] sm:$0xff] %v3771
        %3804 = vst [vmem:[%s443 + $0xb0] sm:$0xff] %v3772
        %3805 = vst [vmem:[%s443 + $0xb8] sm:$0xff] %v3773
        %3806 = vst [vmem:[%s443 + $0xc0] sm:$0xff] %v3774
        %3807 = vst [vmem:[%s443 + $0xc8] sm:$0xff] %v3775
        %3808 = vst [vmem:[%s443 + $0xd0] sm:$0xff] %v3776
        %3809 = vst [vmem:[%s443 + $0xd8] sm:$0xff] %v3777
        %3810 = vst [vmem:[%s443 + $0xe0] sm:$0xff] %v3778
        %3811 = vst [vmem:[%s443 + $0xe8] sm:$0xff] %v3779
        %3812 = vst [vmem:[%s443 + $0xf0] sm:$0xff] %v3780
        %3813 = vst [vmem:[%s443 + $0xf8] sm:$0xff] %v3781
        %s3814 = sand.u32 %s212, 1
        %s3815 = scalar_lea.sflag [#allocation4], %s3814
        %s3816 = sand.u32 %s212, 1
        %s3817 = smul.addr %s3816, 256
        %s3818 = scalar_lea.vmem [#allocation14], %s3817
        // Predicated region
        $region77: #{tpu_custom_call.1} parent=47 // pred_check
          %p3819 = pneg %p222
        $region78: #{tpu_custom_call.1} parent=47 // pred_check_branch
          %3821 = sbr.rel (%p3819) target = $region80
        $region79: #{tpu_custom_call.1} parent=47 // pred_region
          %s3822 = smul.u32 16, %s34
          %3824 = vsyncadd %s3815, 0
          %s3825 = smul.addr %s3822, 2
          %s3826 = smul.addr %s33, 32
          %s3827 = sadd.s32 %s3825, %s3826
          %s3828 = smul.addr %s3827, 8
          %s3829 = scalar_lea.hbm %s7, %s3828
          %s3830 = sshll.u32 %s3818, 4
          %s3831 = int_to_ptr.vmem [resolvable:$true] %s3830
          %s3832 = sshll.u32 %s3829, 4
          %s3833 = int_to_ptr.hbm [resolvable:$true] %s3832
          %3838 = dma.vmem_to_hbm [thread:$0]  %s3831, 4096, %s3833, %s3815, 128, 128, 8
        $region80: #{tpu_custom_call.1} parent=47 // pred_fallthru
          _
      $region48: #{tpu_custom_call.1} parent=5 // pred_fallthru
        _
      %p3839 = scmp.le.s32.totalorder 2, %s24
      // Predicated region
      $region81: #{tpu_custom_call.1} parent=5 // pred_check
        %p3840 = pneg %p3839
      $region82: #{tpu_custom_call.1} parent=5 // pred_check_branch
        %3842 = sbr.rel (%p3840) target = $region84
      $region83: #{tpu_custom_call.1} parent=5 // pred_region
        %s3843 = ssub.s32 %s24, 2
        // Predicated region
        $region85: #{tpu_custom_call.1} parent=83 // pred_check
          %p3844 = pneg %p228
        $region86: #{tpu_custom_call.1} parent=83 // pred_check_branch
          %3846 = sbr.rel (%p3844) target = $region88
        $region87: #{tpu_custom_call.1} parent=83 // pred_region
          %s3847 = sand.u32 %s213, 1
          %s3848 = scalar_lea.sflag [#allocation4], %s3847
          %s3849 = sand.u32 %s213, 1
          %s3850 = smul.addr %s3849, 256
          %s3851 = scalar_lea.vmem [#allocation14], %s3850
          %3853 = dma.done %s3848, 4096
        $region88: #{tpu_custom_call.1} parent=83 // pred_fallthru
          _
      $region84: #{tpu_custom_call.1} parent=5 // pred_fallthru
        _
    $region6: #{tpu_custom_call.1} parent=1 // loop_footer
      %s28 = sadd.s32 1, %s24
    $region7: #{tpu_custom_call.1} parent=1 // loop_footer_branch
      %23 = sbr.rel target = $region3
    $region8: #{tpu_custom_call.1} parent=1 // loop_exit
      _
    %3854 = vsyncpa [#allocation3], 1
    %s3855 = scalar_lea.sflag [#allocation3], 1
    %3856 = vsyncpa %s3855, 1
    %3857 = vsyncpa [#allocation6], 1
    %s3858 = scalar_lea.sflag [#allocation6], 1
    %3859 = vsyncpa %s3858, 1
    %3860 = vsyncpa [#allocation9], 1
    %3861 = vsyncpa [#allocation12], 1
    %3862 = vsyncpa [#allocation4], 1
    %s3863 = scalar_lea.sflag [#allocation4], 1
    %3864 = vsyncpa %s3863, 1

</llo_original>
